<compile_context>
chip_gen: v6e
topology: v6e:2x2x1
jax: 0.10.0
libtpu: 0.0.40
codegen_flags: <defaults>
</compile_context>

<pallas_src>
import jax
import jax.numpy as jnp
from jax.experimental import pallas as pl
from jax.experimental.pallas import tpu as pltpu


LAYER_DIMS = [(100, 256), (256, 512), (512, 1024), (1024, 8748)]
OUT_DIM = 8748
OUT_PAD = 8960   # 70 * 128: lane-aligned padded output features of layer 4
N_TILE = 896     # 7 * 128 -> 10 grid steps (even split across 2 TCs on v7x)


# ---------------------------------------------------------------------------
# Kernels
# ---------------------------------------------------------------------------

def _mlp123_kernel(x_ref, w1_ref, b1_ref, w2_ref, b2_ref, w3_ref, b3_ref,
                   h_ref):
    """Layers 1-3 (ReLU MLP). Everything fits in VMEM; single grid step."""
    h = jnp.dot(x_ref[...], w1_ref[...], preferred_element_type=jnp.float32)
    h = jnp.maximum(h + b1_ref[...], 0.0)
    h = jnp.dot(h, w2_ref[...], preferred_element_type=jnp.float32)
    h = jnp.maximum(h + b2_ref[...], 0.0)
    h = jnp.dot(h, w3_ref[...], preferred_element_type=jnp.float32)
    h_ref[...] = jnp.maximum(h + b3_ref[...], 0.0).astype(h_ref.dtype)


def _layer4_kernel(h_ref, w4_ref, b4_ref, o_ref):
    """Layer 4 + tanh for one N-tile of the (1024, OUT_PAD) weight stream."""
    z = jnp.dot(h_ref[...], w4_ref[...], preferred_element_type=jnp.float32)
    o_ref[...] = jnp.tanh(z + b4_ref[...]).astype(o_ref.dtype)


# ---------------------------------------------------------------------------
# pallas_call wrappers
# ---------------------------------------------------------------------------

def mlp_hidden(x, w1, b1, w2, b2, w3, b3):
    """x: (B, 100) -> h3: (B, 1024). All blocks are full arrays (~2.7 MB)."""
    B = x.shape[0]
    const = lambda i: (0, 0)
    return pl.pallas_call(
        _mlp123_kernel,
        out_shape=jax.ShapeDtypeStruct((B, 1024), x.dtype),
        grid_spec=pl.GridSpec(
            grid=(1,),
            in_specs=[
                pl.BlockSpec(x.shape, const),    # (B, 100)
                pl.BlockSpec(w1.shape, const),   # (100, 256)
                pl.BlockSpec(b1.shape, const),   # (1, 256)
                pl.BlockSpec(w2.shape, const),   # (256, 512)
                pl.BlockSpec(b2.shape, const),   # (1, 512)
                pl.BlockSpec(w3.shape, const),   # (512, 1024)
                pl.BlockSpec(b3.shape, const),   # (1, 1024)
            ],
            out_specs=pl.BlockSpec((B, 1024), const),
        ),
    )(x, w1, b1, w2, b2, w3, b3)


def layer4_tanh(h3, w4p, b4p, *, n_tile=N_TILE):
    """h3: (B, 1024); w4p/b4p padded to OUT_PAD features. Returns (B, OUT_PAD).

    HBM-bandwidth bound on the w4 stream. Per grid step: one (1024, n_tile)
    f32 tile (~3.67 MB at n_tile=896), default double-buffered -> ~7.5 MB
    VMEM residency, safe under every generation's default scoped limit.
    """
    B = h3.shape[0]
    Kin, Np = w4p.shape
    assert Np % n_tile == 0
    n_steps = Np // n_tile

    const = lambda j: (0, 0)   # whole-array block, resident in VMEM
    tiled = lambda j: (0, j)   # tiled over layer-4 output features

    flops = 2 * B * Kin * Np
    bytes_accessed = 4 * (h3.size + w4p.size + b4p.size + B * Np)
    cost = pl.CostEstimate(flops=int(flops),
                           transcendentals=int(B * Np),
                           bytes_accessed=int(bytes_accessed))

    return pl.pallas_call(
        _layer4_kernel,
        out_shape=jax.ShapeDtypeStruct((B, Np), h3.dtype),
        grid_spec=pl.GridSpec(
            grid=(n_steps,),
            in_specs=[
                pl.BlockSpec(h3.shape, const),             # (B, 1024) full
                # Explicit Buffered(2) == default double-buffering; depth 3
                # bought nothing at these DMA sizes and risked v5e VMEM.
                pl.BlockSpec((Kin, n_tile), tiled,
                             pipeline_mode=pl.Buffered(2)),  # w4 N-tile
                pl.BlockSpec((1, n_tile), tiled),            # b4 N-tile
            ],
            out_specs=pl.BlockSpec((B, n_tile), tiled),      # lane-dense out
        ),
        compiler_params=pltpu.CompilerParams(
            dimension_semantics=("parallel",),
        ),
        cost_estimate=cost,
    )(h3, w4p, b4p)


# ---------------------------------------------------------------------------
# Parameters & forward
# ---------------------------------------------------------------------------

def init_generator_params(key, dtype=jnp.float32):
    """nn.Linear-default init (U[-1/sqrt(fan_in), +1/sqrt(fan_in)]).

    Layer-4 weight/bias are zero-padded to OUT_PAD output features HERE, once,
    so the jitted forward never re-pads the ~36 MB dominant tensor.
    Biases are stored as (1, N) for direct broadcast inside the kernels.
    """
    params = []
    for li, (fan_in, fan_out) in enumerate(LAYER_DIMS):
        key, kw, kb = jax.random.split(key, 3)
        bound = 1.0 / jnp.sqrt(fan_in)
        w = jax.random.uniform(kw, (fan_in, fan_out), dtype, -bound, bound)
        b = jax.random.uniform(kb, (fan_out,), dtype, -bound, bound)
        if li == len(LAYER_DIMS) - 1:
            pad = OUT_PAD - OUT_DIM
            w = jnp.pad(w, ((0, 0), (0, pad)))
            b = jnp.pad(b, (0, pad))
        params.append((w, b.reshape(1, -1)))
    return params


@jax.jit
def generator_forward(x, params):
    (w1, b1), (w2, b2), (w3, b3), (w4p, b4p) = params
    h3 = mlp_hidden(x, w1, b1, w2, b2, w3, b3)        # (B, 1024)
    out = layer4_tanh(h3, w4p, b4p)                   # (B, OUT_PAD)
    return out[:, :OUT_DIM]                           # (B, 8748)


def generator_reference(x, params):
    """Pure-JAX reference for correctness checking (uses the padded params)."""
    (w1, b1), (w2, b2), (w3, b3), (w4p, b4p) = params
    h = jnp.maximum(x @ w1 + b1, 0.0)
    h = jnp.maximum(h @ w2 + b2, 0.0)
    h = jnp.maximum(h @ w3 + b3, 0.0)
    return jnp.tanh(h @ w4p + b4p)[:, :OUT_DIM]


if __name__ == "__main__":
    key = jax.random.PRNGKey(0)
    kp, kx = jax.random.split(key)

    params = init_generator_params(kp)

    # Small batch for the smoke test. For throughput, callers should batch
    # 64-256 latents (multiple of 8): the w4 HBM stream cost is B-independent.
    B = 8
    x = jax.random.normal(kx, (B, 100), dtype=jnp.float32)

    out = generator_forward(x, params)
    out = jax.block_until_ready(out)

    ref = generator_reference(x, params)
    assert out.shape == (B, OUT_DIM), out.shape
    assert jnp.allclose(out, ref, atol=1e-5, rtol=1e-5), "mismatch vs reference"

    print("KERNEL_OK")
</pallas_src>

<mosaic_0001>
module attributes {stable_mosaic.version = 11 : i64} {
  func.func @_mlp123_kernel(%arg0: i32, %arg1: memref<8x100xf32, #tpu.memory_space<vmem>>, %arg2: memref<100x256xf32, #tpu.memory_space<vmem>>, %arg3: memref<1x256xf32, #tpu.memory_space<vmem>>, %arg4: memref<256x512xf32, #tpu.memory_space<vmem>>, %arg5: memref<1x512xf32, #tpu.memory_space<vmem>>, %arg6: memref<512x1024xf32, #tpu.memory_space<vmem>>, %arg7: memref<1x1024xf32, #tpu.memory_space<vmem>>, %arg8: memref<8x1024xf32, #tpu.memory_space<vmem>>) attributes {dimension_semantics = [#tpu.dimension_semantics<arbitrary>], iteration_bounds = array<i64: 1>, scalar_prefetch = 0 : i64, scratch_operands = 0 : i64, tpu.core_type = #tpu.core_type<tc>, window_params = [{pipeline_mode = #tpu.pipeline_mode<synchronous>, transform_indices = @transform_0, window_bounds = array<i64: 8, 100>}, {pipeline_mode = #tpu.pipeline_mode<synchronous>, transform_indices = @transform_1, window_bounds = array<i64: 100, 256>}, {pipeline_mode = #tpu.pipeline_mode<synchronous>, transform_indices = @transform_2, window_bounds = array<i64: 1, 256>}, {pipeline_mode = #tpu.pipeline_mode<synchronous>, transform_indices = @transform_3, window_bounds = array<i64: 256, 512>}, {pipeline_mode = #tpu.pipeline_mode<synchronous>, transform_indices = @transform_4, window_bounds = array<i64: 1, 512>}, {pipeline_mode = #tpu.pipeline_mode<synchronous>, transform_indices = @transform_5, window_bounds = array<i64: 512, 1024>}, {pipeline_mode = #tpu.pipeline_mode<synchronous>, transform_indices = @transform_6, window_bounds = array<i64: 1, 1024>}, {pipeline_mode = #tpu.pipeline_mode<synchronous>, transform_indices = @transform_7, window_bounds = array<i64: 8, 1024>}]} {
    %c0 = arith.constant 0 : index
    %c0_0 = arith.constant 0 : index
    %0 = vector.load %arg1[%c0, %c0_0] : memref<8x100xf32, #tpu.memory_space<vmem>>, vector<8x100xf32>
    %c0_1 = arith.constant 0 : index
    %c0_2 = arith.constant 0 : index
    %1 = vector.load %arg2[%c0_1, %c0_2] : memref<100x256xf32, #tpu.memory_space<vmem>>, vector<100x256xf32>
    %cst = arith.constant dense<0.000000e+00> : vector<8x256xf32>
    %2 = tpu.matmul %0, %1, %cst {dimension_numbers = #tpu.dot_dimension_numbers<[1], [0], [0], [1], [0, 0, 1, 1], [], []>} : vector<8x100xf32>, vector<100x256xf32>, vector<8x256xf32> -> vector<8x256xf32>
    %c0_3 = arith.constant 0 : index
    %c0_4 = arith.constant 0 : index
    %3 = vector.load %arg3[%c0_3, %c0_4] : memref<1x256xf32, #tpu.memory_space<vmem>>, vector<1x256xf32>
    %4 = vector.broadcast %3 : vector<1x256xf32> to vector<8x256xf32>
    %5 = arith.addf %2, %4 : vector<8x256xf32>
    %cst_5 = arith.constant 0.000000e+00 : f32
    %6 = vector.broadcast %cst_5 : f32 to vector<8x256xf32>
    %7 = arith.maximumf %5, %6 : vector<8x256xf32>
    %c0_6 = arith.constant 0 : index
    %c0_7 = arith.constant 0 : index
    %8 = vector.load %arg4[%c0_6, %c0_7] : memref<256x512xf32, #tpu.memory_space<vmem>>, vector<256x512xf32>
    %cst_8 = arith.constant dense<0.000000e+00> : vector<8x512xf32>
    %9 = tpu.matmul %7, %8, %cst_8 {dimension_numbers = #tpu.dot_dimension_numbers<[1], [0], [0], [1], [0, 0, 1, 1], [], []>} : vector<8x256xf32>, vector<256x512xf32>, vector<8x512xf32> -> vector<8x512xf32>
    %c0_9 = arith.constant 0 : index
    %c0_10 = arith.constant 0 : index
    %10 = vector.load %arg5[%c0_9, %c0_10] : memref<1x512xf32, #tpu.memory_space<vmem>>, vector<1x512xf32>
    %11 = vector.broadcast %10 : vector<1x512xf32> to vector<8x512xf32>
    %12 = arith.addf %9, %11 : vector<8x512xf32>
    %cst_11 = arith.constant 0.000000e+00 : f32
    %13 = vector.broadcast %cst_11 : f32 to vector<8x512xf32>
    %14 = arith.maximumf %12, %13 : vector<8x512xf32>
    %c0_12 = arith.constant 0 : index
    %c0_13 = arith.constant 0 : index
    %15 = vector.load %arg6[%c0_12, %c0_13] : memref<512x1024xf32, #tpu.memory_space<vmem>>, vector<512x1024xf32>
    %cst_14 = arith.constant dense<0.000000e+00> : vector<8x1024xf32>
    %16 = tpu.matmul %14, %15, %cst_14 {dimension_numbers = #tpu.dot_dimension_numbers<[1], [0], [0], [1], [0, 0, 1, 1], [], []>} : vector<8x512xf32>, vector<512x1024xf32>, vector<8x1024xf32> -> vector<8x1024xf32>
    %c0_15 = arith.constant 0 : index
    %c0_16 = arith.constant 0 : index
    %17 = vector.load %arg7[%c0_15, %c0_16] : memref<1x1024xf32, #tpu.memory_space<vmem>>, vector<1x1024xf32>
    %18 = vector.broadcast %17 : vector<1x1024xf32> to vector<8x1024xf32>
    %19 = arith.addf %16, %18 : vector<8x1024xf32>
    %cst_17 = arith.constant 0.000000e+00 : f32
    %20 = vector.broadcast %cst_17 : f32 to vector<8x1024xf32>
    %21 = arith.maximumf %19, %20 : vector<8x1024xf32>
    %c0_18 = arith.constant 0 : index
    %c0_19 = arith.constant 0 : index
    %22 = vector.load %arg8[%c0_18, %c0_19] : memref<8x1024xf32, #tpu.memory_space<vmem>>, vector<8x1024xf32>
    tpu.vector_store %arg8[%c0_18, %c0_19], %21 {strides = array<i32>} : memref<8x1024xf32, #tpu.memory_space<vmem>>, vector<8x1024xf32>,
    return
  }
  func.func @transform_0(%arg0: i32) -> (i32, i32) {
    %c0_i32 = arith.constant 0 : i32
    %c0_i32_0 = arith.constant 0 : i32
    %c0_i32_1 = arith.constant 0 : i32
    return %c0_i32, %c0_i32_0 : i32, i32
  }
  func.func @transform_1(%arg0: i32) -> (i32, i32) {
    %c0_i32 = arith.constant 0 : i32
    %c0_i32_0 = arith.constant 0 : i32
    %c0_i32_1 = arith.constant 0 : i32
    return %c0_i32, %c0_i32_0 : i32, i32
  }
  func.func @transform_2(%arg0: i32) -> (i32, i32) {
    %c0_i32 = arith.constant 0 : i32
    %c0_i32_0 = arith.constant 0 : i32
    %c0_i32_1 = arith.constant 0 : i32
    return %c0_i32, %c0_i32_0 : i32, i32
  }
  func.func @transform_3(%arg0: i32) -> (i32, i32) {
    %c0_i32 = arith.constant 0 : i32
    %c0_i32_0 = arith.constant 0 : i32
    %c0_i32_1 = arith.constant 0 : i32
    return %c0_i32, %c0_i32_0 : i32, i32
  }
  func.func @transform_4(%arg0: i32) -> (i32, i32) {
    %c0_i32 = arith.constant 0 : i32
    %c0_i32_0 = arith.constant 0 : i32
    %c0_i32_1 = arith.constant 0 : i32
    return %c0_i32, %c0_i32_0 : i32, i32
  }
  func.func @transform_5(%arg0: i32) -> (i32, i32) {
    %c0_i32 = arith.constant 0 : i32
    %c0_i32_0 = arith.constant 0 : i32
    %c0_i32_1 = arith.constant 0 : i32
    return %c0_i32, %c0_i32_0 : i32, i32
  }
  func.func @transform_6(%arg0: i32) -> (i32, i32) {
    %c0_i32 = arith.constant 0 : i32
    %c0_i32_0 = arith.constant 0 : i32
    %c0_i32_1 = arith.constant 0 : i32
    return %c0_i32, %c0_i32_0 : i32, i32
  }
  func.func @transform_7(%arg0: i32) -> (i32, i32) {
    %c0_i32 = arith.constant 0 : i32
    %c0_i32_0 = arith.constant 0 : i32
    %c0_i32_1 = arith.constant 0 : i32
    return %c0_i32, %c0_i32_0 : i32, i32
  }
}

module attributes {stable_mosaic.version = 11 : i64} {
  func.func @_layer4_kernel(%arg0: i32, %arg1: memref<8x1024xf32, #tpu.memory_space<vmem>>, %arg2: memref<1024x896xf32, #tpu.memory_space<vmem>>, %arg3: memref<1x896xf32, #tpu.memory_space<vmem>>, %arg4: memref<8x896xf32, #tpu.memory_space<vmem>>) attributes {dimension_semantics = [#tpu.dimension_semantics<parallel>], iteration_bounds = array<i64: 10>, scalar_prefetch = 0 : i64, scratch_operands = 0 : i64, tpu.core_type = #tpu.core_type<tc>, window_params = [{pipeline_mode = #tpu.pipeline_mode<synchronous>, transform_indices = @transform_0, window_bounds = array<i64: 8, 1024>}, {pipeline_mode = #tpu.pipeline_mode<double_buffered>, transform_indices = @transform_1, window_bounds = array<i64: 1024, 896>}, {transform_indices = @transform_2, window_bounds = array<i64: 1, 896>}, {transform_indices = @transform_3, window_bounds = array<i64: 8, 896>}]} {
    %c0 = arith.constant 0 : index
    %c0_0 = arith.constant 0 : index
    %0 = vector.load %arg1[%c0, %c0_0] : memref<8x1024xf32, #tpu.memory_space<vmem>>, vector<8x1024xf32>
    %c0_1 = arith.constant 0 : index
    %c0_2 = arith.constant 0 : index
    %1 = vector.load %arg2[%c0_1, %c0_2] : memref<1024x896xf32, #tpu.memory_space<vmem>>, vector<1024x896xf32>
    %cst = arith.constant dense<0.000000e+00> : vector<8x896xf32>
    %2 = tpu.matmul %0, %1, %cst {dimension_numbers = #tpu.dot_dimension_numbers<[1], [0], [0], [1], [0, 0, 1, 1], [], []>} : vector<8x1024xf32>, vector<1024x896xf32>, vector<8x896xf32> -> vector<8x896xf32>
    %c0_3 = arith.constant 0 : index
    %c0_4 = arith.constant 0 : index
    %3 = vector.load %arg3[%c0_3, %c0_4] : memref<1x896xf32, #tpu.memory_space<vmem>>, vector<1x896xf32>
    %4 = vector.broadcast %3 : vector<1x896xf32> to vector<8x896xf32>
    %5 = arith.addf %2, %4 : vector<8x896xf32>
    %6 = math.tanh %5 : vector<8x896xf32>
    %c0_5 = arith.constant 0 : index
    %c0_6 = arith.constant 0 : index
    %7 = vector.load %arg4[%c0_5, %c0_6] : memref<8x896xf32, #tpu.memory_space<vmem>>, vector<8x896xf32>
    tpu.vector_store %arg4[%c0_5, %c0_6], %6 {strides = array<i32>} : memref<8x896xf32, #tpu.memory_space<vmem>>, vector<8x896xf32>,
    return
  }
  func.func @transform_0(%arg0: i32) -> (i32, i32) {
    %c0_i32 = arith.constant 0 : i32
    %c0_i32_0 = arith.constant 0 : i32
    %c0_i32_1 = arith.constant 0 : i32
    return %c0_i32, %c0_i32_0 : i32, i32
  }
  func.func @transform_1(%arg0: i32) -> (i32, i32) {
    %c0_i32 = arith.constant 0 : i32
    %c0_i32_0 = arith.constant 0 : i32
    return %c0_i32, %arg0 : i32, i32
  }
  func.func @transform_2(%arg0: i32) -> (i32, i32) {
    %c0_i32 = arith.constant 0 : i32
    %c0_i32_0 = arith.constant 0 : i32
    return %c0_i32, %arg0 : i32, i32
  }
  func.func @transform_3(%arg0: i32) -> (i32, i32) {
    %c0_i32 = arith.constant 0 : i32
    %c0_i32_0 = arith.constant 0 : i32
    return %c0_i32, %arg0 : i32, i32
  }
}

</mosaic_0001>

<llo_original>
// kernel: generator_forward.2
$region0: #{generator_forward.2}
  #allocation0 [shape = 'u32[]', space=smem, size = 0x4, offset = 0x4, fixed_abs, tag = 'smem constant byte address 0x4 - core index']
  #allocation1 [shape = 'u32[144,128]{1,0:T(1,128)}', space=vmem, size = 0x12000, scoped, tag = 'internal scratch']
  %s0 = inlined_call_operand.hbm [shape: f32[8,100], index: 0, kind: input, shape index: {}]
  %s1 = inlined_call_operand.hbm [shape: f32[100,256], index: 1, kind: input, shape index: {}]
  %s2 = inlined_call_operand.hbm [shape: f32[1,256], index: 2, kind: input, shape index: {}]
  %s3 = inlined_call_operand.hbm [shape: f32[256,512], index: 3, kind: input, shape index: {}]
  %s4 = inlined_call_operand.hbm [shape: f32[1,512], index: 4, kind: input, shape index: {}]
  %s5 = inlined_call_operand.hbm [shape: f32[512,1024], index: 5, kind: input, shape index: {}]
  %s6 = inlined_call_operand.hbm [shape: f32[1,1024], index: 6, kind: input, shape index: {}]
  %s7 = inlined_call_operand.vmem [shape: f32[8,1024], index: 7, kind: output, shape index: {}]
  %s8 = sld [smem:[#allocation0]]
  $region66: #{generator_forward.2} parent=0
    _
  %s10 = ssub.s32 1, %s8
  %s11 = scalar_select 0, %s10, %s8
  $region1: #{generator_forward.2} parent=0
    #allocation2 [shape = 'u8[4096]{0}', space=vmem, size = 0x1000, scoped, tag = 'input window, operand 0, single buffered']
    #allocation3 [shape = 's32[1]{0}', space=sflag, size = 0x4, scoped, tag = 'scoped memory for generator_forward.2']
    #allocation4 [shape = 'u8[106496]{0}', space=vmem, size = 0x1a000, scoped, tag = 'input window, operand 1, single buffered']
    #allocation5 [shape = 's32[1]{0}', space=sflag, size = 0x4, scoped, tag = 'scoped memory for generator_forward.2']
    #allocation6 [shape = 'u8[1024]{0}', space=vmem, size = 0x400, scoped, tag = 'input window, operand 2, single buffered']
    #allocation7 [shape = 'u8[524288]{0}', space=vmem, size = 0x80000, scoped, tag = 'input window, operand 3, single buffered']
    #allocation8 [shape = 's32[1]{0}', space=sflag, size = 0x4, scoped, tag = 'scoped memory for generator_forward.2']
    #allocation9 [shape = 'u8[2048]{0}', space=vmem, size = 0x800, scoped, tag = 'input window, operand 4, single buffered']
    #allocation10 [shape = 'u8[2097152]{0}', space=vmem, size = 0x200000, scoped, tag = 'input window, operand 5, single buffered']
    #allocation11 [shape = 's32[1]{0}', space=sflag, size = 0x4, scoped, tag = 'scoped memory for generator_forward.2']
    #allocation12 [shape = 'u8[4096]{0}', space=vmem, size = 0x1000, scoped, tag = 'input window, operand 6, single buffered']
    %12 = vsyncpa [#allocation3], 0
    %13 = vsyncpa [#allocation5], 0
    %14 = vsyncpa [#allocation8], 0
    %15 = vsyncpa [#allocation11], 0
    // Predicated region
    $region2: #{generator_forward.2} parent=1 // pred_check
      _
    $region3: #{generator_forward.2} parent=1 // pred_check_branch
      %17 = sbr.rel (0) target = $region5
    $region4: #{generator_forward.2} parent=1 // pred_region
      %s19 = ssub.s32 128, 128
      %20 = vsyncadd [#allocation3], %s19
      %s22 = sshll.u32 [#allocation2], 4
      %s23 = int_to_ptr.vmem [resolvable:$true] %s22
      %25 = dma.hbm_to_vmem [thread:$0]  %s0, 128, %s23, [#allocation3]
    $region5: #{generator_forward.2} parent=1 // pred_fallthru
      _
    // Predicated region
    $region6: #{generator_forward.2} parent=1 // pred_check
      _
    $region7: #{generator_forward.2} parent=1 // pred_check_branch
      %27 = sbr.rel (0) target = $region9
    $region8: #{generator_forward.2} parent=1 // pred_region
      %s29 = ssub.s32 3328, 3328
      %30 = vsyncadd [#allocation5], %s29
      %s31 = sshll.u32 [#allocation4], 4
      %s32 = int_to_ptr.vmem [resolvable:$true] %s31
      %37 = dma.hbm_to_vmem [thread:$0]  %s1, 3328, %s32, [#allocation5], 256, 256, 16
    $region9: #{generator_forward.2} parent=1 // pred_fallthru
      _
    // Predicated region
    $region10: #{generator_forward.2} parent=1 // pred_check
      _
    $region11: #{generator_forward.2} parent=1 // pred_check_branch
      %39 = sbr.rel (0) target = $region13
    $region12: #{generator_forward.2} parent=1 // pred_region
      %s41 = ssub.s32 32, 32
      %42 = vsyncadd [#allocation5], %s41
      %s44 = sshll.u32 [#allocation6], 4
      %s45 = int_to_ptr.vmem [resolvable:$true] %s44
      %47 = dma.hbm_to_vmem [thread:$0]  %s2, 32, %s45, [#allocation5]
    $region13: #{generator_forward.2} parent=1 // pred_fallthru
      _
    // Predicated region
    $region14: #{generator_forward.2} parent=1 // pred_check
      _
    $region15: #{generator_forward.2} parent=1 // pred_check_branch
      %49 = sbr.rel (0) target = $region17
    $region16: #{generator_forward.2} parent=1 // pred_region
      %s51 = ssub.s32 16384, 16384
      %52 = vsyncadd [#allocation8], %s51
      %s53 = sshll.u32 [#allocation7], 4
      %s54 = int_to_ptr.vmem [resolvable:$true] %s53
      %59 = dma.hbm_to_vmem [thread:$0]  %s3, 16384, %s54, [#allocation8], 512, 512, 32
    $region17: #{generator_forward.2} parent=1 // pred_fallthru
      _
    // Predicated region
    $region18: #{generator_forward.2} parent=1 // pred_check
      _
    $region19: #{generator_forward.2} parent=1 // pred_check_branch
      %61 = sbr.rel (0) target = $region21
    $region20: #{generator_forward.2} parent=1 // pred_region
      %s63 = ssub.s32 64, 64
      %64 = vsyncadd [#allocation8], %s63
      %s66 = sshll.u32 [#allocation9], 4
      %s67 = int_to_ptr.vmem [resolvable:$true] %s66
      %69 = dma.hbm_to_vmem [thread:$0]  %s4, 64, %s67, [#allocation8]
    $region21: #{generator_forward.2} parent=1 // pred_fallthru
      _
    // Predicated region
    $region22: #{generator_forward.2} parent=1 // pred_check
      _
    $region23: #{generator_forward.2} parent=1 // pred_check_branch
      %71 = sbr.rel (0) target = $region25
    $region24: #{generator_forward.2} parent=1 // pred_region
      %s73 = ssub.s32 65536, 65536
      %74 = vsyncadd [#allocation11], %s73
      %s75 = sshll.u32 [#allocation10], 4
      %s76 = int_to_ptr.vmem [resolvable:$true] %s75
      %81 = dma.hbm_to_vmem [thread:$0]  %s5, 65536, %s76, [#allocation11], 1024, 1024, 64
    $region25: #{generator_forward.2} parent=1 // pred_fallthru
      _
    // Predicated region
    $region26: #{generator_forward.2} parent=1 // pred_check
      _
    $region27: #{generator_forward.2} parent=1 // pred_check_branch
      %83 = sbr.rel (0) target = $region29
    $region28: #{generator_forward.2} parent=1 // pred_region
      %s85 = ssub.s32 128, 128
      %86 = vsyncadd [#allocation11], %s85
      %s88 = sshll.u32 [#allocation12], 4
      %s89 = int_to_ptr.vmem [resolvable:$true] %s88
      %91 = dma.hbm_to_vmem [thread:$0]  %s6, 128, %s89, [#allocation11]
    $region29: #{generator_forward.2} parent=1 // pred_fallthru
      _
    // Predicated region
    $region30: #{generator_forward.2} parent=1 // pred_check
      _
    $region31: #{generator_forward.2} parent=1 // pred_check_branch
      %93 = sbr.rel (0) target = $region33
    $region32: #{generator_forward.2} parent=1 // pred_region
      %94 = dma.done [#allocation3], 128
    $region33: #{generator_forward.2} parent=1 // pred_fallthru
      _
    // Predicated region
    $region34: #{generator_forward.2} parent=1 // pred_check
      _
    $region35: #{generator_forward.2} parent=1 // pred_check_branch
      %96 = sbr.rel (0) target = $region37
    $region36: #{generator_forward.2} parent=1 // pred_region
      %97 = dma.done [#allocation5], 3328
    $region37: #{generator_forward.2} parent=1 // pred_fallthru
      _
    // Predicated region
    $region38: #{generator_forward.2} parent=1 // pred_check
      _
    $region39: #{generator_forward.2} parent=1 // pred_check_branch
      %99 = sbr.rel (0) target = $region41
    $region40: #{generator_forward.2} parent=1 // pred_region
      %100 = dma.done [#allocation5], 32
    $region41: #{generator_forward.2} parent=1 // pred_fallthru
      _
    // Predicated region
    $region42: #{generator_forward.2} parent=1 // pred_check
      _
    $region43: #{generator_forward.2} parent=1 // pred_check_branch
      %102 = sbr.rel (0) target = $region45
    $region44: #{generator_forward.2} parent=1 // pred_region
      %103 = dma.done [#allocation8], 16384
    $region45: #{generator_forward.2} parent=1 // pred_fallthru
      _
    // Predicated region
    $region46: #{generator_forward.2} parent=1 // pred_check
      _
    $region47: #{generator_forward.2} parent=1 // pred_check_branch
      %105 = sbr.rel (0) target = $region49
    $region48: #{generator_forward.2} parent=1 // pred_region
      %106 = dma.done [#allocation8], 64
    $region49: #{generator_forward.2} parent=1 // pred_fallthru
      _
    // Predicated region
    $region50: #{generator_forward.2} parent=1 // pred_check
      _
    $region51: #{generator_forward.2} parent=1 // pred_check_branch
      %108 = sbr.rel (0) target = $region53
    $region52: #{generator_forward.2} parent=1 // pred_region
      %109 = dma.done [#allocation11], 65536
    $region53: #{generator_forward.2} parent=1 // pred_fallthru
      _
    // Predicated region
    $region54: #{generator_forward.2} parent=1 // pred_check
      _
    $region55: #{generator_forward.2} parent=1 // pred_check_branch
      %111 = sbr.rel (0) target = $region57
    $region56: #{generator_forward.2} parent=1 // pred_region
      %112 = dma.done [#allocation11], 128
    $region57: #{generator_forward.2} parent=1 // pred_fallthru
      _
    %v113 = vld [vmem:[#allocation2] sm:$0xff]
    %v114 = vld [vmem:[#allocation4] sm:$0xff]
    %v115 = vld [vmem:[#allocation4 + $0x8] sm:$0xff]
    %v116 = vld [vmem:[#allocation4 + $0x10] sm:$0xff]
    %v117 = vld [vmem:[#allocation4 + $0x18] sm:$0xff]
    %v118 = vld [vmem:[#allocation4 + $0x20] sm:$0xff]
    %v119 = vld [vmem:[#allocation4 + $0x28] sm:$0xff]
    %v120 = vld [vmem:[#allocation4 + $0x30] sm:$0xff]
    %v121 = vld [vmem:[#allocation4 + $0x38] sm:$0xff]
    %v122 = vld [vmem:[#allocation4 + $0x40] sm:$0xff]
    %v123 = vld [vmem:[#allocation4 + $0x48] sm:$0xff]
    %v124 = vld [vmem:[#allocation4 + $0x50] sm:$0xff]
    %v125 = vld [vmem:[#allocation4 + $0x58] sm:$0xff]
    %v126 = vld [vmem:[#allocation4 + $0x60] sm:$0xff]
    %v127 = vld [vmem:[#allocation4 + $0x68] sm:$0xff]
    %v128 = vld [vmem:[#allocation4 + $0x70] sm:$0xff]
    %v129 = vld [vmem:[#allocation4 + $0x78] sm:$0xff]
    %v130 = vld [vmem:[#allocation4 + $0x80] sm:$0xff]
    %v131 = vld [vmem:[#allocation4 + $0x88] sm:$0xff]
    %v132 = vld [vmem:[#allocation4 + $0x90] sm:$0xff]
    %v133 = vld [vmem:[#allocation4 + $0x98] sm:$0xff]
    %v134 = vld [vmem:[#allocation4 + $0xa0] sm:$0xff]
    %v135 = vld [vmem:[#allocation4 + $0xa8] sm:$0xff]
    %v136 = vld [vmem:[#allocation4 + $0xb0] sm:$0xff]
    %v137 = vld [vmem:[#allocation4 + $0xb8] sm:$0xff]
    %v138 = vld [vmem:[#allocation4 + $0xc0] sm:$0xf]
    %v139 = vld [vmem:[#allocation4 + $0xc8] sm:$0xf]
    %v140 = vld [vmem:[#allocation6] sm:$0x3]
    %v142 = vlaneseq
    %v143 = vshrl.u32 %v142, 7
    %v144 = vsub.s32 0, %v143
    %v145 = vrot.slane %v140, %v144
    %v146 = vlaneseq
    %v147 = vshrl.u32 %v146, 7
    %v148 = vsub.s32 1, %v147
    %v149 = vrot.slane %v140, %v148
    %vm152 = vcmask 818176
    %v154 = vsel %vm152, %v113, 0
    %vm156 = vcmask 1043456
    %v158 = vsel %vm156, %v138, 0
    %v161 = vsel %vm156, %v139, 0
    %163 = vmatprep.subr.mxu0 0.0
    %164 = vmatpush1.msra.mxu0 0.0
    %165 = vmatprep.subr.mxu0 0.0
    %166 = vmatpush1.msra.mxu0 0.0
    %167 = vmatprep.subr.mxu0 0.0
    %168 = vmatpush1.msra.mxu0 0.0
    %169 = vmatprep.subr.mxu0 %v161
    %170 = vmatpush1.msra.mxu0 %v158
    %171 = vmatprep.subr.mxu0 %v137
    %172 = vmatpush1.msra.mxu0 %v136
    %173 = vmatprep.subr.mxu0 %v135
    %174 = vmatpush1.msra.mxu0 %v134
    %175 = vmatprep.subr.mxu0 %v133
    %176 = vmatpush1.msra.mxu0 %v132
    %177 = vmatprep.subr.mxu0 %v131
    %178 = vmatpush1.msra.mxu0 %v130
    %179 = vmatprep.subr.mxu0 %v129
    %180 = vmatpush1.msra.mxu0 %v128
    %181 = vmatprep.subr.mxu0 %v127
    %182 = vmatpush1.msra.mxu0 %v126
    %183 = vmatprep.subr.mxu0 %v125
    %184 = vmatpush1.msra.mxu0 %v124
    %185 = vmatprep.subr.mxu0 %v123
    %186 = vmatpush1.msra.mxu0 %v122
    %187 = vmatprep.subr.mxu0 %v121
    %188 = vmatpush1.msra.mxu0 %v120
    %189 = vmatprep.subr.mxu0 %v119
    %190 = vmatpush1.msra.mxu0 %v118
    %191 = vmatprep.subr.mxu0 %v117
    %192 = vmatpush1.msra.mxu0 %v116
    %193 = vmatprep.subr.mxu0 %v115
    %194 = vmatpush1.msra.mxu0 %v114
    %195 = vmatprep.subr.mxu0 0.0
    %196 = vmatpush2.msra.mxu0 0.0
    %197 = vmatprep.subr.mxu0 0.0
    %198 = vmatpush2.msra.mxu0 0.0
    %199 = vmatprep.subr.mxu0 0.0
    %200 = vmatpush2.msra.mxu0 0.0
    %201 = vmatprep.subr.mxu0 0.0
    %202 = vmatpush2.msra.mxu0 0.0
    %203 = vmatprep.subr.mxu0 0.0
    %204 = vmatpush2.msra.mxu0 0.0
    %205 = vmatprep.subr.mxu0 0.0
    %206 = vmatpush2.msra.mxu0 0.0
    %207 = vmatprep.subr.mxu0 0.0
    %208 = vmatpush2.msra.mxu0 0.0
    %209 = vmatprep.subr.mxu0 0.0
    %210 = vmatpush2.msra.mxu0 0.0
    %211 = vmatprep.subr.mxu0 0.0
    %212 = vmatpush2.msra.mxu0 0.0
    %213 = vmatprep.subr.mxu0 0.0
    %214 = vmatpush2.msra.mxu0 0.0
    %215 = vmatprep.subr.mxu0 0.0
    %216 = vmatpush2.msra.mxu0 0.0
    %217 = vmatprep.subr.mxu0 0.0
    %218 = vmatpush2.msra.mxu0 0.0
    %219 = vmatprep.subr.mxu0 0.0
    %220 = vmatpush2.msra.mxu0 0.0
    %221 = vmatprep.subr.mxu0 0.0
    %222 = vmatpush2.msra.mxu0 0.0
    %223 = vmatprep.subr.mxu0 0.0
    %224 = vmatpush2.msra.mxu0 0.0
    %225 = vmatprep.subr.mxu0 0.0
    %226 = vmatpush2.msra.mxu0 0.0
    %227 = vmatprep.mubr.f32.mxu0 0.0
    %228 = vmatmul.mubr.f32.gmra.mxu0 %v154
    %v229 = vpop.f32.mrf.mxu0
    %v230 = vadd.f32 %v145, %v229
    %v231 = vpop.f32.mrf.mxu0
    %v232 = vadd.f32 %v149, %v231
    %233 = vdwg.mxu0
    %v234 = vmax.f32 %v230, 0.0
    %v235 = vmax.f32 %v232, 0.0
    %v236 = vld [vmem:[#allocation7] sm:$0xff]
    %v237 = vld [vmem:[#allocation7 + $0x8] sm:$0xff]
    %v238 = vld [vmem:[#allocation7 + $0x10] sm:$0xff]
    %v239 = vld [vmem:[#allocation7 + $0x18] sm:$0xff]
    %v240 = vld [vmem:[#allocation7 + $0x20] sm:$0xff]
    %v241 = vld [vmem:[#allocation7 + $0x28] sm:$0xff]
    %v242 = vld [vmem:[#allocation7 + $0x30] sm:$0xff]
    %v243 = vld [vmem:[#allocation7 + $0x38] sm:$0xff]
    %v244 = vld [vmem:[#allocation7 + $0x40] sm:$0xff]
    %v245 = vld [vmem:[#allocation7 + $0x48] sm:$0xff]
    %v246 = vld [vmem:[#allocation7 + $0x50] sm:$0xff]
    %v247 = vld [vmem:[#allocation7 + $0x58] sm:$0xff]
    %v248 = vld [vmem:[#allocation7 + $0x60] sm:$0xff]
    %v249 = vld [vmem:[#allocation7 + $0x68] sm:$0xff]
    %v250 = vld [vmem:[#allocation7 + $0x70] sm:$0xff]
    %v251 = vld [vmem:[#allocation7 + $0x78] sm:$0xff]
    %v252 = vld [vmem:[#allocation7 + $0x80] sm:$0xff]
    %v253 = vld [vmem:[#allocation7 + $0x88] sm:$0xff]
    %v254 = vld [vmem:[#allocation7 + $0x90] sm:$0xff]
    %v255 = vld [vmem:[#allocation7 + $0x98] sm:$0xff]
    %v256 = vld [vmem:[#allocation7 + $0xa0] sm:$0xff]
    %v257 = vld [vmem:[#allocation7 + $0xa8] sm:$0xff]
    %v258 = vld [vmem:[#allocation7 + $0xb0] sm:$0xff]
    %v259 = vld [vmem:[#allocation7 + $0xb8] sm:$0xff]
    %v260 = vld [vmem:[#allocation7 + $0xc0] sm:$0xff]
    %v261 = vld [vmem:[#allocation7 + $0xc8] sm:$0xff]
    %v262 = vld [vmem:[#allocation7 + $0xd0] sm:$0xff]
    %v263 = vld [vmem:[#allocation7 + $0xd8] sm:$0xff]
    %v264 = vld [vmem:[#allocation7 + $0xe0] sm:$0xff]
    %v265 = vld [vmem:[#allocation7 + $0xe8] sm:$0xff]
    %v266 = vld [vmem:[#allocation7 + $0xf0] sm:$0xff]
    %v267 = vld [vmem:[#allocation7 + $0xf8] sm:$0xff]
    %v268 = vld [vmem:[#allocation7 + $0x100] sm:$0xff]
    %v269 = vld [vmem:[#allocation7 + $0x108] sm:$0xff]
    %v270 = vld [vmem:[#allocation7 + $0x110] sm:$0xff]
    %v271 = vld [vmem:[#allocation7 + $0x118] sm:$0xff]
    %v272 = vld [vmem:[#allocation7 + $0x120] sm:$0xff]
    %v273 = vld [vmem:[#allocation7 + $0x128] sm:$0xff]
    %v274 = vld [vmem:[#allocation7 + $0x130] sm:$0xff]
    %v275 = vld [vmem:[#allocation7 + $0x138] sm:$0xff]
    %v276 = vld [vmem:[#allocation7 + $0x140] sm:$0xff]
    %v277 = vld [vmem:[#allocation7 + $0x148] sm:$0xff]
    %v278 = vld [vmem:[#allocation7 + $0x150] sm:$0xff]
    %v279 = vld [vmem:[#allocation7 + $0x158] sm:$0xff]
    %v280 = vld [vmem:[#allocation7 + $0x160] sm:$0xff]
    %v281 = vld [vmem:[#allocation7 + $0x168] sm:$0xff]
    %v282 = vld [vmem:[#allocation7 + $0x170] sm:$0xff]
    %v283 = vld [vmem:[#allocation7 + $0x178] sm:$0xff]
    %v284 = vld [vmem:[#allocation7 + $0x180] sm:$0xff]
    %v285 = vld [vmem:[#allocation7 + $0x188] sm:$0xff]
    %v286 = vld [vmem:[#allocation7 + $0x190] sm:$0xff]
    %v287 = vld [vmem:[#allocation7 + $0x198] sm:$0xff]
    %v288 = vld [vmem:[#allocation7 + $0x1a0] sm:$0xff]
    %v289 = vld [vmem:[#allocation7 + $0x1a8] sm:$0xff]
    %v290 = vld [vmem:[#allocation7 + $0x1b0] sm:$0xff]
    %v291 = vld [vmem:[#allocation7 + $0x1b8] sm:$0xff]
    %v292 = vld [vmem:[#allocation7 + $0x1c0] sm:$0xff]
    %v293 = vld [vmem:[#allocation7 + $0x1c8] sm:$0xff]
    %v294 = vld [vmem:[#allocation7 + $0x1d0] sm:$0xff]
    %v295 = vld [vmem:[#allocation7 + $0x1d8] sm:$0xff]
    %v296 = vld [vmem:[#allocation7 + $0x1e0] sm:$0xff]
    %v297 = vld [vmem:[#allocation7 + $0x1e8] sm:$0xff]
    %v298 = vld [vmem:[#allocation7 + $0x1f0] sm:$0xff]
    %v299 = vld [vmem:[#allocation7 + $0x1f8] sm:$0xff]
    %v300 = vld [vmem:[#allocation7 + $0x200] sm:$0xff]
    %v301 = vld [vmem:[#allocation7 + $0x208] sm:$0xff]
    %v302 = vld [vmem:[#allocation7 + $0x210] sm:$0xff]
    %v303 = vld [vmem:[#allocation7 + $0x218] sm:$0xff]
    %v304 = vld [vmem:[#allocation7 + $0x220] sm:$0xff]
    %v305 = vld [vmem:[#allocation7 + $0x228] sm:$0xff]
    %v306 = vld [vmem:[#allocation7 + $0x230] sm:$0xff]
    %v307 = vld [vmem:[#allocation7 + $0x238] sm:$0xff]
    %v308 = vld [vmem:[#allocation7 + $0x240] sm:$0xff]
    %v309 = vld [vmem:[#allocation7 + $0x248] sm:$0xff]
    %v310 = vld [vmem:[#allocation7 + $0x250] sm:$0xff]
    %v311 = vld [vmem:[#allocation7 + $0x258] sm:$0xff]
    %v312 = vld [vmem:[#allocation7 + $0x260] sm:$0xff]
    %v313 = vld [vmem:[#allocation7 + $0x268] sm:$0xff]
    %v314 = vld [vmem:[#allocation7 + $0x270] sm:$0xff]
    %v315 = vld [vmem:[#allocation7 + $0x278] sm:$0xff]
    %v316 = vld [vmem:[#allocation7 + $0x280] sm:$0xff]
    %v317 = vld [vmem:[#allocation7 + $0x288] sm:$0xff]
    %v318 = vld [vmem:[#allocation7 + $0x290] sm:$0xff]
    %v319 = vld [vmem:[#allocation7 + $0x298] sm:$0xff]
    %v320 = vld [vmem:[#allocation7 + $0x2a0] sm:$0xff]
    %v321 = vld [vmem:[#allocation7 + $0x2a8] sm:$0xff]
    %v322 = vld [vmem:[#allocation7 + $0x2b0] sm:$0xff]
    %v323 = vld [vmem:[#allocation7 + $0x2b8] sm:$0xff]
    %v324 = vld [vmem:[#allocation7 + $0x2c0] sm:$0xff]
    %v325 = vld [vmem:[#allocation7 + $0x2c8] sm:$0xff]
    %v326 = vld [vmem:[#allocation7 + $0x2d0] sm:$0xff]
    %v327 = vld [vmem:[#allocation7 + $0x2d8] sm:$0xff]
    %v328 = vld [vmem:[#allocation7 + $0x2e0] sm:$0xff]
    %v329 = vld [vmem:[#allocation7 + $0x2e8] sm:$0xff]
    %v330 = vld [vmem:[#allocation7 + $0x2f0] sm:$0xff]
    %v331 = vld [vmem:[#allocation7 + $0x2f8] sm:$0xff]
    %v332 = vld [vmem:[#allocation7 + $0x300] sm:$0xff]
    %v333 = vld [vmem:[#allocation7 + $0x308] sm:$0xff]
    %v334 = vld [vmem:[#allocation7 + $0x310] sm:$0xff]
    %v335 = vld [vmem:[#allocation7 + $0x318] sm:$0xff]
    %v336 = vld [vmem:[#allocation7 + $0x320] sm:$0xff]
    %v337 = vld [vmem:[#allocation7 + $0x328] sm:$0xff]
    %v338 = vld [vmem:[#allocation7 + $0x330] sm:$0xff]
    %v339 = vld [vmem:[#allocation7 + $0x338] sm:$0xff]
    %v340 = vld [vmem:[#allocation7 + $0x340] sm:$0xff]
    %v341 = vld [vmem:[#allocation7 + $0x348] sm:$0xff]
    %v342 = vld [vmem:[#allocation7 + $0x350] sm:$0xff]
    %v343 = vld [vmem:[#allocation7 + $0x358] sm:$0xff]
    %v344 = vld [vmem:[#allocation7 + $0x360] sm:$0xff]
    %v345 = vld [vmem:[#allocation7 + $0x368] sm:$0xff]
    %v346 = vld [vmem:[#allocation7 + $0x370] sm:$0xff]
    %v347 = vld [vmem:[#allocation7 + $0x378] sm:$0xff]
    %v348 = vld [vmem:[#allocation7 + $0x380] sm:$0xff]
    %v349 = vld [vmem:[#allocation7 + $0x388] sm:$0xff]
    %v350 = vld [vmem:[#allocation7 + $0x390] sm:$0xff]
    %v351 = vld [vmem:[#allocation7 + $0x398] sm:$0xff]
    %v352 = vld [vmem:[#allocation7 + $0x3a0] sm:$0xff]
    %v353 = vld [vmem:[#allocation7 + $0x3a8] sm:$0xff]
    %v354 = vld [vmem:[#allocation7 + $0x3b0] sm:$0xff]
    %v355 = vld [vmem:[#allocation7 + $0x3b8] sm:$0xff]
    %v356 = vld [vmem:[#allocation7 + $0x3c0] sm:$0xff]
    %v357 = vld [vmem:[#allocation7 + $0x3c8] sm:$0xff]
    %v358 = vld [vmem:[#allocation7 + $0x3d0] sm:$0xff]
    %v359 = vld [vmem:[#allocation7 + $0x3d8] sm:$0xff]
    %v360 = vld [vmem:[#allocation7 + $0x3e0] sm:$0xff]
    %v361 = vld [vmem:[#allocation7 + $0x3e8] sm:$0xff]
    %v362 = vld [vmem:[#allocation7 + $0x3f0] sm:$0xff]
    %v363 = vld [vmem:[#allocation7 + $0x3f8] sm:$0xff]
    %v364 = vld [vmem:[#allocation9] sm:$0xf]
    %v366 = vlaneseq
    %v367 = vshrl.u32 %v366, 7
    %v368 = vsub.s32 0, %v367
    %v369 = vrot.slane %v364, %v368
    %v370 = vlaneseq
    %v371 = vshrl.u32 %v370, 7
    %v372 = vsub.s32 1, %v371
    %v373 = vrot.slane %v364, %v372
    %v374 = vlaneseq
    %v375 = vshrl.u32 %v374, 7
    %v376 = vsub.s32 2, %v375
    %v377 = vrot.slane %v364, %v376
    %v378 = vlaneseq
    %v379 = vshrl.u32 %v378, 7
    %v380 = vsub.s32 3, %v379
    %v381 = vrot.slane %v364, %v380
    %386 = vmatprep.subr.mxu0 %v297
    %387 = vmatpush1.msra.mxu0 %v296
    %388 = vmatprep.subr.mxu0 %v293
    %389 = vmatpush1.msra.mxu0 %v292
    %390 = vmatprep.subr.mxu0 %v289
    %391 = vmatpush1.msra.mxu0 %v288
    %392 = vmatprep.subr.mxu0 %v285
    %393 = vmatpush1.msra.mxu0 %v284
    %394 = vmatprep.subr.mxu0 %v281
    %395 = vmatpush1.msra.mxu0 %v280
    %396 = vmatprep.subr.mxu0 %v277
    %397 = vmatpush1.msra.mxu0 %v276
    %398 = vmatprep.subr.mxu0 %v273
    %399 = vmatpush1.msra.mxu0 %v272
    %400 = vmatprep.subr.mxu0 %v269
    %401 = vmatpush1.msra.mxu0 %v268
    %402 = vmatprep.subr.mxu0 %v265
    %403 = vmatpush1.msra.mxu0 %v264
    %404 = vmatprep.subr.mxu0 %v261
    %405 = vmatpush1.msra.mxu0 %v260
    %406 = vmatprep.subr.mxu0 %v257
    %407 = vmatpush1.msra.mxu0 %v256
    %408 = vmatprep.subr.mxu0 %v253
    %409 = vmatpush1.msra.mxu0 %v252
    %410 = vmatprep.subr.mxu0 %v249
    %411 = vmatpush1.msra.mxu0 %v248
    %412 = vmatprep.subr.mxu0 %v245
    %413 = vmatpush1.msra.mxu0 %v244
    %414 = vmatprep.subr.mxu0 %v241
    %415 = vmatpush1.msra.mxu0 %v240
    %416 = vmatprep.subr.mxu0 %v237
    %417 = vmatpush1.msra.mxu0 %v236
    %418 = vmatprep.subr.mxu0 %v361
    %419 = vmatpush2.msra.mxu0 %v360
    %420 = vmatprep.subr.mxu0 %v357
    %421 = vmatpush2.msra.mxu0 %v356
    %422 = vmatprep.subr.mxu0 %v353
    %423 = vmatpush2.msra.mxu0 %v352
    %424 = vmatprep.subr.mxu0 %v349
    %425 = vmatpush2.msra.mxu0 %v348
    %426 = vmatprep.subr.mxu0 %v345
    %427 = vmatpush2.msra.mxu0 %v344
    %428 = vmatprep.subr.mxu0 %v341
    %429 = vmatpush2.msra.mxu0 %v340
    %430 = vmatprep.subr.mxu0 %v337
    %431 = vmatpush2.msra.mxu0 %v336
    %432 = vmatprep.subr.mxu0 %v333
    %433 = vmatpush2.msra.mxu0 %v332
    %434 = vmatprep.subr.mxu0 %v329
    %435 = vmatpush2.msra.mxu0 %v328
    %436 = vmatprep.subr.mxu0 %v325
    %437 = vmatpush2.msra.mxu0 %v324
    %438 = vmatprep.subr.mxu0 %v321
    %439 = vmatpush2.msra.mxu0 %v320
    %440 = vmatprep.subr.mxu0 %v317
    %441 = vmatpush2.msra.mxu0 %v316
    %442 = vmatprep.subr.mxu0 %v313
    %443 = vmatpush2.msra.mxu0 %v312
    %444 = vmatprep.subr.mxu0 %v309
    %445 = vmatpush2.msra.mxu0 %v308
    %446 = vmatprep.subr.mxu0 %v305
    %447 = vmatpush2.msra.mxu0 %v304
    %448 = vmatprep.subr.mxu0 %v301
    %449 = vmatpush2.msra.mxu0 %v300
    %450 = vmatprep.mubr.f32.mxu0 %v235
    %451 = vmatmul.mubr.f32.gmra.mxu0 %v234
    %v452 = vpop.f32.mrf.mxu0
    %v453 = vadd.f32 %v369, %v452
    %v454 = vpop.f32.mrf.mxu0
    %v455 = vadd.f32 %v373, %v454
    %456 = vdwg.mxu0
    %457 = vmatprep.subr.mxu0 %v299
    %458 = vmatpush1.msra.mxu0 %v298
    %459 = vmatprep.subr.mxu0 %v295
    %460 = vmatpush1.msra.mxu0 %v294
    %461 = vmatprep.subr.mxu0 %v291
    %462 = vmatpush1.msra.mxu0 %v290
    %463 = vmatprep.subr.mxu0 %v287
    %464 = vmatpush1.msra.mxu0 %v286
    %465 = vmatprep.subr.mxu0 %v283
    %466 = vmatpush1.msra.mxu0 %v282
    %467 = vmatprep.subr.mxu0 %v279
    %468 = vmatpush1.msra.mxu0 %v278
    %469 = vmatprep.subr.mxu0 %v275
    %470 = vmatpush1.msra.mxu0 %v274
    %471 = vmatprep.subr.mxu0 %v271
    %472 = vmatpush1.msra.mxu0 %v270
    %473 = vmatprep.subr.mxu0 %v267
    %474 = vmatpush1.msra.mxu0 %v266
    %475 = vmatprep.subr.mxu0 %v263
    %476 = vmatpush1.msra.mxu0 %v262
    %477 = vmatprep.subr.mxu0 %v259
    %478 = vmatpush1.msra.mxu0 %v258
    %479 = vmatprep.subr.mxu0 %v255
    %480 = vmatpush1.msra.mxu0 %v254
    %481 = vmatprep.subr.mxu0 %v251
    %482 = vmatpush1.msra.mxu0 %v250
    %483 = vmatprep.subr.mxu0 %v247
    %484 = vmatpush1.msra.mxu0 %v246
    %485 = vmatprep.subr.mxu0 %v243
    %486 = vmatpush1.msra.mxu0 %v242
    %487 = vmatprep.subr.mxu0 %v239
    %488 = vmatpush1.msra.mxu0 %v238
    %489 = vmatprep.subr.mxu0 %v363
    %490 = vmatpush2.msra.mxu0 %v362
    %491 = vmatprep.subr.mxu0 %v359
    %492 = vmatpush2.msra.mxu0 %v358
    %493 = vmatprep.subr.mxu0 %v355
    %494 = vmatpush2.msra.mxu0 %v354
    %495 = vmatprep.subr.mxu0 %v351
    %496 = vmatpush2.msra.mxu0 %v350
    %497 = vmatprep.subr.mxu0 %v347
    %498 = vmatpush2.msra.mxu0 %v346
    %499 = vmatprep.subr.mxu0 %v343
    %500 = vmatpush2.msra.mxu0 %v342
    %501 = vmatprep.subr.mxu0 %v339
    %502 = vmatpush2.msra.mxu0 %v338
    %503 = vmatprep.subr.mxu0 %v335
    %504 = vmatpush2.msra.mxu0 %v334
    %505 = vmatprep.subr.mxu0 %v331
    %506 = vmatpush2.msra.mxu0 %v330
    %507 = vmatprep.subr.mxu0 %v327
    %508 = vmatpush2.msra.mxu0 %v326
    %509 = vmatprep.subr.mxu0 %v323
    %510 = vmatpush2.msra.mxu0 %v322
    %511 = vmatprep.subr.mxu0 %v319
    %512 = vmatpush2.msra.mxu0 %v318
    %513 = vmatprep.subr.mxu0 %v315
    %514 = vmatpush2.msra.mxu0 %v314
    %515 = vmatprep.subr.mxu0 %v311
    %516 = vmatpush2.msra.mxu0 %v310
    %517 = vmatprep.subr.mxu0 %v307
    %518 = vmatpush2.msra.mxu0 %v306
    %519 = vmatprep.subr.mxu0 %v303
    %520 = vmatpush2.msra.mxu0 %v302
    %521 = vmatprep.mubr.f32.mxu0 %v235
    %522 = vmatmul.mubr.f32.gmra.mxu0 %v234
    %v523 = vpop.f32.mrf.mxu0
    %v524 = vadd.f32 %v377, %v523
    %v525 = vpop.f32.mrf.mxu0
    %v526 = vadd.f32 %v381, %v525
    %527 = vdwg.mxu0
    %v528 = vmax.f32 %v453, 0.0
    %v529 = vmax.f32 %v455, 0.0
    %v530 = vmax.f32 %v524, 0.0
    %v531 = vmax.f32 %v526, 0.0
    %v532 = vld [vmem:[#allocation10] sm:$0xff]
    %v533 = vld [vmem:[#allocation10 + $0x8] sm:$0xff]
    %v534 = vld [vmem:[#allocation10 + $0x10] sm:$0xff]
    %v535 = vld [vmem:[#allocation10 + $0x18] sm:$0xff]
    %v536 = vld [vmem:[#allocation10 + $0x20] sm:$0xff]
    %v537 = vld [vmem:[#allocation10 + $0x28] sm:$0xff]
    %v538 = vld [vmem:[#allocation10 + $0x30] sm:$0xff]
    %v539 = vld [vmem:[#allocation10 + $0x38] sm:$0xff]
    %v540 = vld [vmem:[#allocation10 + $0x40] sm:$0xff]
    %v541 = vld [vmem:[#allocation10 + $0x48] sm:$0xff]
    %v542 = vld [vmem:[#allocation10 + $0x50] sm:$0xff]
    %v543 = vld [vmem:[#allocation10 + $0x58] sm:$0xff]
    %v544 = vld [vmem:[#allocation10 + $0x60] sm:$0xff]
    %v545 = vld [vmem:[#allocation10 + $0x68] sm:$0xff]
    %v546 = vld [vmem:[#allocation10 + $0x70] sm:$0xff]
    %v547 = vld [vmem:[#allocation10 + $0x78] sm:$0xff]
    %v548 = vld [vmem:[#allocation10 + $0x80] sm:$0xff]
    %v549 = vld [vmem:[#allocation10 + $0x88] sm:$0xff]
    %v550 = vld [vmem:[#allocation10 + $0x90] sm:$0xff]
    %v551 = vld [vmem:[#allocation10 + $0x98] sm:$0xff]
    %v552 = vld [vmem:[#allocation10 + $0xa0] sm:$0xff]
    %v553 = vld [vmem:[#allocation10 + $0xa8] sm:$0xff]
    %v554 = vld [vmem:[#allocation10 + $0xb0] sm:$0xff]
    %v555 = vld [vmem:[#allocation10 + $0xb8] sm:$0xff]
    %v556 = vld [vmem:[#allocation10 + $0xc0] sm:$0xff]
    %v557 = vld [vmem:[#allocation10 + $0xc8] sm:$0xff]
    %v558 = vld [vmem:[#allocation10 + $0xd0] sm:$0xff]
    %v559 = vld [vmem:[#allocation10 + $0xd8] sm:$0xff]
    %v560 = vld [vmem:[#allocation10 + $0xe0] sm:$0xff]
    %v561 = vld [vmem:[#allocation10 + $0xe8] sm:$0xff]
    %v562 = vld [vmem:[#allocation10 + $0xf0] sm:$0xff]
    %v563 = vld [vmem:[#allocation10 + $0xf8] sm:$0xff]
    %v564 = vld [vmem:[#allocation10 + $0x100] sm:$0xff]
    %v565 = vld [vmem:[#allocation10 + $0x108] sm:$0xff]
    %v566 = vld [vmem:[#allocation10 + $0x110] sm:$0xff]
    %v567 = vld [vmem:[#allocation10 + $0x118] sm:$0xff]
    %v568 = vld [vmem:[#allocation10 + $0x120] sm:$0xff]
    %v569 = vld [vmem:[#allocation10 + $0x128] sm:$0xff]
    %v570 = vld [vmem:[#allocation10 + $0x130] sm:$0xff]
    %v571 = vld [vmem:[#allocation10 + $0x138] sm:$0xff]
    %v572 = vld [vmem:[#allocation10 + $0x140] sm:$0xff]
    %v573 = vld [vmem:[#allocation10 + $0x148] sm:$0xff]
    %v574 = vld [vmem:[#allocation10 + $0x150] sm:$0xff]
    %v575 = vld [vmem:[#allocation10 + $0x158] sm:$0xff]
    %v576 = vld [vmem:[#allocation10 + $0x160] sm:$0xff]
    %v577 = vld [vmem:[#allocation10 + $0x168] sm:$0xff]
    %v578 = vld [vmem:[#allocation10 + $0x170] sm:$0xff]
    %v579 = vld [vmem:[#allocation10 + $0x178] sm:$0xff]
    %v580 = vld [vmem:[#allocation10 + $0x180] sm:$0xff]
    %v581 = vld [vmem:[#allocation10 + $0x188] sm:$0xff]
    %v582 = vld [vmem:[#allocation10 + $0x190] sm:$0xff]
    %v583 = vld [vmem:[#allocation10 + $0x198] sm:$0xff]
    %v584 = vld [vmem:[#allocation10 + $0x1a0] sm:$0xff]
    %v585 = vld [vmem:[#allocation10 + $0x1a8] sm:$0xff]
    %v586 = vld [vmem:[#allocation10 + $0x1b0] sm:$0xff]
    %v587 = vld [vmem:[#allocation10 + $0x1b8] sm:$0xff]
    %v588 = vld [vmem:[#allocation10 + $0x1c0] sm:$0xff]
    %v589 = vld [vmem:[#allocation10 + $0x1c8] sm:$0xff]
    %v590 = vld [vmem:[#allocation10 + $0x1d0] sm:$0xff]
    %v591 = vld [vmem:[#allocation10 + $0x1d8] sm:$0xff]
    %v592 = vld [vmem:[#allocation10 + $0x1e0] sm:$0xff]
    %v593 = vld [vmem:[#allocation10 + $0x1e8] sm:$0xff]
    %v594 = vld [vmem:[#allocation10 + $0x1f0] sm:$0xff]
    %v595 = vld [vmem:[#allocation10 + $0x1f8] sm:$0xff]
    %v596 = vld [vmem:[#allocation10 + $0x200] sm:$0xff]
    %v597 = vld [vmem:[#allocation10 + $0x208] sm:$0xff]
    %v598 = vld [vmem:[#allocation10 + $0x210] sm:$0xff]
    %v599 = vld [vmem:[#allocation10 + $0x218] sm:$0xff]
    %v600 = vld [vmem:[#allocation10 + $0x220] sm:$0xff]
    %v601 = vld [vmem:[#allocation10 + $0x228] sm:$0xff]
    %v602 = vld [vmem:[#allocation10 + $0x230] sm:$0xff]
    %v603 = vld [vmem:[#allocation10 + $0x238] sm:$0xff]
    %v604 = vld [vmem:[#allocation10 + $0x240] sm:$0xff]
    %v605 = vld [vmem:[#allocation10 + $0x248] sm:$0xff]
    %v606 = vld [vmem:[#allocation10 + $0x250] sm:$0xff]
    %v607 = vld [vmem:[#allocation10 + $0x258] sm:$0xff]
    %v608 = vld [vmem:[#allocation10 + $0x260] sm:$0xff]
    %v609 = vld [vmem:[#allocation10 + $0x268] sm:$0xff]
    %v610 = vld [vmem:[#allocation10 + $0x270] sm:$0xff]
    %v611 = vld [vmem:[#allocation10 + $0x278] sm:$0xff]
    %v612 = vld [vmem:[#allocation10 + $0x280] sm:$0xff]
    %v613 = vld [vmem:[#allocation10 + $0x288] sm:$0xff]
    %v614 = vld [vmem:[#allocation10 + $0x290] sm:$0xff]
    %v615 = vld [vmem:[#allocation10 + $0x298] sm:$0xff]
    %v616 = vld [vmem:[#allocation10 + $0x2a0] sm:$0xff]
    %v617 = vld [vmem:[#allocation10 + $0x2a8] sm:$0xff]
    %v618 = vld [vmem:[#allocation10 + $0x2b0] sm:$0xff]
    %v619 = vld [vmem:[#allocation10 + $0x2b8] sm:$0xff]
    %v620 = vld [vmem:[#allocation10 + $0x2c0] sm:$0xff]
    %v621 = vld [vmem:[#allocation10 + $0x2c8] sm:$0xff]
    %v622 = vld [vmem:[#allocation10 + $0x2d0] sm:$0xff]
    %v623 = vld [vmem:[#allocation10 + $0x2d8] sm:$0xff]
    %v624 = vld [vmem:[#allocation10 + $0x2e0] sm:$0xff]
    %v625 = vld [vmem:[#allocation10 + $0x2e8] sm:$0xff]
    %v626 = vld [vmem:[#allocation10 + $0x2f0] sm:$0xff]
    %v627 = vld [vmem:[#allocation10 + $0x2f8] sm:$0xff]
    %v628 = vld [vmem:[#allocation10 + $0x300] sm:$0xff]
    %v629 = vld [vmem:[#allocation10 + $0x308] sm:$0xff]
    %v630 = vld [vmem:[#allocation10 + $0x310] sm:$0xff]
    %v631 = vld [vmem:[#allocation10 + $0x318] sm:$0xff]
    %v632 = vld [vmem:[#allocation10 + $0x320] sm:$0xff]
    %v633 = vld [vmem:[#allocation10 + $0x328] sm:$0xff]
    %v634 = vld [vmem:[#allocation10 + $0x330] sm:$0xff]
    %v635 = vld [vmem:[#allocation10 + $0x338] sm:$0xff]
    %v636 = vld [vmem:[#allocation10 + $0x340] sm:$0xff]
    %v637 = vld [vmem:[#allocation10 + $0x348] sm:$0xff]
    %v638 = vld [vmem:[#allocation10 + $0x350] sm:$0xff]
    %v639 = vld [vmem:[#allocation10 + $0x358] sm:$0xff]
    %v640 = vld [vmem:[#allocation10 + $0x360] sm:$0xff]
    %v641 = vld [vmem:[#allocation10 + $0x368] sm:$0xff]
    %v642 = vld [vmem:[#allocation10 + $0x370] sm:$0xff]
    %v643 = vld [vmem:[#allocation10 + $0x378] sm:$0xff]
    %v644 = vld [vmem:[#allocation10 + $0x380] sm:$0xff]
    %v645 = vld [vmem:[#allocation10 + $0x388] sm:$0xff]
    %v646 = vld [vmem:[#allocation10 + $0x390] sm:$0xff]
    %v647 = vld [vmem:[#allocation10 + $0x398] sm:$0xff]
    %v648 = vld [vmem:[#allocation10 + $0x3a0] sm:$0xff]
    %v649 = vld [vmem:[#allocation10 + $0x3a8] sm:$0xff]
    %v650 = vld [vmem:[#allocation10 + $0x3b0] sm:$0xff]
    %v651 = vld [vmem:[#allocation10 + $0x3b8] sm:$0xff]
    %v652 = vld [vmem:[#allocation10 + $0x3c0] sm:$0xff]
    %v653 = vld [vmem:[#allocation10 + $0x3c8] sm:$0xff]
    %v654 = vld [vmem:[#allocation10 + $0x3d0] sm:$0xff]
    %v655 = vld [vmem:[#allocation10 + $0x3d8] sm:$0xff]
    %v656 = vld [vmem:[#allocation10 + $0x3e0] sm:$0xff]
    %v657 = vld [vmem:[#allocation10 + $0x3e8] sm:$0xff]
    %v658 = vld [vmem:[#allocation10 + $0x3f0] sm:$0xff]
    %v659 = vld [vmem:[#allocation10 + $0x3f8] sm:$0xff]
    %v660 = vld [vmem:[#allocation10 + $0x400] sm:$0xff]
    %v661 = vld [vmem:[#allocation10 + $0x408] sm:$0xff]
    %v662 = vld [vmem:[#allocation10 + $0x410] sm:$0xff]
    %v663 = vld [vmem:[#allocation10 + $0x418] sm:$0xff]
    %v664 = vld [vmem:[#allocation10 + $0x420] sm:$0xff]
    %v665 = vld [vmem:[#allocation10 + $0x428] sm:$0xff]
    %v666 = vld [vmem:[#allocation10 + $0x430] sm:$0xff]
    %v667 = vld [vmem:[#allocation10 + $0x438] sm:$0xff]
    %v668 = vld [vmem:[#allocation10 + $0x440] sm:$0xff]
    %v669 = vld [vmem:[#allocation10 + $0x448] sm:$0xff]
    %v670 = vld [vmem:[#allocation10 + $0x450] sm:$0xff]
    %v671 = vld [vmem:[#allocation10 + $0x458] sm:$0xff]
    %v672 = vld [vmem:[#allocation10 + $0x460] sm:$0xff]
    %v673 = vld [vmem:[#allocation10 + $0x468] sm:$0xff]
    %v674 = vld [vmem:[#allocation10 + $0x470] sm:$0xff]
    %v675 = vld [vmem:[#allocation10 + $0x478] sm:$0xff]
    %v676 = vld [vmem:[#allocation10 + $0x480] sm:$0xff]
    %v677 = vld [vmem:[#allocation10 + $0x488] sm:$0xff]
    %v678 = vld [vmem:[#allocation10 + $0x490] sm:$0xff]
    %v679 = vld [vmem:[#allocation10 + $0x498] sm:$0xff]
    %v680 = vld [vmem:[#allocation10 + $0x4a0] sm:$0xff]
    %v681 = vld [vmem:[#allocation10 + $0x4a8] sm:$0xff]
    %v682 = vld [vmem:[#allocation10 + $0x4b0] sm:$0xff]
    %v683 = vld [vmem:[#allocation10 + $0x4b8] sm:$0xff]
    %v684 = vld [vmem:[#allocation10 + $0x4c0] sm:$0xff]
    %v685 = vld [vmem:[#allocation10 + $0x4c8] sm:$0xff]
    %v686 = vld [vmem:[#allocation10 + $0x4d0] sm:$0xff]
    %v687 = vld [vmem:[#allocation10 + $0x4d8] sm:$0xff]
    %v688 = vld [vmem:[#allocation10 + $0x4e0] sm:$0xff]
    %v689 = vld [vmem:[#allocation10 + $0x4e8] sm:$0xff]
    %v690 = vld [vmem:[#allocation10 + $0x4f0] sm:$0xff]
    %v691 = vld [vmem:[#allocation10 + $0x4f8] sm:$0xff]
    %v692 = vld [vmem:[#allocation10 + $0x500] sm:$0xff]
    %v693 = vld [vmem:[#allocation10 + $0x508] sm:$0xff]
    %v694 = vld [vmem:[#allocation10 + $0x510] sm:$0xff]
    %v695 = vld [vmem:[#allocation10 + $0x518] sm:$0xff]
    %v696 = vld [vmem:[#allocation10 + $0x520] sm:$0xff]
    %v697 = vld [vmem:[#allocation10 + $0x528] sm:$0xff]
    %v698 = vld [vmem:[#allocation10 + $0x530] sm:$0xff]
    %v699 = vld [vmem:[#allocation10 + $0x538] sm:$0xff]
    %v700 = vld [vmem:[#allocation10 + $0x540] sm:$0xff]
    %v701 = vld [vmem:[#allocation10 + $0x548] sm:$0xff]
    %v702 = vld [vmem:[#allocation10 + $0x550] sm:$0xff]
    %v703 = vld [vmem:[#allocation10 + $0x558] sm:$0xff]
    %v704 = vld [vmem:[#allocation10 + $0x560] sm:$0xff]
    %v705 = vld [vmem:[#allocation10 + $0x568] sm:$0xff]
    %v706 = vld [vmem:[#allocation10 + $0x570] sm:$0xff]
    %v707 = vld [vmem:[#allocation10 + $0x578] sm:$0xff]
    %v708 = vld [vmem:[#allocation10 + $0x580] sm:$0xff]
    %v709 = vld [vmem:[#allocation10 + $0x588] sm:$0xff]
    %v710 = vld [vmem:[#allocation10 + $0x590] sm:$0xff]
    %v711 = vld [vmem:[#allocation10 + $0x598] sm:$0xff]
    %v712 = vld [vmem:[#allocation10 + $0x5a0] sm:$0xff]
    %v713 = vld [vmem:[#allocation10 + $0x5a8] sm:$0xff]
    %v714 = vld [vmem:[#allocation10 + $0x5b0] sm:$0xff]
    %v715 = vld [vmem:[#allocation10 + $0x5b8] sm:$0xff]
    %v716 = vld [vmem:[#allocation10 + $0x5c0] sm:$0xff]
    %v717 = vld [vmem:[#allocation10 + $0x5c8] sm:$0xff]
    %v718 = vld [vmem:[#allocation10 + $0x5d0] sm:$0xff]
    %v719 = vld [vmem:[#allocation10 + $0x5d8] sm:$0xff]
    %v720 = vld [vmem:[#allocation10 + $0x5e0] sm:$0xff]
    %v721 = vld [vmem:[#allocation10 + $0x5e8] sm:$0xff]
    %v722 = vld [vmem:[#allocation10 + $0x5f0] sm:$0xff]
    %v723 = vld [vmem:[#allocation10 + $0x5f8] sm:$0xff]
    %v724 = vld [vmem:[#allocation10 + $0x600] sm:$0xff]
    %v725 = vld [vmem:[#allocation10 + $0x608] sm:$0xff]
    %v726 = vld [vmem:[#allocation10 + $0x610] sm:$0xff]
    %v727 = vld [vmem:[#allocation10 + $0x618] sm:$0xff]
    %v728 = vld [vmem:[#allocation10 + $0x620] sm:$0xff]
    %v729 = vld [vmem:[#allocation10 + $0x628] sm:$0xff]
    %v730 = vld [vmem:[#allocation10 + $0x630] sm:$0xff]
    %v731 = vld [vmem:[#allocation10 + $0x638] sm:$0xff]
    %v732 = vld [vmem:[#allocation10 + $0x640] sm:$0xff]
    %v733 = vld [vmem:[#allocation10 + $0x648] sm:$0xff]
    %v734 = vld [vmem:[#allocation10 + $0x650] sm:$0xff]
    %v735 = vld [vmem:[#allocation10 + $0x658] sm:$0xff]
    %v736 = vld [vmem:[#allocation10 + $0x660] sm:$0xff]
    %v737 = vld [vmem:[#allocation10 + $0x668] sm:$0xff]
    %v738 = vld [vmem:[#allocation10 + $0x670] sm:$0xff]
    %v739 = vld [vmem:[#allocation10 + $0x678] sm:$0xff]
    %v740 = vld [vmem:[#allocation10 + $0x680] sm:$0xff]
    %v741 = vld [vmem:[#allocation10 + $0x688] sm:$0xff]
    %v742 = vld [vmem:[#allocation10 + $0x690] sm:$0xff]
    %v743 = vld [vmem:[#allocation10 + $0x698] sm:$0xff]
    %v744 = vld [vmem:[#allocation10 + $0x6a0] sm:$0xff]
    %v745 = vld [vmem:[#allocation10 + $0x6a8] sm:$0xff]
    %v746 = vld [vmem:[#allocation10 + $0x6b0] sm:$0xff]
    %v747 = vld [vmem:[#allocation10 + $0x6b8] sm:$0xff]
    %v748 = vld [vmem:[#allocation10 + $0x6c0] sm:$0xff]
    %v749 = vld [vmem:[#allocation10 + $0x6c8] sm:$0xff]
    %v750 = vld [vmem:[#allocation10 + $0x6d0] sm:$0xff]
    %v751 = vld [vmem:[#allocation10 + $0x6d8] sm:$0xff]
    %v752 = vld [vmem:[#allocation10 + $0x6e0] sm:$0xff]
    %v753 = vld [vmem:[#allocation10 + $0x6e8] sm:$0xff]
    %v754 = vld [vmem:[#allocation10 + $0x6f0] sm:$0xff]
    %v755 = vld [vmem:[#allocation10 + $0x6f8] sm:$0xff]
    %v756 = vld [vmem:[#allocation10 + $0x700] sm:$0xff]
    %v757 = vld [vmem:[#allocation10 + $0x708] sm:$0xff]
    %v758 = vld [vmem:[#allocation10 + $0x710] sm:$0xff]
    %v759 = vld [vmem:[#allocation10 + $0x718] sm:$0xff]
    %v760 = vld [vmem:[#allocation10 + $0x720] sm:$0xff]
    %v761 = vld [vmem:[#allocation10 + $0x728] sm:$0xff]
    %v762 = vld [vmem:[#allocation10 + $0x730] sm:$0xff]
    %v763 = vld [vmem:[#allocation10 + $0x738] sm:$0xff]
    %v764 = vld [vmem:[#allocation10 + $0x740] sm:$0xff]
    %v765 = vld [vmem:[#allocation10 + $0x748] sm:$0xff]
    %v766 = vld [vmem:[#allocation10 + $0x750] sm:$0xff]
    %v767 = vld [vmem:[#allocation10 + $0x758] sm:$0xff]
    %v768 = vld [vmem:[#allocation10 + $0x760] sm:$0xff]
    %v769 = vld [vmem:[#allocation10 + $0x768] sm:$0xff]
    %v770 = vld [vmem:[#allocation10 + $0x770] sm:$0xff]
    %v771 = vld [vmem:[#allocation10 + $0x778] sm:$0xff]
    %v772 = vld [vmem:[#allocation10 + $0x780] sm:$0xff]
    %v773 = vld [vmem:[#allocation10 + $0x788] sm:$0xff]
    %v774 = vld [vmem:[#allocation10 + $0x790] sm:$0xff]
    %v775 = vld [vmem:[#allocation10 + $0x798] sm:$0xff]
    %v776 = vld [vmem:[#allocation10 + $0x7a0] sm:$0xff]
    %v777 = vld [vmem:[#allocation10 + $0x7a8] sm:$0xff]
    %v778 = vld [vmem:[#allocation10 + $0x7b0] sm:$0xff]
    %v779 = vld [vmem:[#allocation10 + $0x7b8] sm:$0xff]
    %v780 = vld [vmem:[#allocation10 + $0x7c0] sm:$0xff]
    %v781 = vld [vmem:[#allocation10 + $0x7c8] sm:$0xff]
    %v782 = vld [vmem:[#allocation10 + $0x7d0] sm:$0xff]
    %v783 = vld [vmem:[#allocation10 + $0x7d8] sm:$0xff]
    %v784 = vld [vmem:[#allocation10 + $0x7e0] sm:$0xff]
    %v785 = vld [vmem:[#allocation10 + $0x7e8] sm:$0xff]
    %v786 = vld [vmem:[#allocation10 + $0x7f0] sm:$0xff]
    %v787 = vld [vmem:[#allocation10 + $0x7f8] sm:$0xff]
    %v788 = vld [vmem:[#allocation10 + $0x800] sm:$0xff]
    %v789 = vld [vmem:[#allocation10 + $0x808] sm:$0xff]
    %v790 = vld [vmem:[#allocation10 + $0x810] sm:$0xff]
    %v791 = vld [vmem:[#allocation10 + $0x818] sm:$0xff]
    %v792 = vld [vmem:[#allocation10 + $0x820] sm:$0xff]
    %v793 = vld [vmem:[#allocation10 + $0x828] sm:$0xff]
    %v794 = vld [vmem:[#allocation10 + $0x830] sm:$0xff]
    %v795 = vld [vmem:[#allocation10 + $0x838] sm:$0xff]
    %v796 = vld [vmem:[#allocation10 + $0x840] sm:$0xff]
    %v797 = vld [vmem:[#allocation10 + $0x848] sm:$0xff]
    %v798 = vld [vmem:[#allocation10 + $0x850] sm:$0xff]
    %v799 = vld [vmem:[#allocation10 + $0x858] sm:$0xff]
    %v800 = vld [vmem:[#allocation10 + $0x860] sm:$0xff]
    %v801 = vld [vmem:[#allocation10 + $0x868] sm:$0xff]
    %v802 = vld [vmem:[#allocation10 + $0x870] sm:$0xff]
    %v803 = vld [vmem:[#allocation10 + $0x878] sm:$0xff]
    %v804 = vld [vmem:[#allocation10 + $0x880] sm:$0xff]
    %v805 = vld [vmem:[#allocation10 + $0x888] sm:$0xff]
    %v806 = vld [vmem:[#allocation10 + $0x890] sm:$0xff]
    %v807 = vld [vmem:[#allocation10 + $0x898] sm:$0xff]
    %v808 = vld [vmem:[#allocation10 + $0x8a0] sm:$0xff]
    %v809 = vld [vmem:[#allocation10 + $0x8a8] sm:$0xff]
    %v810 = vld [vmem:[#allocation10 + $0x8b0] sm:$0xff]
    %v811 = vld [vmem:[#allocation10 + $0x8b8] sm:$0xff]
    %v812 = vld [vmem:[#allocation10 + $0x8c0] sm:$0xff]
    %v813 = vld [vmem:[#allocation10 + $0x8c8] sm:$0xff]
    %v814 = vld [vmem:[#allocation10 + $0x8d0] sm:$0xff]
    %v815 = vld [vmem:[#allocation10 + $0x8d8] sm:$0xff]
    %v816 = vld [vmem:[#allocation10 + $0x8e0] sm:$0xff]
    %v817 = vld [vmem:[#allocation10 + $0x8e8] sm:$0xff]
    %v818 = vld [vmem:[#allocation10 + $0x8f0] sm:$0xff]
    %v819 = vld [vmem:[#allocation10 + $0x8f8] sm:$0xff]
    %v820 = vld [vmem:[#allocation10 + $0x900] sm:$0xff]
    %v821 = vld [vmem:[#allocation10 + $0x908] sm:$0xff]
    %v822 = vld [vmem:[#allocation10 + $0x910] sm:$0xff]
    %v823 = vld [vmem:[#allocation10 + $0x918] sm:$0xff]
    %v824 = vld [vmem:[#allocation10 + $0x920] sm:$0xff]
    %v825 = vld [vmem:[#allocation10 + $0x928] sm:$0xff]
    %v826 = vld [vmem:[#allocation10 + $0x930] sm:$0xff]
    %v827 = vld [vmem:[#allocation10 + $0x938] sm:$0xff]
    %v828 = vld [vmem:[#allocation10 + $0x940] sm:$0xff]
    %v829 = vld [vmem:[#allocation10 + $0x948] sm:$0xff]
    %v830 = vld [vmem:[#allocation10 + $0x950] sm:$0xff]
    %v831 = vld [vmem:[#allocation10 + $0x958] sm:$0xff]
    %v832 = vld [vmem:[#allocation10 + $0x960] sm:$0xff]
    %v833 = vld [vmem:[#allocation10 + $0x968] sm:$0xff]
    %v834 = vld [vmem:[#allocation10 + $0x970] sm:$0xff]
    %v835 = vld [vmem:[#allocation10 + $0x978] sm:$0xff]
    %v836 = vld [vmem:[#allocation10 + $0x980] sm:$0xff]
    %v837 = vld [vmem:[#allocation10 + $0x988] sm:$0xff]
    %v838 = vld [vmem:[#allocation10 + $0x990] sm:$0xff]
    %v839 = vld [vmem:[#allocation10 + $0x998] sm:$0xff]
    %v840 = vld [vmem:[#allocation10 + $0x9a0] sm:$0xff]
    %v841 = vld [vmem:[#allocation10 + $0x9a8] sm:$0xff]
    %v842 = vld [vmem:[#allocation10 + $0x9b0] sm:$0xff]
    %v843 = vld [vmem:[#allocation10 + $0x9b8] sm:$0xff]
    %v844 = vld [vmem:[#allocation10 + $0x9c0] sm:$0xff]
    %v845 = vld [vmem:[#allocation10 + $0x9c8] sm:$0xff]
    %v846 = vld [vmem:[#allocation10 + $0x9d0] sm:$0xff]
    %v847 = vld [vmem:[#allocation10 + $0x9d8] sm:$0xff]
    %v848 = vld [vmem:[#allocation10 + $0x9e0] sm:$0xff]
    %v849 = vld [vmem:[#allocation10 + $0x9e8] sm:$0xff]
    %v850 = vld [vmem:[#allocation10 + $0x9f0] sm:$0xff]
    %v851 = vld [vmem:[#allocation10 + $0x9f8] sm:$0xff]
    %v852 = vld [vmem:[#allocation10 + $0xa00] sm:$0xff]
    %v853 = vld [vmem:[#allocation10 + $0xa08] sm:$0xff]
    %v854 = vld [vmem:[#allocation10 + $0xa10] sm:$0xff]
    %v855 = vld [vmem:[#allocation10 + $0xa18] sm:$0xff]
    %v856 = vld [vmem:[#allocation10 + $0xa20] sm:$0xff]
    %v857 = vld [vmem:[#allocation10 + $0xa28] sm:$0xff]
    %v858 = vld [vmem:[#allocation10 + $0xa30] sm:$0xff]
    %v859 = vld [vmem:[#allocation10 + $0xa38] sm:$0xff]
    %v860 = vld [vmem:[#allocation10 + $0xa40] sm:$0xff]
    %v861 = vld [vmem:[#allocation10 + $0xa48] sm:$0xff]
    %v862 = vld [vmem:[#allocation10 + $0xa50] sm:$0xff]
    %v863 = vld [vmem:[#allocation10 + $0xa58] sm:$0xff]
    %v864 = vld [vmem:[#allocation10 + $0xa60] sm:$0xff]
    %v865 = vld [vmem:[#allocation10 + $0xa68] sm:$0xff]
    %v866 = vld [vmem:[#allocation10 + $0xa70] sm:$0xff]
    %v867 = vld [vmem:[#allocation10 + $0xa78] sm:$0xff]
    %v868 = vld [vmem:[#allocation10 + $0xa80] sm:$0xff]
    %v869 = vld [vmem:[#allocation10 + $0xa88] sm:$0xff]
    %v870 = vld [vmem:[#allocation10 + $0xa90] sm:$0xff]
    %v871 = vld [vmem:[#allocation10 + $0xa98] sm:$0xff]
    %v872 = vld [vmem:[#allocation10 + $0xaa0] sm:$0xff]
    %v873 = vld [vmem:[#allocation10 + $0xaa8] sm:$0xff]
    %v874 = vld [vmem:[#allocation10 + $0xab0] sm:$0xff]
    %v875 = vld [vmem:[#allocation10 + $0xab8] sm:$0xff]
    %v876 = vld [vmem:[#allocation10 + $0xac0] sm:$0xff]
    %v877 = vld [vmem:[#allocation10 + $0xac8] sm:$0xff]
    %v878 = vld [vmem:[#allocation10 + $0xad0] sm:$0xff]
    %v879 = vld [vmem:[#allocation10 + $0xad8] sm:$0xff]
    %v880 = vld [vmem:[#allocation10 + $0xae0] sm:$0xff]
    %v881 = vld [vmem:[#allocation10 + $0xae8] sm:$0xff]
    %v882 = vld [vmem:[#allocation10 + $0xaf0] sm:$0xff]
    %v883 = vld [vmem:[#allocation10 + $0xaf8] sm:$0xff]
    %v884 = vld [vmem:[#allocation10 + $0xb00] sm:$0xff]
    %v885 = vld [vmem:[#allocation10 + $0xb08] sm:$0xff]
    %v886 = vld [vmem:[#allocation10 + $0xb10] sm:$0xff]
    %v887 = vld [vmem:[#allocation10 + $0xb18] sm:$0xff]
    %v888 = vld [vmem:[#allocation10 + $0xb20] sm:$0xff]
    %v889 = vld [vmem:[#allocation10 + $0xb28] sm:$0xff]
    %v890 = vld [vmem:[#allocation10 + $0xb30] sm:$0xff]
    %v891 = vld [vmem:[#allocation10 + $0xb38] sm:$0xff]
    %v892 = vld [vmem:[#allocation10 + $0xb40] sm:$0xff]
    %v893 = vld [vmem:[#allocation10 + $0xb48] sm:$0xff]
    %v894 = vld [vmem:[#allocation10 + $0xb50] sm:$0xff]
    %v895 = vld [vmem:[#allocation10 + $0xb58] sm:$0xff]
    %v896 = vld [vmem:[#allocation10 + $0xb60] sm:$0xff]
    %v897 = vld [vmem:[#allocation10 + $0xb68] sm:$0xff]
    %v898 = vld [vmem:[#allocation10 + $0xb70] sm:$0xff]
    %v899 = vld [vmem:[#allocation10 + $0xb78] sm:$0xff]
    %v900 = vld [vmem:[#allocation10 + $0xb80] sm:$0xff]
    %v901 = vld [vmem:[#allocation10 + $0xb88] sm:$0xff]
    %v902 = vld [vmem:[#allocation10 + $0xb90] sm:$0xff]
    %v903 = vld [vmem:[#allocation10 + $0xb98] sm:$0xff]
    %v904 = vld [vmem:[#allocation10 + $0xba0] sm:$0xff]
    %v905 = vld [vmem:[#allocation10 + $0xba8] sm:$0xff]
    %v906 = vld [vmem:[#allocation10 + $0xbb0] sm:$0xff]
    %v907 = vld [vmem:[#allocation10 + $0xbb8] sm:$0xff]
    %v908 = vld [vmem:[#allocation10 + $0xbc0] sm:$0xff]
    %v909 = vld [vmem:[#allocation10 + $0xbc8] sm:$0xff]
    %v910 = vld [vmem:[#allocation10 + $0xbd0] sm:$0xff]
    %v911 = vld [vmem:[#allocation10 + $0xbd8] sm:$0xff]
    %v912 = vld [vmem:[#allocation10 + $0xbe0] sm:$0xff]
    %v913 = vld [vmem:[#allocation10 + $0xbe8] sm:$0xff]
    %v914 = vld [vmem:[#allocation10 + $0xbf0] sm:$0xff]
    %v915 = vld [vmem:[#allocation10 + $0xbf8] sm:$0xff]
    %v916 = vld [vmem:[#allocation10 + $0xc00] sm:$0xff]
    %v917 = vld [vmem:[#allocation10 + $0xc08] sm:$0xff]
    %v918 = vld [vmem:[#allocation10 + $0xc10] sm:$0xff]
    %v919 = vld [vmem:[#allocation10 + $0xc18] sm:$0xff]
    %v920 = vld [vmem:[#allocation10 + $0xc20] sm:$0xff]
    %v921 = vld [vmem:[#allocation10 + $0xc28] sm:$0xff]
    %v922 = vld [vmem:[#allocation10 + $0xc30] sm:$0xff]
    %v923 = vld [vmem:[#allocation10 + $0xc38] sm:$0xff]
    %v924 = vld [vmem:[#allocation10 + $0xc40] sm:$0xff]
    %v925 = vld [vmem:[#allocation10 + $0xc48] sm:$0xff]
    %v926 = vld [vmem:[#allocation10 + $0xc50] sm:$0xff]
    %v927 = vld [vmem:[#allocation10 + $0xc58] sm:$0xff]
    %v928 = vld [vmem:[#allocation10 + $0xc60] sm:$0xff]
    %v929 = vld [vmem:[#allocation10 + $0xc68] sm:$0xff]
    %v930 = vld [vmem:[#allocation10 + $0xc70] sm:$0xff]
    %v931 = vld [vmem:[#allocation10 + $0xc78] sm:$0xff]
    %v932 = vld [vmem:[#allocation10 + $0xc80] sm:$0xff]
    %v933 = vld [vmem:[#allocation10 + $0xc88] sm:$0xff]
    %v934 = vld [vmem:[#allocation10 + $0xc90] sm:$0xff]
    %v935 = vld [vmem:[#allocation10 + $0xc98] sm:$0xff]
    %v936 = vld [vmem:[#allocation10 + $0xca0] sm:$0xff]
    %v937 = vld [vmem:[#allocation10 + $0xca8] sm:$0xff]
    %v938 = vld [vmem:[#allocation10 + $0xcb0] sm:$0xff]
    %v939 = vld [vmem:[#allocation10 + $0xcb8] sm:$0xff]
    %v940 = vld [vmem:[#allocation10 + $0xcc0] sm:$0xff]
    %v941 = vld [vmem:[#allocation10 + $0xcc8] sm:$0xff]
    %v942 = vld [vmem:[#allocation10 + $0xcd0] sm:$0xff]
    %v943 = vld [vmem:[#allocation10 + $0xcd8] sm:$0xff]
    %v944 = vld [vmem:[#allocation10 + $0xce0] sm:$0xff]
    %v945 = vld [vmem:[#allocation10 + $0xce8] sm:$0xff]
    %v946 = vld [vmem:[#allocation10 + $0xcf0] sm:$0xff]
    %v947 = vld [vmem:[#allocation10 + $0xcf8] sm:$0xff]
    %v948 = vld [vmem:[#allocation10 + $0xd00] sm:$0xff]
    %v949 = vld [vmem:[#allocation10 + $0xd08] sm:$0xff]
    %v950 = vld [vmem:[#allocation10 + $0xd10] sm:$0xff]
    %v951 = vld [vmem:[#allocation10 + $0xd18] sm:$0xff]
    %v952 = vld [vmem:[#allocation10 + $0xd20] sm:$0xff]
    %v953 = vld [vmem:[#allocation10 + $0xd28] sm:$0xff]
    %v954 = vld [vmem:[#allocation10 + $0xd30] sm:$0xff]
    %v955 = vld [vmem:[#allocation10 + $0xd38] sm:$0xff]
    %v956 = vld [vmem:[#allocation10 + $0xd40] sm:$0xff]
    %v957 = vld [vmem:[#allocation10 + $0xd48] sm:$0xff]
    %v958 = vld [vmem:[#allocation10 + $0xd50] sm:$0xff]
    %v959 = vld [vmem:[#allocation10 + $0xd58] sm:$0xff]
    %v960 = vld [vmem:[#allocation10 + $0xd60] sm:$0xff]
    %v961 = vld [vmem:[#allocation10 + $0xd68] sm:$0xff]
    %v962 = vld [vmem:[#allocation10 + $0xd70] sm:$0xff]
    %v963 = vld [vmem:[#allocation10 + $0xd78] sm:$0xff]
    %v964 = vld [vmem:[#allocation10 + $0xd80] sm:$0xff]
    %v965 = vld [vmem:[#allocation10 + $0xd88] sm:$0xff]
    %v966 = vld [vmem:[#allocation10 + $0xd90] sm:$0xff]
    %v967 = vld [vmem:[#allocation10 + $0xd98] sm:$0xff]
    %v968 = vld [vmem:[#allocation10 + $0xda0] sm:$0xff]
    %v969 = vld [vmem:[#allocation10 + $0xda8] sm:$0xff]
    %v970 = vld [vmem:[#allocation10 + $0xdb0] sm:$0xff]
    %v971 = vld [vmem:[#allocation10 + $0xdb8] sm:$0xff]
    %v972 = vld [vmem:[#allocation10 + $0xdc0] sm:$0xff]
    %v973 = vld [vmem:[#allocation10 + $0xdc8] sm:$0xff]
    %v974 = vld [vmem:[#allocation10 + $0xdd0] sm:$0xff]
    %v975 = vld [vmem:[#allocation10 + $0xdd8] sm:$0xff]
    %v976 = vld [vmem:[#allocation10 + $0xde0] sm:$0xff]
    %v977 = vld [vmem:[#allocation10 + $0xde8] sm:$0xff]
    %v978 = vld [vmem:[#allocation10 + $0xdf0] sm:$0xff]
    %v979 = vld [vmem:[#allocation10 + $0xdf8] sm:$0xff]
    %v980 = vld [vmem:[#allocation10 + $0xe00] sm:$0xff]
    %v981 = vld [vmem:[#allocation10 + $0xe08] sm:$0xff]
    %v982 = vld [vmem:[#allocation10 + $0xe10] sm:$0xff]
    %v983 = vld [vmem:[#allocation10 + $0xe18] sm:$0xff]
    %v984 = vld [vmem:[#allocation10 + $0xe20] sm:$0xff]
    %v985 = vld [vmem:[#allocation10 + $0xe28] sm:$0xff]
    %v986 = vld [vmem:[#allocation10 + $0xe30] sm:$0xff]
    %v987 = vld [vmem:[#allocation10 + $0xe38] sm:$0xff]
    %v988 = vld [vmem:[#allocation10 + $0xe40] sm:$0xff]
    %v989 = vld [vmem:[#allocation10 + $0xe48] sm:$0xff]
    %v990 = vld [vmem:[#allocation10 + $0xe50] sm:$0xff]
    %v991 = vld [vmem:[#allocation10 + $0xe58] sm:$0xff]
    %v992 = vld [vmem:[#allocation10 + $0xe60] sm:$0xff]
    %v993 = vld [vmem:[#allocation10 + $0xe68] sm:$0xff]
    %v994 = vld [vmem:[#allocation10 + $0xe70] sm:$0xff]
    %v995 = vld [vmem:[#allocation10 + $0xe78] sm:$0xff]
    %v996 = vld [vmem:[#allocation10 + $0xe80] sm:$0xff]
    %v997 = vld [vmem:[#allocation10 + $0xe88] sm:$0xff]
    %v998 = vld [vmem:[#allocation10 + $0xe90] sm:$0xff]
    %v999 = vld [vmem:[#allocation10 + $0xe98] sm:$0xff]
    %v1000 = vld [vmem:[#allocation10 + $0xea0] sm:$0xff]
    %v1001 = vld [vmem:[#allocation10 + $0xea8] sm:$0xff]
    %v1002 = vld [vmem:[#allocation10 + $0xeb0] sm:$0xff]
    %v1003 = vld [vmem:[#allocation10 + $0xeb8] sm:$0xff]
    %v1004 = vld [vmem:[#allocation10 + $0xec0] sm:$0xff]
    %v1005 = vld [vmem:[#allocation10 + $0xec8] sm:$0xff]
    %v1006 = vld [vmem:[#allocation10 + $0xed0] sm:$0xff]
    %v1007 = vld [vmem:[#allocation10 + $0xed8] sm:$0xff]
    %v1008 = vld [vmem:[#allocation10 + $0xee0] sm:$0xff]
    %v1009 = vld [vmem:[#allocation10 + $0xee8] sm:$0xff]
    %v1010 = vld [vmem:[#allocation10 + $0xef0] sm:$0xff]
    %v1011 = vld [vmem:[#allocation10 + $0xef8] sm:$0xff]
    %v1012 = vld [vmem:[#allocation10 + $0xf00] sm:$0xff]
    %v1013 = vld [vmem:[#allocation10 + $0xf08] sm:$0xff]
    %v1014 = vld [vmem:[#allocation10 + $0xf10] sm:$0xff]
    %v1015 = vld [vmem:[#allocation10 + $0xf18] sm:$0xff]
    %v1016 = vld [vmem:[#allocation10 + $0xf20] sm:$0xff]
    %v1017 = vld [vmem:[#allocation10 + $0xf28] sm:$0xff]
    %v1018 = vld [vmem:[#allocation10 + $0xf30] sm:$0xff]
    %v1019 = vld [vmem:[#allocation10 + $0xf38] sm:$0xff]
    %v1020 = vld [vmem:[#allocation10 + $0xf40] sm:$0xff]
    %v1021 = vld [vmem:[#allocation10 + $0xf48] sm:$0xff]
    %v1022 = vld [vmem:[#allocation10 + $0xf50] sm:$0xff]
    %v1023 = vld [vmem:[#allocation10 + $0xf58] sm:$0xff]
    %v1024 = vld [vmem:[#allocation10 + $0xf60] sm:$0xff]
    %v1025 = vld [vmem:[#allocation10 + $0xf68] sm:$0xff]
    %v1026 = vld [vmem:[#allocation10 + $0xf70] sm:$0xff]
    %v1027 = vld [vmem:[#allocation10 + $0xf78] sm:$0xff]
    %v1028 = vld [vmem:[#allocation10 + $0xf80] sm:$0xff]
    %v1029 = vld [vmem:[#allocation10 + $0xf88] sm:$0xff]
    %v1030 = vld [vmem:[#allocation10 + $0xf90] sm:$0xff]
    %v1031 = vld [vmem:[#allocation10 + $0xf98] sm:$0xff]
    %v1032 = vld [vmem:[#allocation10 + $0xfa0] sm:$0xff]
    %v1033 = vld [vmem:[#allocation10 + $0xfa8] sm:$0xff]
    %v1034 = vld [vmem:[#allocation10 + $0xfb0] sm:$0xff]
    %v1035 = vld [vmem:[#allocation10 + $0xfb8] sm:$0xff]
    %v1036 = vld [vmem:[#allocation10 + $0xfc0] sm:$0xff]
    %v1037 = vld [vmem:[#allocation10 + $0xfc8] sm:$0xff]
    %v1038 = vld [vmem:[#allocation10 + $0xfd0] sm:$0xff]
    %v1039 = vld [vmem:[#allocation10 + $0xfd8] sm:$0xff]
    %v1040 = vld [vmem:[#allocation10 + $0xfe0] sm:$0xff]
    %v1041 = vld [vmem:[#allocation10 + $0xfe8] sm:$0xff]
    %v1042 = vld [vmem:[#allocation10 + $0xff0] sm:$0xff]
    %v1043 = vld [vmem:[#allocation10 + $0xff8] sm:$0xff]
    %v1044 = vld [vmem:[#allocation12] sm:$0xff]
    %v1046 = vlaneseq
    %v1047 = vshrl.u32 %v1046, 7
    %v1048 = vsub.s32 0, %v1047
    %v1049 = vrot.slane %v1044, %v1048
    %v1050 = vlaneseq
    %v1051 = vshrl.u32 %v1050, 7
    %v1052 = vsub.s32 1, %v1051
    %v1053 = vrot.slane %v1044, %v1052
    %v1054 = vlaneseq
    %v1055 = vshrl.u32 %v1054, 7
    %v1056 = vsub.s32 2, %v1055
    %v1057 = vrot.slane %v1044, %v1056
    %v1058 = vlaneseq
    %v1059 = vshrl.u32 %v1058, 7
    %v1060 = vsub.s32 3, %v1059
    %v1061 = vrot.slane %v1044, %v1060
    %v1062 = vlaneseq
    %v1063 = vshrl.u32 %v1062, 7
    %v1064 = vsub.s32 4, %v1063
    %v1065 = vrot.slane %v1044, %v1064
    %v1066 = vlaneseq
    %v1067 = vshrl.u32 %v1066, 7
    %v1068 = vsub.s32 5, %v1067
    %v1069 = vrot.slane %v1044, %v1068
    %v1070 = vlaneseq
    %v1071 = vshrl.u32 %v1070, 7
    %v1072 = vsub.s32 6, %v1071
    %v1073 = vrot.slane %v1044, %v1072
    %v1074 = vlaneseq
    %v1075 = vshrl.u32 %v1074, 7
    %v1076 = vsub.s32 7, %v1075
    %v1077 = vrot.slane %v1044, %v1076
    %1086 = vmatprep.subr.mxu0 %v653
    %1087 = vmatpush1.msra.mxu0 %v652
    %1088 = vmatprep.subr.mxu0 %v645
    %1089 = vmatpush1.msra.mxu0 %v644
    %1090 = vmatprep.subr.mxu0 %v637
    %1091 = vmatpush1.msra.mxu0 %v636
    %1092 = vmatprep.subr.mxu0 %v629
    %1093 = vmatpush1.msra.mxu0 %v628
    %1094 = vmatprep.subr.mxu0 %v621
    %1095 = vmatpush1.msra.mxu0 %v620
    %1096 = vmatprep.subr.mxu0 %v613
    %1097 = vmatpush1.msra.mxu0 %v612
    %1098 = vmatprep.subr.mxu0 %v605
    %1099 = vmatpush1.msra.mxu0 %v604
    %1100 = vmatprep.subr.mxu0 %v597
    %1101 = vmatpush1.msra.mxu0 %v596
    %1102 = vmatprep.subr.mxu0 %v589
    %1103 = vmatpush1.msra.mxu0 %v588
    %1104 = vmatprep.subr.mxu0 %v581
    %1105 = vmatpush1.msra.mxu0 %v580
    %1106 = vmatprep.subr.mxu0 %v573
    %1107 = vmatpush1.msra.mxu0 %v572
    %1108 = vmatprep.subr.mxu0 %v565
    %1109 = vmatpush1.msra.mxu0 %v564
    %1110 = vmatprep.subr.mxu0 %v557
    %1111 = vmatpush1.msra.mxu0 %v556
    %1112 = vmatprep.subr.mxu0 %v549
    %1113 = vmatpush1.msra.mxu0 %v548
    %1114 = vmatprep.subr.mxu0 %v541
    %1115 = vmatpush1.msra.mxu0 %v540
    %1116 = vmatprep.subr.mxu0 %v533
    %1117 = vmatpush1.msra.mxu0 %v532
    %1118 = vmatprep.subr.mxu0 %v781
    %1119 = vmatpush2.msra.mxu0 %v780
    %1120 = vmatprep.subr.mxu0 %v773
    %1121 = vmatpush2.msra.mxu0 %v772
    %1122 = vmatprep.subr.mxu0 %v765
    %1123 = vmatpush2.msra.mxu0 %v764
    %1124 = vmatprep.subr.mxu0 %v757
    %1125 = vmatpush2.msra.mxu0 %v756
    %1126 = vmatprep.subr.mxu0 %v749
    %1127 = vmatpush2.msra.mxu0 %v748
    %1128 = vmatprep.subr.mxu0 %v741
    %1129 = vmatpush2.msra.mxu0 %v740
    %1130 = vmatprep.subr.mxu0 %v733
    %1131 = vmatpush2.msra.mxu0 %v732
    %1132 = vmatprep.subr.mxu0 %v725
    %1133 = vmatpush2.msra.mxu0 %v724
    %1134 = vmatprep.subr.mxu0 %v717
    %1135 = vmatpush2.msra.mxu0 %v716
    %1136 = vmatprep.subr.mxu0 %v709
    %1137 = vmatpush2.msra.mxu0 %v708
    %1138 = vmatprep.subr.mxu0 %v701
    %1139 = vmatpush2.msra.mxu0 %v700
    %1140 = vmatprep.subr.mxu0 %v693
    %1141 = vmatpush2.msra.mxu0 %v692
    %1142 = vmatprep.subr.mxu0 %v685
    %1143 = vmatpush2.msra.mxu0 %v684
    %1144 = vmatprep.subr.mxu0 %v677
    %1145 = vmatpush2.msra.mxu0 %v676
    %1146 = vmatprep.subr.mxu0 %v669
    %1147 = vmatpush2.msra.mxu0 %v668
    %1148 = vmatprep.subr.mxu0 %v661
    %1149 = vmatpush2.msra.mxu0 %v660
    %1150 = vmatprep.mubr.f32.mxu0 %v529
    %1151 = vmatmul.mubr.f32.gmra.mxu0 %v528
    %v1152 = vpop.f32.mrf.mxu0
    %v1153 = vadd.f32 %v1049, %v1152
    %v1154 = vpop.f32.mrf.mxu0
    %v1155 = vadd.f32 %v1053, %v1154
    %1156 = vdwg.mxu0
    %1157 = vmatprep.subr.mxu0 %v909
    %1158 = vmatpush1.msra.mxu0 %v908
    %1159 = vmatprep.subr.mxu0 %v901
    %1160 = vmatpush1.msra.mxu0 %v900
    %1161 = vmatprep.subr.mxu0 %v893
    %1162 = vmatpush1.msra.mxu0 %v892
    %1163 = vmatprep.subr.mxu0 %v885
    %1164 = vmatpush1.msra.mxu0 %v884
    %1165 = vmatprep.subr.mxu0 %v877
    %1166 = vmatpush1.msra.mxu0 %v876
    %1167 = vmatprep.subr.mxu0 %v869
    %1168 = vmatpush1.msra.mxu0 %v868
    %1169 = vmatprep.subr.mxu0 %v861
    %1170 = vmatpush1.msra.mxu0 %v860
    %1171 = vmatprep.subr.mxu0 %v853
    %1172 = vmatpush1.msra.mxu0 %v852
    %1173 = vmatprep.subr.mxu0 %v845
    %1174 = vmatpush1.msra.mxu0 %v844
    %1175 = vmatprep.subr.mxu0 %v837
    %1176 = vmatpush1.msra.mxu0 %v836
    %1177 = vmatprep.subr.mxu0 %v829
    %1178 = vmatpush1.msra.mxu0 %v828
    %1179 = vmatprep.subr.mxu0 %v821
    %1180 = vmatpush1.msra.mxu0 %v820
    %1181 = vmatprep.subr.mxu0 %v813
    %1182 = vmatpush1.msra.mxu0 %v812
    %1183 = vmatprep.subr.mxu0 %v805
    %1184 = vmatpush1.msra.mxu0 %v804
    %1185 = vmatprep.subr.mxu0 %v797
    %1186 = vmatpush1.msra.mxu0 %v796
    %1187 = vmatprep.subr.mxu0 %v789
    %1188 = vmatpush1.msra.mxu0 %v788
    %1189 = vmatprep.subr.mxu0 %v1037
    %1190 = vmatpush2.msra.mxu0 %v1036
    %1191 = vmatprep.subr.mxu0 %v1029
    %1192 = vmatpush2.msra.mxu0 %v1028
    %1193 = vmatprep.subr.mxu0 %v1021
    %1194 = vmatpush2.msra.mxu0 %v1020
    %1195 = vmatprep.subr.mxu0 %v1013
    %1196 = vmatpush2.msra.mxu0 %v1012
    %1197 = vmatprep.subr.mxu0 %v1005
    %1198 = vmatpush2.msra.mxu0 %v1004
    %1199 = vmatprep.subr.mxu0 %v997
    %1200 = vmatpush2.msra.mxu0 %v996
    %1201 = vmatprep.subr.mxu0 %v989
    %1202 = vmatpush2.msra.mxu0 %v988
    %1203 = vmatprep.subr.mxu0 %v981
    %1204 = vmatpush2.msra.mxu0 %v980
    %1205 = vmatprep.subr.mxu0 %v973
    %1206 = vmatpush2.msra.mxu0 %v972
    %1207 = vmatprep.subr.mxu0 %v965
    %1208 = vmatpush2.msra.mxu0 %v964
    %1209 = vmatprep.subr.mxu0 %v957
    %1210 = vmatpush2.msra.mxu0 %v956
    %1211 = vmatprep.subr.mxu0 %v949
    %1212 = vmatpush2.msra.mxu0 %v948
    %1213 = vmatprep.subr.mxu0 %v941
    %1214 = vmatpush2.msra.mxu0 %v940
    %1215 = vmatprep.subr.mxu0 %v933
    %1216 = vmatpush2.msra.mxu0 %v932
    %1217 = vmatprep.subr.mxu0 %v925
    %1218 = vmatpush2.msra.mxu0 %v924
    %1219 = vmatprep.subr.mxu0 %v917
    %1220 = vmatpush2.msra.mxu0 %v916
    %1221 = vmatprep.mubr.f32.mxu0 %v531
    %1222 = vmatmul.mubr.f32.gmra.mxu0 %v530
    %v1223 = vpop.f32.mrf.mxu0
    %v1224 = vadd.f32 %v1153, %v1223
    %v1225 = vpop.f32.mrf.mxu0
    %v1226 = vadd.f32 %v1155, %v1225
    %1227 = vdwg.mxu0
    %1228 = vmatprep.subr.mxu0 %v655
    %1229 = vmatpush1.msra.mxu0 %v654
    %1230 = vmatprep.subr.mxu0 %v647
    %1231 = vmatpush1.msra.mxu0 %v646
    %1232 = vmatprep.subr.mxu0 %v639
    %1233 = vmatpush1.msra.mxu0 %v638
    %1234 = vmatprep.subr.mxu0 %v631
    %1235 = vmatpush1.msra.mxu0 %v630
    %1236 = vmatprep.subr.mxu0 %v623
    %1237 = vmatpush1.msra.mxu0 %v622
    %1238 = vmatprep.subr.mxu0 %v615
    %1239 = vmatpush1.msra.mxu0 %v614
    %1240 = vmatprep.subr.mxu0 %v607
    %1241 = vmatpush1.msra.mxu0 %v606
    %1242 = vmatprep.subr.mxu0 %v599
    %1243 = vmatpush1.msra.mxu0 %v598
    %1244 = vmatprep.subr.mxu0 %v591
    %1245 = vmatpush1.msra.mxu0 %v590
    %1246 = vmatprep.subr.mxu0 %v583
    %1247 = vmatpush1.msra.mxu0 %v582
    %1248 = vmatprep.subr.mxu0 %v575
    %1249 = vmatpush1.msra.mxu0 %v574
    %1250 = vmatprep.subr.mxu0 %v567
    %1251 = vmatpush1.msra.mxu0 %v566
    %1252 = vmatprep.subr.mxu0 %v559
    %1253 = vmatpush1.msra.mxu0 %v558
    %1254 = vmatprep.subr.mxu0 %v551
    %1255 = vmatpush1.msra.mxu0 %v550
    %1256 = vmatprep.subr.mxu0 %v543
    %1257 = vmatpush1.msra.mxu0 %v542
    %1258 = vmatprep.subr.mxu0 %v535
    %1259 = vmatpush1.msra.mxu0 %v534
    %1260 = vmatprep.subr.mxu0 %v783
    %1261 = vmatpush2.msra.mxu0 %v782
    %1262 = vmatprep.subr.mxu0 %v775
    %1263 = vmatpush2.msra.mxu0 %v774
    %1264 = vmatprep.subr.mxu0 %v767
    %1265 = vmatpush2.msra.mxu0 %v766
    %1266 = vmatprep.subr.mxu0 %v759
    %1267 = vmatpush2.msra.mxu0 %v758
    %1268 = vmatprep.subr.mxu0 %v751
    %1269 = vmatpush2.msra.mxu0 %v750
    %1270 = vmatprep.subr.mxu0 %v743
    %1271 = vmatpush2.msra.mxu0 %v742
    %1272 = vmatprep.subr.mxu0 %v735
    %1273 = vmatpush2.msra.mxu0 %v734
    %1274 = vmatprep.subr.mxu0 %v727
    %1275 = vmatpush2.msra.mxu0 %v726
    %1276 = vmatprep.subr.mxu0 %v719
    %1277 = vmatpush2.msra.mxu0 %v718
    %1278 = vmatprep.subr.mxu0 %v711
    %1279 = vmatpush2.msra.mxu0 %v710
    %1280 = vmatprep.subr.mxu0 %v703
    %1281 = vmatpush2.msra.mxu0 %v702
    %1282 = vmatprep.subr.mxu0 %v695
    %1283 = vmatpush2.msra.mxu0 %v694
    %1284 = vmatprep.subr.mxu0 %v687
    %1285 = vmatpush2.msra.mxu0 %v686
    %1286 = vmatprep.subr.mxu0 %v679
    %1287 = vmatpush2.msra.mxu0 %v678
    %1288 = vmatprep.subr.mxu0 %v671
    %1289 = vmatpush2.msra.mxu0 %v670
    %1290 = vmatprep.subr.mxu0 %v663
    %1291 = vmatpush2.msra.mxu0 %v662
    %1292 = vmatprep.mubr.f32.mxu0 %v529
    %1293 = vmatmul.mubr.f32.gmra.mxu0 %v528
    %v1294 = vpop.f32.mrf.mxu0
    %v1295 = vadd.f32 %v1057, %v1294
    %v1296 = vpop.f32.mrf.mxu0
    %v1297 = vadd.f32 %v1061, %v1296
    %1298 = vdwg.mxu0
    %1299 = vmatprep.subr.mxu0 %v911
    %1300 = vmatpush1.msra.mxu0 %v910
    %1301 = vmatprep.subr.mxu0 %v903
    %1302 = vmatpush1.msra.mxu0 %v902
    %1303 = vmatprep.subr.mxu0 %v895
    %1304 = vmatpush1.msra.mxu0 %v894
    %1305 = vmatprep.subr.mxu0 %v887
    %1306 = vmatpush1.msra.mxu0 %v886
    %1307 = vmatprep.subr.mxu0 %v879
    %1308 = vmatpush1.msra.mxu0 %v878
    %1309 = vmatprep.subr.mxu0 %v871
    %1310 = vmatpush1.msra.mxu0 %v870
    %1311 = vmatprep.subr.mxu0 %v863
    %1312 = vmatpush1.msra.mxu0 %v862
    %1313 = vmatprep.subr.mxu0 %v855
    %1314 = vmatpush1.msra.mxu0 %v854
    %1315 = vmatprep.subr.mxu0 %v847
    %1316 = vmatpush1.msra.mxu0 %v846
    %1317 = vmatprep.subr.mxu0 %v839
    %1318 = vmatpush1.msra.mxu0 %v838
    %1319 = vmatprep.subr.mxu0 %v831
    %1320 = vmatpush1.msra.mxu0 %v830
    %1321 = vmatprep.subr.mxu0 %v823
    %1322 = vmatpush1.msra.mxu0 %v822
    %1323 = vmatprep.subr.mxu0 %v815
    %1324 = vmatpush1.msra.mxu0 %v814
    %1325 = vmatprep.subr.mxu0 %v807
    %1326 = vmatpush1.msra.mxu0 %v806
    %1327 = vmatprep.subr.mxu0 %v799
    %1328 = vmatpush1.msra.mxu0 %v798
    %1329 = vmatprep.subr.mxu0 %v791
    %1330 = vmatpush1.msra.mxu0 %v790
    %1331 = vmatprep.subr.mxu0 %v1039
    %1332 = vmatpush2.msra.mxu0 %v1038
    %1333 = vmatprep.subr.mxu0 %v1031
    %1334 = vmatpush2.msra.mxu0 %v1030
    %1335 = vmatprep.subr.mxu0 %v1023
    %1336 = vmatpush2.msra.mxu0 %v1022
    %1337 = vmatprep.subr.mxu0 %v1015
    %1338 = vmatpush2.msra.mxu0 %v1014
    %1339 = vmatprep.subr.mxu0 %v1007
    %1340 = vmatpush2.msra.mxu0 %v1006
    %1341 = vmatprep.subr.mxu0 %v999
    %1342 = vmatpush2.msra.mxu0 %v998
    %1343 = vmatprep.subr.mxu0 %v991
    %1344 = vmatpush2.msra.mxu0 %v990
    %1345 = vmatprep.subr.mxu0 %v983
    %1346 = vmatpush2.msra.mxu0 %v982
    %1347 = vmatprep.subr.mxu0 %v975
    %1348 = vmatpush2.msra.mxu0 %v974
    %1349 = vmatprep.subr.mxu0 %v967
    %1350 = vmatpush2.msra.mxu0 %v966
    %1351 = vmatprep.subr.mxu0 %v959
    %1352 = vmatpush2.msra.mxu0 %v958
    %1353 = vmatprep.subr.mxu0 %v951
    %1354 = vmatpush2.msra.mxu0 %v950
    %1355 = vmatprep.subr.mxu0 %v943
    %1356 = vmatpush2.msra.mxu0 %v942
    %1357 = vmatprep.subr.mxu0 %v935
    %1358 = vmatpush2.msra.mxu0 %v934
    %1359 = vmatprep.subr.mxu0 %v927
    %1360 = vmatpush2.msra.mxu0 %v926
    %1361 = vmatprep.subr.mxu0 %v919
    %1362 = vmatpush2.msra.mxu0 %v918
    %1363 = vmatprep.mubr.f32.mxu0 %v531
    %1364 = vmatmul.mubr.f32.gmra.mxu0 %v530
    %v1365 = vpop.f32.mrf.mxu0
    %v1366 = vadd.f32 %v1295, %v1365
    %v1367 = vpop.f32.mrf.mxu0
    %v1368 = vadd.f32 %v1297, %v1367
    %1369 = vdwg.mxu0
    %1370 = vmatprep.subr.mxu0 %v657
    %1371 = vmatpush1.msra.mxu0 %v656
    %1372 = vmatprep.subr.mxu0 %v649
    %1373 = vmatpush1.msra.mxu0 %v648
    %1374 = vmatprep.subr.mxu0 %v641
    %1375 = vmatpush1.msra.mxu0 %v640
    %1376 = vmatprep.subr.mxu0 %v633
    %1377 = vmatpush1.msra.mxu0 %v632
    %1378 = vmatprep.subr.mxu0 %v625
    %1379 = vmatpush1.msra.mxu0 %v624
    %1380 = vmatprep.subr.mxu0 %v617
    %1381 = vmatpush1.msra.mxu0 %v616
    %1382 = vmatprep.subr.mxu0 %v609
    %1383 = vmatpush1.msra.mxu0 %v608
    %1384 = vmatprep.subr.mxu0 %v601
    %1385 = vmatpush1.msra.mxu0 %v600
    %1386 = vmatprep.subr.mxu0 %v593
    %1387 = vmatpush1.msra.mxu0 %v592
    %1388 = vmatprep.subr.mxu0 %v585
    %1389 = vmatpush1.msra.mxu0 %v584
    %1390 = vmatprep.subr.mxu0 %v577
    %1391 = vmatpush1.msra.mxu0 %v576
    %1392 = vmatprep.subr.mxu0 %v569
    %1393 = vmatpush1.msra.mxu0 %v568
    %1394 = vmatprep.subr.mxu0 %v561
    %1395 = vmatpush1.msra.mxu0 %v560
    %1396 = vmatprep.subr.mxu0 %v553
    %1397 = vmatpush1.msra.mxu0 %v552
    %1398 = vmatprep.subr.mxu0 %v545
    %1399 = vmatpush1.msra.mxu0 %v544
    %1400 = vmatprep.subr.mxu0 %v537
    %1401 = vmatpush1.msra.mxu0 %v536
    %1402 = vmatprep.subr.mxu0 %v785
    %1403 = vmatpush2.msra.mxu0 %v784
    %1404 = vmatprep.subr.mxu0 %v777
    %1405 = vmatpush2.msra.mxu0 %v776
    %1406 = vmatprep.subr.mxu0 %v769
    %1407 = vmatpush2.msra.mxu0 %v768
    %1408 = vmatprep.subr.mxu0 %v761
    %1409 = vmatpush2.msra.mxu0 %v760
    %1410 = vmatprep.subr.mxu0 %v753
    %1411 = vmatpush2.msra.mxu0 %v752
    %1412 = vmatprep.subr.mxu0 %v745
    %1413 = vmatpush2.msra.mxu0 %v744
    %1414 = vmatprep.subr.mxu0 %v737
    %1415 = vmatpush2.msra.mxu0 %v736
    %1416 = vmatprep.subr.mxu0 %v729
    %1417 = vmatpush2.msra.mxu0 %v728
    %1418 = vmatprep.subr.mxu0 %v721
    %1419 = vmatpush2.msra.mxu0 %v720
    %1420 = vmatprep.subr.mxu0 %v713
    %1421 = vmatpush2.msra.mxu0 %v712
    %1422 = vmatprep.subr.mxu0 %v705
    %1423 = vmatpush2.msra.mxu0 %v704
    %1424 = vmatprep.subr.mxu0 %v697
    %1425 = vmatpush2.msra.mxu0 %v696
    %1426 = vmatprep.subr.mxu0 %v689
    %1427 = vmatpush2.msra.mxu0 %v688
    %1428 = vmatprep.subr.mxu0 %v681
    %1429 = vmatpush2.msra.mxu0 %v680
    %1430 = vmatprep.subr.mxu0 %v673
    %1431 = vmatpush2.msra.mxu0 %v672
    %1432 = vmatprep.subr.mxu0 %v665
    %1433 = vmatpush2.msra.mxu0 %v664
    %1434 = vmatprep.mubr.f32.mxu0 %v529
    %1435 = vmatmul.mubr.f32.gmra.mxu0 %v528
    %v1436 = vpop.f32.mrf.mxu0
    %v1437 = vadd.f32 %v1065, %v1436
    %v1438 = vpop.f32.mrf.mxu0
    %v1439 = vadd.f32 %v1069, %v1438
    %1440 = vdwg.mxu0
    %1441 = vmatprep.subr.mxu0 %v913
    %1442 = vmatpush1.msra.mxu0 %v912
    %1443 = vmatprep.subr.mxu0 %v905
    %1444 = vmatpush1.msra.mxu0 %v904
    %1445 = vmatprep.subr.mxu0 %v897
    %1446 = vmatpush1.msra.mxu0 %v896
    %1447 = vmatprep.subr.mxu0 %v889
    %1448 = vmatpush1.msra.mxu0 %v888
    %1449 = vmatprep.subr.mxu0 %v881
    %1450 = vmatpush1.msra.mxu0 %v880
    %1451 = vmatprep.subr.mxu0 %v873
    %1452 = vmatpush1.msra.mxu0 %v872
    %1453 = vmatprep.subr.mxu0 %v865
    %1454 = vmatpush1.msra.mxu0 %v864
    %1455 = vmatprep.subr.mxu0 %v857
    %1456 = vmatpush1.msra.mxu0 %v856
    %1457 = vmatprep.subr.mxu0 %v849
    %1458 = vmatpush1.msra.mxu0 %v848
    %1459 = vmatprep.subr.mxu0 %v841
    %1460 = vmatpush1.msra.mxu0 %v840
    %1461 = vmatprep.subr.mxu0 %v833
    %1462 = vmatpush1.msra.mxu0 %v832
    %1463 = vmatprep.subr.mxu0 %v825
    %1464 = vmatpush1.msra.mxu0 %v824
    %1465 = vmatprep.subr.mxu0 %v817
    %1466 = vmatpush1.msra.mxu0 %v816
    %1467 = vmatprep.subr.mxu0 %v809
    %1468 = vmatpush1.msra.mxu0 %v808
    %1469 = vmatprep.subr.mxu0 %v801
    %1470 = vmatpush1.msra.mxu0 %v800
    %1471 = vmatprep.subr.mxu0 %v793
    %1472 = vmatpush1.msra.mxu0 %v792
    %1473 = vmatprep.subr.mxu0 %v1041
    %1474 = vmatpush2.msra.mxu0 %v1040
    %1475 = vmatprep.subr.mxu0 %v1033
    %1476 = vmatpush2.msra.mxu0 %v1032
    %1477 = vmatprep.subr.mxu0 %v1025
    %1478 = vmatpush2.msra.mxu0 %v1024
    %1479 = vmatprep.subr.mxu0 %v1017
    %1480 = vmatpush2.msra.mxu0 %v1016
    %1481 = vmatprep.subr.mxu0 %v1009
    %1482 = vmatpush2.msra.mxu0 %v1008
    %1483 = vmatprep.subr.mxu0 %v1001
    %1484 = vmatpush2.msra.mxu0 %v1000
    %1485 = vmatprep.subr.mxu0 %v993
    %1486 = vmatpush2.msra.mxu0 %v992
    %1487 = vmatprep.subr.mxu0 %v985
    %1488 = vmatpush2.msra.mxu0 %v984
    %1489 = vmatprep.subr.mxu0 %v977
    %1490 = vmatpush2.msra.mxu0 %v976
    %1491 = vmatprep.subr.mxu0 %v969
    %1492 = vmatpush2.msra.mxu0 %v968
    %1493 = vmatprep.subr.mxu0 %v961
    %1494 = vmatpush2.msra.mxu0 %v960
    %1495 = vmatprep.subr.mxu0 %v953
    %1496 = vmatpush2.msra.mxu0 %v952
    %1497 = vmatprep.subr.mxu0 %v945
    %1498 = vmatpush2.msra.mxu0 %v944
    %1499 = vmatprep.subr.mxu0 %v937
    %1500 = vmatpush2.msra.mxu0 %v936
    %1501 = vmatprep.subr.mxu0 %v929
    %1502 = vmatpush2.msra.mxu0 %v928
    %1503 = vmatprep.subr.mxu0 %v921
    %1504 = vmatpush2.msra.mxu0 %v920
    %1505 = vmatprep.mubr.f32.mxu0 %v531
    %1506 = vmatmul.mubr.f32.gmra.mxu0 %v530
    %v1507 = vpop.f32.mrf.mxu0
    %v1508 = vadd.f32 %v1437, %v1507
    %v1509 = vpop.f32.mrf.mxu0
    %v1510 = vadd.f32 %v1439, %v1509
    %1511 = vdwg.mxu0
    %1512 = vmatprep.subr.mxu0 %v659
    %1513 = vmatpush1.msra.mxu0 %v658
    %1514 = vmatprep.subr.mxu0 %v651
    %1515 = vmatpush1.msra.mxu0 %v650
    %1516 = vmatprep.subr.mxu0 %v643
    %1517 = vmatpush1.msra.mxu0 %v642
    %1518 = vmatprep.subr.mxu0 %v635
    %1519 = vmatpush1.msra.mxu0 %v634
    %1520 = vmatprep.subr.mxu0 %v627
    %1521 = vmatpush1.msra.mxu0 %v626
    %1522 = vmatprep.subr.mxu0 %v619
    %1523 = vmatpush1.msra.mxu0 %v618
    %1524 = vmatprep.subr.mxu0 %v611
    %1525 = vmatpush1.msra.mxu0 %v610
    %1526 = vmatprep.subr.mxu0 %v603
    %1527 = vmatpush1.msra.mxu0 %v602
    %1528 = vmatprep.subr.mxu0 %v595
    %1529 = vmatpush1.msra.mxu0 %v594
    %1530 = vmatprep.subr.mxu0 %v587
    %1531 = vmatpush1.msra.mxu0 %v586
    %1532 = vmatprep.subr.mxu0 %v579
    %1533 = vmatpush1.msra.mxu0 %v578
    %1534 = vmatprep.subr.mxu0 %v571
    %1535 = vmatpush1.msra.mxu0 %v570
    %1536 = vmatprep.subr.mxu0 %v563
    %1537 = vmatpush1.msra.mxu0 %v562
    %1538 = vmatprep.subr.mxu0 %v555
    %1539 = vmatpush1.msra.mxu0 %v554
    %1540 = vmatprep.subr.mxu0 %v547
    %1541 = vmatpush1.msra.mxu0 %v546
    %1542 = vmatprep.subr.mxu0 %v539
    %1543 = vmatpush1.msra.mxu0 %v538
    %1544 = vmatprep.subr.mxu0 %v787
    %1545 = vmatpush2.msra.mxu0 %v786
    %1546 = vmatprep.subr.mxu0 %v779
    %1547 = vmatpush2.msra.mxu0 %v778
    %1548 = vmatprep.subr.mxu0 %v771
    %1549 = vmatpush2.msra.mxu0 %v770
    %1550 = vmatprep.subr.mxu0 %v763
    %1551 = vmatpush2.msra.mxu0 %v762
    %1552 = vmatprep.subr.mxu0 %v755
    %1553 = vmatpush2.msra.mxu0 %v754
    %1554 = vmatprep.subr.mxu0 %v747
    %1555 = vmatpush2.msra.mxu0 %v746
    %1556 = vmatprep.subr.mxu0 %v739
    %1557 = vmatpush2.msra.mxu0 %v738
    %1558 = vmatprep.subr.mxu0 %v731
    %1559 = vmatpush2.msra.mxu0 %v730
    %1560 = vmatprep.subr.mxu0 %v723
    %1561 = vmatpush2.msra.mxu0 %v722
    %1562 = vmatprep.subr.mxu0 %v715
    %1563 = vmatpush2.msra.mxu0 %v714
    %1564 = vmatprep.subr.mxu0 %v707
    %1565 = vmatpush2.msra.mxu0 %v706
    %1566 = vmatprep.subr.mxu0 %v699
    %1567 = vmatpush2.msra.mxu0 %v698
    %1568 = vmatprep.subr.mxu0 %v691
    %1569 = vmatpush2.msra.mxu0 %v690
    %1570 = vmatprep.subr.mxu0 %v683
    %1571 = vmatpush2.msra.mxu0 %v682
    %1572 = vmatprep.subr.mxu0 %v675
    %1573 = vmatpush2.msra.mxu0 %v674
    %1574 = vmatprep.subr.mxu0 %v667
    %1575 = vmatpush2.msra.mxu0 %v666
    %1576 = vmatprep.mubr.f32.mxu0 %v529
    %1577 = vmatmul.mubr.f32.gmra.mxu0 %v528
    %v1578 = vpop.f32.mrf.mxu0
    %v1579 = vadd.f32 %v1073, %v1578
    %v1580 = vpop.f32.mrf.mxu0
    %v1581 = vadd.f32 %v1077, %v1580
    %1582 = vdwg.mxu0
    %1583 = vmatprep.subr.mxu0 %v915
    %1584 = vmatpush1.msra.mxu0 %v914
    %1585 = vmatprep.subr.mxu0 %v907
    %1586 = vmatpush1.msra.mxu0 %v906
    %1587 = vmatprep.subr.mxu0 %v899
    %1588 = vmatpush1.msra.mxu0 %v898
    %1589 = vmatprep.subr.mxu0 %v891
    %1590 = vmatpush1.msra.mxu0 %v890
    %1591 = vmatprep.subr.mxu0 %v883
    %1592 = vmatpush1.msra.mxu0 %v882
    %1593 = vmatprep.subr.mxu0 %v875
    %1594 = vmatpush1.msra.mxu0 %v874
    %1595 = vmatprep.subr.mxu0 %v867
    %1596 = vmatpush1.msra.mxu0 %v866
    %1597 = vmatprep.subr.mxu0 %v859
    %1598 = vmatpush1.msra.mxu0 %v858
    %1599 = vmatprep.subr.mxu0 %v851
    %1600 = vmatpush1.msra.mxu0 %v850
    %1601 = vmatprep.subr.mxu0 %v843
    %1602 = vmatpush1.msra.mxu0 %v842
    %1603 = vmatprep.subr.mxu0 %v835
    %1604 = vmatpush1.msra.mxu0 %v834
    %1605 = vmatprep.subr.mxu0 %v827
    %1606 = vmatpush1.msra.mxu0 %v826
    %1607 = vmatprep.subr.mxu0 %v819
    %1608 = vmatpush1.msra.mxu0 %v818
    %1609 = vmatprep.subr.mxu0 %v811
    %1610 = vmatpush1.msra.mxu0 %v810
    %1611 = vmatprep.subr.mxu0 %v803
    %1612 = vmatpush1.msra.mxu0 %v802
    %1613 = vmatprep.subr.mxu0 %v795
    %1614 = vmatpush1.msra.mxu0 %v794
    %1615 = vmatprep.subr.mxu0 %v1043
    %1616 = vmatpush2.msra.mxu0 %v1042
    %1617 = vmatprep.subr.mxu0 %v1035
    %1618 = vmatpush2.msra.mxu0 %v1034
    %1619 = vmatprep.subr.mxu0 %v1027
    %1620 = vmatpush2.msra.mxu0 %v1026
    %1621 = vmatprep.subr.mxu0 %v1019
    %1622 = vmatpush2.msra.mxu0 %v1018
    %1623 = vmatprep.subr.mxu0 %v1011
    %1624 = vmatpush2.msra.mxu0 %v1010
    %1625 = vmatprep.subr.mxu0 %v1003
    %1626 = vmatpush2.msra.mxu0 %v1002
    %1627 = vmatprep.subr.mxu0 %v995
    %1628 = vmatpush2.msra.mxu0 %v994
    %1629 = vmatprep.subr.mxu0 %v987
    %1630 = vmatpush2.msra.mxu0 %v986
    %1631 = vmatprep.subr.mxu0 %v979
    %1632 = vmatpush2.msra.mxu0 %v978
    %1633 = vmatprep.subr.mxu0 %v971
    %1634 = vmatpush2.msra.mxu0 %v970
    %1635 = vmatprep.subr.mxu0 %v963
    %1636 = vmatpush2.msra.mxu0 %v962
    %1637 = vmatprep.subr.mxu0 %v955
    %1638 = vmatpush2.msra.mxu0 %v954
    %1639 = vmatprep.subr.mxu0 %v947
    %1640 = vmatpush2.msra.mxu0 %v946
    %1641 = vmatprep.subr.mxu0 %v939
    %1642 = vmatpush2.msra.mxu0 %v938
    %1643 = vmatprep.subr.mxu0 %v931
    %1644 = vmatpush2.msra.mxu0 %v930
    %1645 = vmatprep.subr.mxu0 %v923
    %1646 = vmatpush2.msra.mxu0 %v922
    %1647 = vmatprep.mubr.f32.mxu0 %v531
    %1648 = vmatmul.mubr.f32.gmra.mxu0 %v530
    %v1649 = vpop.f32.mrf.mxu0
    %v1650 = vadd.f32 %v1579, %v1649
    %v1651 = vpop.f32.mrf.mxu0
    %v1652 = vadd.f32 %v1581, %v1651
    %1653 = vdwg.mxu0
    %v1654 = vmax.f32 %v1224, 0.0
    %v1655 = vmax.f32 %v1226, 0.0
    %v1656 = vmax.f32 %v1366, 0.0
    %v1657 = vmax.f32 %v1368, 0.0
    %v1658 = vmax.f32 %v1508, 0.0
    %v1659 = vmax.f32 %v1510, 0.0
    %v1660 = vmax.f32 %v1650, 0.0
    %v1661 = vmax.f32 %v1652, 0.0
    %1662 = vst [vmem:[%s7] sm:$0xff] %v1654
    %1663 = vst [vmem:[%s7 + $0x8] sm:$0xff] %v1655
    %1664 = vst [vmem:[%s7 + $0x10] sm:$0xff] %v1656
    %1665 = vst [vmem:[%s7 + $0x18] sm:$0xff] %v1657
    %1666 = vst [vmem:[%s7 + $0x20] sm:$0xff] %v1658
    %1667 = vst [vmem:[%s7 + $0x28] sm:$0xff] %v1659
    %1668 = vst [vmem:[%s7 + $0x30] sm:$0xff] %v1660
    %1669 = vst [vmem:[%s7 + $0x38] sm:$0xff] %v1661
    // Predicated region
    $region58: #{generator_forward.2} parent=1 // pred_check
      _
    $region59: #{generator_forward.2} parent=1 // pred_check_branch
      %1671 = sbr.rel (0) target = $region61
    $region60: #{generator_forward.2} parent=1 // pred_region
      _
    $region61: #{generator_forward.2} parent=1 // pred_fallthru
      _
    // Predicated region
    $region62: #{generator_forward.2} parent=1 // pred_check
      _
    $region63: #{generator_forward.2} parent=1 // pred_check_branch
      %1673 = sbr.rel (0) target = $region65
    $region64: #{generator_forward.2} parent=1 // pred_region
      _
    $region65: #{generator_forward.2} parent=1 // pred_fallthru
      _
    %1674 = vsyncpa [#allocation3], 1
    %1675 = vsyncpa [#allocation5], 1
    %1676 = vsyncpa [#allocation8], 1
    %1677 = vsyncpa [#allocation11], 1

// kernel: generator_forward.3
$region0: #{generator_forward.3}
  #allocation0 [shape = 'u32[]', space=smem, size = 0x4, offset = 0x4, fixed_abs, tag = 'smem constant byte address 0x4 - core index']
  #allocation1 [shape = 'u32[144,128]{1,0:T(1,128)}', space=vmem, size = 0x12000, scoped, tag = 'internal scratch']
  %s0 = inlined_call_operand.vmem [shape: f32[8,1024], index: 0, kind: input, shape index: {}]
  %s1 = inlined_call_operand.hbm [shape: f32[1024,8960], index: 1, kind: input, shape index: {}]
  %s2 = inlined_call_operand.hbm [shape: f32[1,8960], index: 2, kind: input, shape index: {}]
  %s3 = inlined_call_operand.vmem [shape: f32[8,8960], index: 3, kind: output, shape index: {}]
  %s4 = sld [smem:[#allocation0]]
  $region53: #{generator_forward.3} parent=0
    _
  %s6 = ssub.s32 1, %s4
  %s7 = scalar_select 0, %s6, %s4
  $region1: #{generator_forward.3} parent=0
    #allocation2 [shape = 'u8[7340032]{0}', space=vmem, size = 0x700000, scoped, tag = 'input window, operand 1']
    #allocation3 [shape = 's32[2]{0}', space=sflag, size = 0x8, scoped, tag = 'scoped memory for generator_forward.3']
    #allocation4 [shape = 'u8[7168]{0}', space=vmem, size = 0x1c00, scoped, tag = 'input window, operand 2']
    #allocation5 [shape = 's32[2]{0}', space=sflag, size = 0x8, scoped, tag = 'scoped memory for generator_forward.3']
    %8 = vsyncpa [#allocation3], 0
    %s9 = scalar_lea.sflag [#allocation3], 1
    %10 = vsyncpa %s9, 0
    %11 = vsyncpa [#allocation5], 0
    %s12 = scalar_lea.sflag [#allocation5], 1
    %13 = vsyncpa %s12, 0
    loop: start=0, step=1, limit=12
    $region2: #{generator_forward.3} parent=1 // loop_pre_header
      _
    $region3: #{generator_forward.3} parent=1 // loop_header
      %s15 = sphi 0, %s19
      %p16 = scmp.ge.s32.totalorder %s15, 12
      %s23 = sphi 0, %s23
      %s25 = sphi 0, %s23
      %s26 = sphi 0, %s25
      %s40 = sphi 0, %s26
      %s46 = sphi 0, %s48
      %s49 = sphi 0, %s46
      %s50 = sphi 0, %s49
      %s66 = sphi 0, %s50
      %s72 = sphi 0, %s74
      %s75 = sphi 0, %s72
      %s76 = sphi 0, %s75
      %s92 = sphi 0, %s76
      %s98 = sphi 0, %s100
      %s101 = sphi 0, %s98
      %s102 = sphi 0, %s101
      %s118 = sphi 0, %s102
    $region4: #{generator_forward.3} parent=1 // loop_header_branch
      %18 = sbr.rel (%p16) target = $region8
    $region5: #{generator_forward.3} parent=1 // loop_body
      %s20 = ssub.s32 %s15, 1
      %s21 = ssub.s32 %s15, 2
      %s22 = sadd.s32 %s15, 1
      %s24 = sadd.s32 %s23, 1
      %p27 = scmp.eq.s32.totalorder %s15, 9
      %p28 = scmp.ne.s32.totalorder %s23, %s25
      %p29 = scmp.eq.s32.totalorder %s15, 0
      %p30 = por %p28, %p29
      %p31 = scmp.ne.s32.totalorder %s23, %s25
      %p32 = scmp.eq.s32.totalorder %s20, 9
      %p33 = por %p31, %p32
      %p34 = scmp.ne.s32.totalorder %s25, %s26
      %p35 = scmp.eq.s32.totalorder %s20, 0
      %p36 = por %p34, %p35
      %p37 = scmp.ne.s32.totalorder %s25, %s26
      %p38 = scmp.eq.s32.totalorder %s21, 9
      %p39 = por %p37, %p38
      %p41 = scmp.ne.s32.totalorder %s26, %s40
      %p42 = scmp.eq.s32.totalorder %s21, 0
      %p43 = por %p41, %p42
      %s44 = ssub.s32 %s15, %s22
      %p45 = scmp.eq.s32.totalorder %s44, 0
      %s47 = sadd.s32 %s46, 1
      %s48 = scalar_select %p45, %s46, %s47
      %p51 = pneg %p45
      %p52 = scmp.eq.s32.totalorder %s15, 9
      %p53 = por %p51, %p52
      %p54 = scmp.ne.s32.totalorder %s46, %s49
      %p55 = scmp.eq.s32.totalorder %s15, 0
      %p56 = por %p54, %p55
      %p57 = scmp.ne.s32.totalorder %s46, %s49
      %p58 = scmp.eq.s32.totalorder %s20, 9
      %p59 = por %p57, %p58
      %p60 = scmp.ne.s32.totalorder %s49, %s50
      %p61 = scmp.eq.s32.totalorder %s20, 0
      %p62 = por %p60, %p61
      %p63 = scmp.ne.s32.totalorder %s49, %s50
      %p64 = scmp.eq.s32.totalorder %s21, 9
      %p65 = por %p63, %p64
      %p67 = scmp.ne.s32.totalorder %s50, %s66
      %p68 = scmp.eq.s32.totalorder %s21, 0
      %p69 = por %p67, %p68
      %s70 = ssub.s32 %s15, %s22
      %p71 = scmp.eq.s32.totalorder %s70, 0
      %s73 = sadd.s32 %s72, 1
      %s74 = scalar_select %p71, %s72, %s73
      %p77 = pneg %p71
      %p78 = scmp.eq.s32.totalorder %s15, 9
      %p79 = por %p77, %p78
      %p80 = scmp.ne.s32.totalorder %s72, %s75
      %p81 = scmp.eq.s32.totalorder %s15, 0
      %p82 = por %p80, %p81
      %p83 = scmp.ne.s32.totalorder %s72, %s75
      %p84 = scmp.eq.s32.totalorder %s20, 9
      %p85 = por %p83, %p84
      %p86 = scmp.ne.s32.totalorder %s75, %s76
      %p87 = scmp.eq.s32.totalorder %s20, 0
      %p88 = por %p86, %p87
      %p89 = scmp.ne.s32.totalorder %s75, %s76
      %p90 = scmp.eq.s32.totalorder %s21, 9
      %p91 = por %p89, %p90
      %p93 = scmp.ne.s32.totalorder %s76, %s92
      %p94 = scmp.eq.s32.totalorder %s21, 0
      %p95 = por %p93, %p94
      %s96 = ssub.s32 %s15, %s22
      %p97 = scmp.eq.s32.totalorder %s96, 0
      %s99 = sadd.s32 %s98, 1
      %s100 = scalar_select %p97, %s98, %s99
      %p103 = pneg %p97
      %p104 = scmp.eq.s32.totalorder %s15, 9
      %p105 = por %p103, %p104
      %p106 = scmp.ne.s32.totalorder %s98, %s101
      %p107 = scmp.eq.s32.totalorder %s15, 0
      %p108 = por %p106, %p107
      %p109 = scmp.ne.s32.totalorder %s98, %s101
      %p110 = scmp.eq.s32.totalorder %s20, 9
      %p111 = por %p109, %p110
      %p112 = scmp.ne.s32.totalorder %s101, %s102
      %p113 = scmp.eq.s32.totalorder %s20, 0
      %p114 = por %p112, %p113
      %p115 = scmp.ne.s32.totalorder %s101, %s102
      %p116 = scmp.eq.s32.totalorder %s21, 9
      %p117 = por %p115, %p116
      %p119 = scmp.ne.s32.totalorder %s102, %s118
      %p120 = scmp.eq.s32.totalorder %s21, 0
      %p121 = por %p119, %p120
      %p122 = scmp.le.s32.totalorder 1, %s15
      %p123 = scmp.lt.s32.totalorder %s15, 11
      %p124 = pnand %p122, %p123
      %p125 = pneg %p124
      // Predicated region
      $region9: #{generator_forward.3} parent=5 // pred_check
        _
      $region10: #{generator_forward.3} parent=5 // pred_check_branch
        %127 = sbr.rel (%p124) target = $region12
      $region11: #{generator_forward.3} parent=5 // pred_region
        %s128 = ssub.s32 %s15, 1
        // Predicated region
        $region13: #{generator_forward.3} parent=11 // pred_check
          %p129 = pneg %p36
        $region14: #{generator_forward.3} parent=11 // pred_check_branch
          %131 = sbr.rel (%p129) target = $region16
        $region15: #{generator_forward.3} parent=11 // pred_region
          _
        $region16: #{generator_forward.3} parent=11 // pred_fallthru
          _
      $region12: #{generator_forward.3} parent=5 // pred_fallthru
        _
      %p132 = scmp.lt.s32.totalorder %s15, 10
      // Predicated region
      $region17: #{generator_forward.3} parent=5 // pred_check
        %p133 = pneg %p132
      $region18: #{generator_forward.3} parent=5 // pred_check_branch
        %135 = sbr.rel (%p133) target = $region20
      $region19: #{generator_forward.3} parent=5 // pred_region
        // Predicated region
        $region21: #{generator_forward.3} parent=19 // pred_check
          %p136 = pneg %p56
        $region22: #{generator_forward.3} parent=19 // pred_check_branch
          %138 = sbr.rel (%p136) target = $region24
        $region23: #{generator_forward.3} parent=19 // pred_region
          %s139 = sand.u32 %s46, 1
          %s140 = scalar_lea.sflag [#allocation3], %s139
          %s141 = sand.u32 %s46, 1
          %s142 = smul.addr %s141, 7168
          %s143 = scalar_lea.vmem [#allocation2], %s142
          %s144 = smul.u32 7, %s15
          %s146 = ssub.s32 114688, 114688
          %147 = vsyncadd %s140, %s146
          %s148 = smul.addr %s144, 128
          %s149 = scalar_lea.hbm %s1, %s148
          %s150 = sshll.u32 %s143, 4
          %s151 = int_to_ptr.vmem [resolvable:$true] %s150
          %156 = dma.hbm_to_vmem [thread:$0]  %s149, 114688, %s151, %s140, 8960, 896, 56
        $region24: #{generator_forward.3} parent=19 // pred_fallthru
          _
        // Predicated region
        $region25: #{generator_forward.3} parent=19 // pred_check
          %p157 = pneg %p82
        $region26: #{generator_forward.3} parent=19 // pred_check_branch
          %159 = sbr.rel (%p157) target = $region28
        $region27: #{generator_forward.3} parent=19 // pred_region
          %s160 = sand.u32 %s72, 1
          %s161 = scalar_lea.sflag [#allocation5], %s160
          %s162 = sand.u32 %s72, 1
          %s163 = smul.addr %s162, 7
          %s164 = scalar_lea.vmem [#allocation4], %s163
          %s165 = smul.u32 7, %s15
          %s167 = ssub.s32 112, 112
          %168 = vsyncadd %s161, %s167
          %s169 = smul.addr %s165, 16
          %s170 = scalar_lea.hbm %s2, %s169
          %s172 = sshll.u32 %s164, 4
          %s173 = int_to_ptr.vmem [resolvable:$true] %s172
          %175 = dma.hbm_to_vmem [thread:$0]  %s170, 112, %s173, %s161
        $region28: #{generator_forward.3} parent=19 // pred_fallthru
          _
      $region20: #{generator_forward.3} parent=5 // pred_fallthru
        _
      %p176 = scmp.le.s32.totalorder 1, %s15
      %p177 = scmp.lt.s32.totalorder %s15, 11
      %p178 = pnand %p176, %p177
      %p179 = pneg %p178
      // Predicated region
      $region29: #{generator_forward.3} parent=5 // pred_check
        _
      $region30: #{generator_forward.3} parent=5 // pred_check_branch
        %181 = sbr.rel (%p178) target = $region32
      $region31: #{generator_forward.3} parent=5 // pred_region
        %s182 = ssub.s32 %s15, 1
        %s183 = sand.u32 %s49, 1
        %s184 = scalar_lea.sflag [#allocation3], %s183
        %s185 = sand.u32 %s49, 1
        %s186 = smul.addr %s185, 7168
        %s187 = scalar_lea.vmem [#allocation2], %s186
        // Predicated region
        $region33: #{generator_forward.3} parent=31 // pred_check
          %p188 = pneg %p62
        $region34: #{generator_forward.3} parent=31 // pred_check_branch
          %190 = sbr.rel (%p188) target = $region36
        $region35: #{generator_forward.3} parent=31 // pred_region
          %191 = dma.done %s184, 114688
        $region36: #{generator_forward.3} parent=31 // pred_fallthru
          _
        %s192 = sand.u32 %s75, 1
        %s193 = scalar_lea.sflag [#allocation5], %s192
        %s194 = sand.u32 %s75, 1
        %s195 = smul.addr %s194, 7
        %s196 = scalar_lea.vmem [#allocation4], %s195
        // Predicated region
        $region37: #{generator_forward.3} parent=31 // pred_check
          %p197 = pneg %p88
        $region38: #{generator_forward.3} parent=31 // pred_check_branch
          %199 = sbr.rel (%p197) target = $region40
        $region39: #{generator_forward.3} parent=31 // pred_region
          %200 = dma.done %s193, 112
        $region40: #{generator_forward.3} parent=31 // pred_fallthru
          _
        %p201 = pneg %p36
        %p202 = pneg %p33
        %s203 = sand.u32 %s49, 1
        %s204 = scalar_lea.sflag [#allocation3], %s203
        %s205 = sand.u32 %s49, 1
        %s206 = smul.addr %s205, 7168
        %s207 = scalar_lea.vmem [#allocation2], %s206
        %p208 = pneg %p62
        %p209 = pneg %p59
        %s210 = sand.u32 %s75, 1
        %s211 = scalar_lea.sflag [#allocation5], %s210
        %s212 = sand.u32 %s75, 1
        %s213 = smul.addr %s212, 7
        %s214 = scalar_lea.vmem [#allocation4], %s213
        %p215 = pneg %p88
        %p216 = pneg %p85
        %p217 = pneg %p114
        %p218 = pneg %p111
        %s219 = smul.u32 7, %s20
        %p220 = scmp.lt.s32.totalorder %s219, 69
        %s221 = scalar_select %p220, %s219, 69
        %s222 = smul.addr %s221, 8
        %s223 = scalar_lea.vmem %s3, %s222
        %s224 = smul.u32 7, %s20
        %s225 = smul.u32 7, %s20
        %s226 = smul.u32 7, %s20
        %p227 = scmp.lt.s32.totalorder %s226, 69
        %s228 = scalar_select %p227, %s226, 69
        %s229 = smul.addr %s228, 8
        %s230 = scalar_lea.vmem %s3, %s229
        %s231 = smul.u32 7, %s20
        %v232 = vld [vmem:[%s0] sm:$0xff]
        %v233 = vld [vmem:[%s0 + $0x8] sm:$0xff]
        %v234 = vld [vmem:[%s0 + $0x10] sm:$0xff]
        %v235 = vld [vmem:[%s0 + $0x18] sm:$0xff]
        %v236 = vld [vmem:[%s0 + $0x20] sm:$0xff]
        %v237 = vld [vmem:[%s0 + $0x28] sm:$0xff]
        %v238 = vld [vmem:[%s0 + $0x30] sm:$0xff]
        %v239 = vld [vmem:[%s0 + $0x38] sm:$0xff]
        %v240 = vld [vmem:[%s187] sm:$0xff]
        %v241 = vld [vmem:[%s187 + $0x8] sm:$0xff]
        %v242 = vld [vmem:[%s187 + $0x10] sm:$0xff]
        %v243 = vld [vmem:[%s187 + $0x18] sm:$0xff]
        %v244 = vld [vmem:[%s187 + $0x20] sm:$0xff]
        %v245 = vld [vmem:[%s187 + $0x28] sm:$0xff]
        %v246 = vld [vmem:[%s187 + $0x30] sm:$0xff]
        %v247 = vld [vmem:[%s187 + $0x38] sm:$0xff]
        %v248 = vld [vmem:[%s187 + $0x40] sm:$0xff]
        %v249 = vld [vmem:[%s187 + $0x48] sm:$0xff]
        %v250 = vld [vmem:[%s187 + $0x50] sm:$0xff]
        %v251 = vld [vmem:[%s187 + $0x58] sm:$0xff]
        %v252 = vld [vmem:[%s187 + $0x60] sm:$0xff]
        %v253 = vld [vmem:[%s187 + $0x68] sm:$0xff]
        %v254 = vld [vmem:[%s187 + $0x70] sm:$0xff]
        %v255 = vld [vmem:[%s187 + $0x78] sm:$0xff]
        %v256 = vld [vmem:[%s187 + $0x80] sm:$0xff]
        %v257 = vld [vmem:[%s187 + $0x88] sm:$0xff]
        %v258 = vld [vmem:[%s187 + $0x90] sm:$0xff]
        %v259 = vld [vmem:[%s187 + $0x98] sm:$0xff]
        %v260 = vld [vmem:[%s187 + $0xa0] sm:$0xff]
        %v261 = vld [vmem:[%s187 + $0xa8] sm:$0xff]
        %v262 = vld [vmem:[%s187 + $0xb0] sm:$0xff]
        %v263 = vld [vmem:[%s187 + $0xb8] sm:$0xff]
        %v264 = vld [vmem:[%s187 + $0xc0] sm:$0xff]
        %v265 = vld [vmem:[%s187 + $0xc8] sm:$0xff]
        %v266 = vld [vmem:[%s187 + $0xd0] sm:$0xff]
        %v267 = vld [vmem:[%s187 + $0xd8] sm:$0xff]
        %v268 = vld [vmem:[%s187 + $0xe0] sm:$0xff]
        %v269 = vld [vmem:[%s187 + $0xe8] sm:$0xff]
        %v270 = vld [vmem:[%s187 + $0xf0] sm:$0xff]
        %v271 = vld [vmem:[%s187 + $0xf8] sm:$0xff]
        %v272 = vld [vmem:[%s187 + $0x100] sm:$0xff]
        %v273 = vld [vmem:[%s187 + $0x108] sm:$0xff]
        %v274 = vld [vmem:[%s187 + $0x110] sm:$0xff]
        %v275 = vld [vmem:[%s187 + $0x118] sm:$0xff]
        %v276 = vld [vmem:[%s187 + $0x120] sm:$0xff]
        %v277 = vld [vmem:[%s187 + $0x128] sm:$0xff]
        %v278 = vld [vmem:[%s187 + $0x130] sm:$0xff]
        %v279 = vld [vmem:[%s187 + $0x138] sm:$0xff]
        %v280 = vld [vmem:[%s187 + $0x140] sm:$0xff]
        %v281 = vld [vmem:[%s187 + $0x148] sm:$0xff]
        %v282 = vld [vmem:[%s187 + $0x150] sm:$0xff]
        %v283 = vld [vmem:[%s187 + $0x158] sm:$0xff]
        %v284 = vld [vmem:[%s187 + $0x160] sm:$0xff]
        %v285 = vld [vmem:[%s187 + $0x168] sm:$0xff]
        %v286 = vld [vmem:[%s187 + $0x170] sm:$0xff]
        %v287 = vld [vmem:[%s187 + $0x178] sm:$0xff]
        %v288 = vld [vmem:[%s187 + $0x180] sm:$0xff]
        %v289 = vld [vmem:[%s187 + $0x188] sm:$0xff]
        %v290 = vld [vmem:[%s187 + $0x190] sm:$0xff]
        %v291 = vld [vmem:[%s187 + $0x198] sm:$0xff]
        %v292 = vld [vmem:[%s187 + $0x1a0] sm:$0xff]
        %v293 = vld [vmem:[%s187 + $0x1a8] sm:$0xff]
        %v294 = vld [vmem:[%s187 + $0x1b0] sm:$0xff]
        %v295 = vld [vmem:[%s187 + $0x1b8] sm:$0xff]
        %v296 = vld [vmem:[%s187 + $0x1c0] sm:$0xff]
        %v297 = vld [vmem:[%s187 + $0x1c8] sm:$0xff]
        %v298 = vld [vmem:[%s187 + $0x1d0] sm:$0xff]
        %v299 = vld [vmem:[%s187 + $0x1d8] sm:$0xff]
        %v300 = vld [vmem:[%s187 + $0x1e0] sm:$0xff]
        %v301 = vld [vmem:[%s187 + $0x1e8] sm:$0xff]
        %v302 = vld [vmem:[%s187 + $0x1f0] sm:$0xff]
        %v303 = vld [vmem:[%s187 + $0x1f8] sm:$0xff]
        %v304 = vld [vmem:[%s187 + $0x200] sm:$0xff]
        %v305 = vld [vmem:[%s187 + $0x208] sm:$0xff]
        %v306 = vld [vmem:[%s187 + $0x210] sm:$0xff]
        %v307 = vld [vmem:[%s187 + $0x218] sm:$0xff]
        %v308 = vld [vmem:[%s187 + $0x220] sm:$0xff]
        %v309 = vld [vmem:[%s187 + $0x228] sm:$0xff]
        %v310 = vld [vmem:[%s187 + $0x230] sm:$0xff]
        %v311 = vld [vmem:[%s187 + $0x238] sm:$0xff]
        %v312 = vld [vmem:[%s187 + $0x240] sm:$0xff]
        %v313 = vld [vmem:[%s187 + $0x248] sm:$0xff]
        %v314 = vld [vmem:[%s187 + $0x250] sm:$0xff]
        %v315 = vld [vmem:[%s187 + $0x258] sm:$0xff]
        %v316 = vld [vmem:[%s187 + $0x260] sm:$0xff]
        %v317 = vld [vmem:[%s187 + $0x268] sm:$0xff]
        %v318 = vld [vmem:[%s187 + $0x270] sm:$0xff]
        %v319 = vld [vmem:[%s187 + $0x278] sm:$0xff]
        %v320 = vld [vmem:[%s187 + $0x280] sm:$0xff]
        %v321 = vld [vmem:[%s187 + $0x288] sm:$0xff]
        %v322 = vld [vmem:[%s187 + $0x290] sm:$0xff]
        %v323 = vld [vmem:[%s187 + $0x298] sm:$0xff]
        %v324 = vld [vmem:[%s187 + $0x2a0] sm:$0xff]
        %v325 = vld [vmem:[%s187 + $0x2a8] sm:$0xff]
        %v326 = vld [vmem:[%s187 + $0x2b0] sm:$0xff]
        %v327 = vld [vmem:[%s187 + $0x2b8] sm:$0xff]
        %v328 = vld [vmem:[%s187 + $0x2c0] sm:$0xff]
        %v329 = vld [vmem:[%s187 + $0x2c8] sm:$0xff]
        %v330 = vld [vmem:[%s187 + $0x2d0] sm:$0xff]
        %v331 = vld [vmem:[%s187 + $0x2d8] sm:$0xff]
        %v332 = vld [vmem:[%s187 + $0x2e0] sm:$0xff]
        %v333 = vld [vmem:[%s187 + $0x2e8] sm:$0xff]
        %v334 = vld [vmem:[%s187 + $0x2f0] sm:$0xff]
        %v335 = vld [vmem:[%s187 + $0x2f8] sm:$0xff]
        %v336 = vld [vmem:[%s187 + $0x300] sm:$0xff]
        %v337 = vld [vmem:[%s187 + $0x308] sm:$0xff]
        %v338 = vld [vmem:[%s187 + $0x310] sm:$0xff]
        %v339 = vld [vmem:[%s187 + $0x318] sm:$0xff]
        %v340 = vld [vmem:[%s187 + $0x320] sm:$0xff]
        %v341 = vld [vmem:[%s187 + $0x328] sm:$0xff]
        %v342 = vld [vmem:[%s187 + $0x330] sm:$0xff]
        %v343 = vld [vmem:[%s187 + $0x338] sm:$0xff]
        %v344 = vld [vmem:[%s187 + $0x340] sm:$0xff]
        %v345 = vld [vmem:[%s187 + $0x348] sm:$0xff]
        %v346 = vld [vmem:[%s187 + $0x350] sm:$0xff]
        %v347 = vld [vmem:[%s187 + $0x358] sm:$0xff]
        %v348 = vld [vmem:[%s187 + $0x360] sm:$0xff]
        %v349 = vld [vmem:[%s187 + $0x368] sm:$0xff]
        %v350 = vld [vmem:[%s187 + $0x370] sm:$0xff]
        %v351 = vld [vmem:[%s187 + $0x378] sm:$0xff]
        %v352 = vld [vmem:[%s187 + $0x380] sm:$0xff]
        %v353 = vld [vmem:[%s187 + $0x388] sm:$0xff]
        %v354 = vld [vmem:[%s187 + $0x390] sm:$0xff]
        %v355 = vld [vmem:[%s187 + $0x398] sm:$0xff]
        %v356 = vld [vmem:[%s187 + $0x3a0] sm:$0xff]
        %v357 = vld [vmem:[%s187 + $0x3a8] sm:$0xff]
        %v358 = vld [vmem:[%s187 + $0x3b0] sm:$0xff]
        %v359 = vld [vmem:[%s187 + $0x3b8] sm:$0xff]
        %v360 = vld [vmem:[%s187 + $0x3c0] sm:$0xff]
        %v361 = vld [vmem:[%s187 + $0x3c8] sm:$0xff]
        %v362 = vld [vmem:[%s187 + $0x3d0] sm:$0xff]
        %v363 = vld [vmem:[%s187 + $0x3d8] sm:$0xff]
        %v364 = vld [vmem:[%s187 + $0x3e0] sm:$0xff]
        %v365 = vld [vmem:[%s187 + $0x3e8] sm:$0xff]
        %v366 = vld [vmem:[%s187 + $0x3f0] sm:$0xff]
        %v367 = vld [vmem:[%s187 + $0x3f8] sm:$0xff]
        %v368 = vld [vmem:[%s187 + $0x400] sm:$0xff]
        %v369 = vld [vmem:[%s187 + $0x408] sm:$0xff]
        %v370 = vld [vmem:[%s187 + $0x410] sm:$0xff]
        %v371 = vld [vmem:[%s187 + $0x418] sm:$0xff]
        %v372 = vld [vmem:[%s187 + $0x420] sm:$0xff]
        %v373 = vld [vmem:[%s187 + $0x428] sm:$0xff]
        %v374 = vld [vmem:[%s187 + $0x430] sm:$0xff]
        %v375 = vld [vmem:[%s187 + $0x438] sm:$0xff]
        %v376 = vld [vmem:[%s187 + $0x440] sm:$0xff]
        %v377 = vld [vmem:[%s187 + $0x448] sm:$0xff]
        %v378 = vld [vmem:[%s187 + $0x450] sm:$0xff]
        %v379 = vld [vmem:[%s187 + $0x458] sm:$0xff]
        %v380 = vld [vmem:[%s187 + $0x460] sm:$0xff]
        %v381 = vld [vmem:[%s187 + $0x468] sm:$0xff]
        %v382 = vld [vmem:[%s187 + $0x470] sm:$0xff]
        %v383 = vld [vmem:[%s187 + $0x478] sm:$0xff]
        %v384 = vld [vmem:[%s187 + $0x480] sm:$0xff]
        %v385 = vld [vmem:[%s187 + $0x488] sm:$0xff]
        %v386 = vld [vmem:[%s187 + $0x490] sm:$0xff]
        %v387 = vld [vmem:[%s187 + $0x498] sm:$0xff]
        %v388 = vld [vmem:[%s187 + $0x4a0] sm:$0xff]
        %v389 = vld [vmem:[%s187 + $0x4a8] sm:$0xff]
        %v390 = vld [vmem:[%s187 + $0x4b0] sm:$0xff]
        %v391 = vld [vmem:[%s187 + $0x4b8] sm:$0xff]
        %v392 = vld [vmem:[%s187 + $0x4c0] sm:$0xff]
        %v393 = vld [vmem:[%s187 + $0x4c8] sm:$0xff]
        %v394 = vld [vmem:[%s187 + $0x4d0] sm:$0xff]
        %v395 = vld [vmem:[%s187 + $0x4d8] sm:$0xff]
        %v396 = vld [vmem:[%s187 + $0x4e0] sm:$0xff]
        %v397 = vld [vmem:[%s187 + $0x4e8] sm:$0xff]
        %v398 = vld [vmem:[%s187 + $0x4f0] sm:$0xff]
        %v399 = vld [vmem:[%s187 + $0x4f8] sm:$0xff]
        %v400 = vld [vmem:[%s187 + $0x500] sm:$0xff]
        %v401 = vld [vmem:[%s187 + $0x508] sm:$0xff]
        %v402 = vld [vmem:[%s187 + $0x510] sm:$0xff]
        %v403 = vld [vmem:[%s187 + $0x518] sm:$0xff]
        %v404 = vld [vmem:[%s187 + $0x520] sm:$0xff]
        %v405 = vld [vmem:[%s187 + $0x528] sm:$0xff]
        %v406 = vld [vmem:[%s187 + $0x530] sm:$0xff]
        %v407 = vld [vmem:[%s187 + $0x538] sm:$0xff]
        %v408 = vld [vmem:[%s187 + $0x540] sm:$0xff]
        %v409 = vld [vmem:[%s187 + $0x548] sm:$0xff]
        %v410 = vld [vmem:[%s187 + $0x550] sm:$0xff]
        %v411 = vld [vmem:[%s187 + $0x558] sm:$0xff]
        %v412 = vld [vmem:[%s187 + $0x560] sm:$0xff]
        %v413 = vld [vmem:[%s187 + $0x568] sm:$0xff]
        %v414 = vld [vmem:[%s187 + $0x570] sm:$0xff]
        %v415 = vld [vmem:[%s187 + $0x578] sm:$0xff]
        %v416 = vld [vmem:[%s187 + $0x580] sm:$0xff]
        %v417 = vld [vmem:[%s187 + $0x588] sm:$0xff]
        %v418 = vld [vmem:[%s187 + $0x590] sm:$0xff]
        %v419 = vld [vmem:[%s187 + $0x598] sm:$0xff]
        %v420 = vld [vmem:[%s187 + $0x5a0] sm:$0xff]
        %v421 = vld [vmem:[%s187 + $0x5a8] sm:$0xff]
        %v422 = vld [vmem:[%s187 + $0x5b0] sm:$0xff]
        %v423 = vld [vmem:[%s187 + $0x5b8] sm:$0xff]
        %v424 = vld [vmem:[%s187 + $0x5c0] sm:$0xff]
        %v425 = vld [vmem:[%s187 + $0x5c8] sm:$0xff]
        %v426 = vld [vmem:[%s187 + $0x5d0] sm:$0xff]
        %v427 = vld [vmem:[%s187 + $0x5d8] sm:$0xff]
        %v428 = vld [vmem:[%s187 + $0x5e0] sm:$0xff]
        %v429 = vld [vmem:[%s187 + $0x5e8] sm:$0xff]
        %v430 = vld [vmem:[%s187 + $0x5f0] sm:$0xff]
        %v431 = vld [vmem:[%s187 + $0x5f8] sm:$0xff]
        %v432 = vld [vmem:[%s187 + $0x600] sm:$0xff]
        %v433 = vld [vmem:[%s187 + $0x608] sm:$0xff]
        %v434 = vld [vmem:[%s187 + $0x610] sm:$0xff]
        %v435 = vld [vmem:[%s187 + $0x618] sm:$0xff]
        %v436 = vld [vmem:[%s187 + $0x620] sm:$0xff]
        %v437 = vld [vmem:[%s187 + $0x628] sm:$0xff]
        %v438 = vld [vmem:[%s187 + $0x630] sm:$0xff]
        %v439 = vld [vmem:[%s187 + $0x638] sm:$0xff]
        %v440 = vld [vmem:[%s187 + $0x640] sm:$0xff]
        %v441 = vld [vmem:[%s187 + $0x648] sm:$0xff]
        %v442 = vld [vmem:[%s187 + $0x650] sm:$0xff]
        %v443 = vld [vmem:[%s187 + $0x658] sm:$0xff]
        %v444 = vld [vmem:[%s187 + $0x660] sm:$0xff]
        %v445 = vld [vmem:[%s187 + $0x668] sm:$0xff]
        %v446 = vld [vmem:[%s187 + $0x670] sm:$0xff]
        %v447 = vld [vmem:[%s187 + $0x678] sm:$0xff]
        %v448 = vld [vmem:[%s187 + $0x680] sm:$0xff]
        %v449 = vld [vmem:[%s187 + $0x688] sm:$0xff]
        %v450 = vld [vmem:[%s187 + $0x690] sm:$0xff]
        %v451 = vld [vmem:[%s187 + $0x698] sm:$0xff]
        %v452 = vld [vmem:[%s187 + $0x6a0] sm:$0xff]
        %v453 = vld [vmem:[%s187 + $0x6a8] sm:$0xff]
        %v454 = vld [vmem:[%s187 + $0x6b0] sm:$0xff]
        %v455 = vld [vmem:[%s187 + $0x6b8] sm:$0xff]
        %v456 = vld [vmem:[%s187 + $0x6c0] sm:$0xff]
        %v457 = vld [vmem:[%s187 + $0x6c8] sm:$0xff]
        %v458 = vld [vmem:[%s187 + $0x6d0] sm:$0xff]
        %v459 = vld [vmem:[%s187 + $0x6d8] sm:$0xff]
        %v460 = vld [vmem:[%s187 + $0x6e0] sm:$0xff]
        %v461 = vld [vmem:[%s187 + $0x6e8] sm:$0xff]
        %v462 = vld [vmem:[%s187 + $0x6f0] sm:$0xff]
        %v463 = vld [vmem:[%s187 + $0x6f8] sm:$0xff]
        %v464 = vld [vmem:[%s187 + $0x700] sm:$0xff]
        %v465 = vld [vmem:[%s187 + $0x708] sm:$0xff]
        %v466 = vld [vmem:[%s187 + $0x710] sm:$0xff]
        %v467 = vld [vmem:[%s187 + $0x718] sm:$0xff]
        %v468 = vld [vmem:[%s187 + $0x720] sm:$0xff]
        %v469 = vld [vmem:[%s187 + $0x728] sm:$0xff]
        %v470 = vld [vmem:[%s187 + $0x730] sm:$0xff]
        %v471 = vld [vmem:[%s187 + $0x738] sm:$0xff]
        %v472 = vld [vmem:[%s187 + $0x740] sm:$0xff]
        %v473 = vld [vmem:[%s187 + $0x748] sm:$0xff]
        %v474 = vld [vmem:[%s187 + $0x750] sm:$0xff]
        %v475 = vld [vmem:[%s187 + $0x758] sm:$0xff]
        %v476 = vld [vmem:[%s187 + $0x760] sm:$0xff]
        %v477 = vld [vmem:[%s187 + $0x768] sm:$0xff]
        %v478 = vld [vmem:[%s187 + $0x770] sm:$0xff]
        %v479 = vld [vmem:[%s187 + $0x778] sm:$0xff]
        %v480 = vld [vmem:[%s187 + $0x780] sm:$0xff]
        %v481 = vld [vmem:[%s187 + $0x788] sm:$0xff]
        %v482 = vld [vmem:[%s187 + $0x790] sm:$0xff]
        %v483 = vld [vmem:[%s187 + $0x798] sm:$0xff]
        %v484 = vld [vmem:[%s187 + $0x7a0] sm:$0xff]
        %v485 = vld [vmem:[%s187 + $0x7a8] sm:$0xff]
        %v486 = vld [vmem:[%s187 + $0x7b0] sm:$0xff]
        %v487 = vld [vmem:[%s187 + $0x7b8] sm:$0xff]
        %v488 = vld [vmem:[%s187 + $0x7c0] sm:$0xff]
        %v489 = vld [vmem:[%s187 + $0x7c8] sm:$0xff]
        %v490 = vld [vmem:[%s187 + $0x7d0] sm:$0xff]
        %v491 = vld [vmem:[%s187 + $0x7d8] sm:$0xff]
        %v492 = vld [vmem:[%s187 + $0x7e0] sm:$0xff]
        %v493 = vld [vmem:[%s187 + $0x7e8] sm:$0xff]
        %v494 = vld [vmem:[%s187 + $0x7f0] sm:$0xff]
        %v495 = vld [vmem:[%s187 + $0x7f8] sm:$0xff]
        %v496 = vld [vmem:[%s187 + $0x800] sm:$0xff]
        %v497 = vld [vmem:[%s187 + $0x808] sm:$0xff]
        %v498 = vld [vmem:[%s187 + $0x810] sm:$0xff]
        %v499 = vld [vmem:[%s187 + $0x818] sm:$0xff]
        %v500 = vld [vmem:[%s187 + $0x820] sm:$0xff]
        %v501 = vld [vmem:[%s187 + $0x828] sm:$0xff]
        %v502 = vld [vmem:[%s187 + $0x830] sm:$0xff]
        %v503 = vld [vmem:[%s187 + $0x838] sm:$0xff]
        %v504 = vld [vmem:[%s187 + $0x840] sm:$0xff]
        %v505 = vld [vmem:[%s187 + $0x848] sm:$0xff]
        %v506 = vld [vmem:[%s187 + $0x850] sm:$0xff]
        %v507 = vld [vmem:[%s187 + $0x858] sm:$0xff]
        %v508 = vld [vmem:[%s187 + $0x860] sm:$0xff]
        %v509 = vld [vmem:[%s187 + $0x868] sm:$0xff]
        %v510 = vld [vmem:[%s187 + $0x870] sm:$0xff]
        %v511 = vld [vmem:[%s187 + $0x878] sm:$0xff]
        %v512 = vld [vmem:[%s187 + $0x880] sm:$0xff]
        %v513 = vld [vmem:[%s187 + $0x888] sm:$0xff]
        %v514 = vld [vmem:[%s187 + $0x890] sm:$0xff]
        %v515 = vld [vmem:[%s187 + $0x898] sm:$0xff]
        %v516 = vld [vmem:[%s187 + $0x8a0] sm:$0xff]
        %v517 = vld [vmem:[%s187 + $0x8a8] sm:$0xff]
        %v518 = vld [vmem:[%s187 + $0x8b0] sm:$0xff]
        %v519 = vld [vmem:[%s187 + $0x8b8] sm:$0xff]
        %v520 = vld [vmem:[%s187 + $0x8c0] sm:$0xff]
        %v521 = vld [vmem:[%s187 + $0x8c8] sm:$0xff]
        %v522 = vld [vmem:[%s187 + $0x8d0] sm:$0xff]
        %v523 = vld [vmem:[%s187 + $0x8d8] sm:$0xff]
        %v524 = vld [vmem:[%s187 + $0x8e0] sm:$0xff]
        %v525 = vld [vmem:[%s187 + $0x8e8] sm:$0xff]
        %v526 = vld [vmem:[%s187 + $0x8f0] sm:$0xff]
        %v527 = vld [vmem:[%s187 + $0x8f8] sm:$0xff]
        %v528 = vld [vmem:[%s187 + $0x900] sm:$0xff]
        %v529 = vld [vmem:[%s187 + $0x908] sm:$0xff]
        %v530 = vld [vmem:[%s187 + $0x910] sm:$0xff]
        %v531 = vld [vmem:[%s187 + $0x918] sm:$0xff]
        %v532 = vld [vmem:[%s187 + $0x920] sm:$0xff]
        %v533 = vld [vmem:[%s187 + $0x928] sm:$0xff]
        %v534 = vld [vmem:[%s187 + $0x930] sm:$0xff]
        %v535 = vld [vmem:[%s187 + $0x938] sm:$0xff]
        %v536 = vld [vmem:[%s187 + $0x940] sm:$0xff]
        %v537 = vld [vmem:[%s187 + $0x948] sm:$0xff]
        %v538 = vld [vmem:[%s187 + $0x950] sm:$0xff]
        %v539 = vld [vmem:[%s187 + $0x958] sm:$0xff]
        %v540 = vld [vmem:[%s187 + $0x960] sm:$0xff]
        %v541 = vld [vmem:[%s187 + $0x968] sm:$0xff]
        %v542 = vld [vmem:[%s187 + $0x970] sm:$0xff]
        %v543 = vld [vmem:[%s187 + $0x978] sm:$0xff]
        %v544 = vld [vmem:[%s187 + $0x980] sm:$0xff]
        %v545 = vld [vmem:[%s187 + $0x988] sm:$0xff]
        %v546 = vld [vmem:[%s187 + $0x990] sm:$0xff]
        %v547 = vld [vmem:[%s187 + $0x998] sm:$0xff]
        %v548 = vld [vmem:[%s187 + $0x9a0] sm:$0xff]
        %v549 = vld [vmem:[%s187 + $0x9a8] sm:$0xff]
        %v550 = vld [vmem:[%s187 + $0x9b0] sm:$0xff]
        %v551 = vld [vmem:[%s187 + $0x9b8] sm:$0xff]
        %v552 = vld [vmem:[%s187 + $0x9c0] sm:$0xff]
        %v553 = vld [vmem:[%s187 + $0x9c8] sm:$0xff]
        %v554 = vld [vmem:[%s187 + $0x9d0] sm:$0xff]
        %v555 = vld [vmem:[%s187 + $0x9d8] sm:$0xff]
        %v556 = vld [vmem:[%s187 + $0x9e0] sm:$0xff]
        %v557 = vld [vmem:[%s187 + $0x9e8] sm:$0xff]
        %v558 = vld [vmem:[%s187 + $0x9f0] sm:$0xff]
        %v559 = vld [vmem:[%s187 + $0x9f8] sm:$0xff]
        %v560 = vld [vmem:[%s187 + $0xa00] sm:$0xff]
        %v561 = vld [vmem:[%s187 + $0xa08] sm:$0xff]
        %v562 = vld [vmem:[%s187 + $0xa10] sm:$0xff]
        %v563 = vld [vmem:[%s187 + $0xa18] sm:$0xff]
        %v564 = vld [vmem:[%s187 + $0xa20] sm:$0xff]
        %v565 = vld [vmem:[%s187 + $0xa28] sm:$0xff]
        %v566 = vld [vmem:[%s187 + $0xa30] sm:$0xff]
        %v567 = vld [vmem:[%s187 + $0xa38] sm:$0xff]
        %v568 = vld [vmem:[%s187 + $0xa40] sm:$0xff]
        %v569 = vld [vmem:[%s187 + $0xa48] sm:$0xff]
        %v570 = vld [vmem:[%s187 + $0xa50] sm:$0xff]
        %v571 = vld [vmem:[%s187 + $0xa58] sm:$0xff]
        %v572 = vld [vmem:[%s187 + $0xa60] sm:$0xff]
        %v573 = vld [vmem:[%s187 + $0xa68] sm:$0xff]
        %v574 = vld [vmem:[%s187 + $0xa70] sm:$0xff]
        %v575 = vld [vmem:[%s187 + $0xa78] sm:$0xff]
        %v576 = vld [vmem:[%s187 + $0xa80] sm:$0xff]
        %v577 = vld [vmem:[%s187 + $0xa88] sm:$0xff]
        %v578 = vld [vmem:[%s187 + $0xa90] sm:$0xff]
        %v579 = vld [vmem:[%s187 + $0xa98] sm:$0xff]
        %v580 = vld [vmem:[%s187 + $0xaa0] sm:$0xff]
        %v581 = vld [vmem:[%s187 + $0xaa8] sm:$0xff]
        %v582 = vld [vmem:[%s187 + $0xab0] sm:$0xff]
        %v583 = vld [vmem:[%s187 + $0xab8] sm:$0xff]
        %v584 = vld [vmem:[%s187 + $0xac0] sm:$0xff]
        %v585 = vld [vmem:[%s187 + $0xac8] sm:$0xff]
        %v586 = vld [vmem:[%s187 + $0xad0] sm:$0xff]
        %v587 = vld [vmem:[%s187 + $0xad8] sm:$0xff]
        %v588 = vld [vmem:[%s187 + $0xae0] sm:$0xff]
        %v589 = vld [vmem:[%s187 + $0xae8] sm:$0xff]
        %v590 = vld [vmem:[%s187 + $0xaf0] sm:$0xff]
        %v591 = vld [vmem:[%s187 + $0xaf8] sm:$0xff]
        %v592 = vld [vmem:[%s187 + $0xb00] sm:$0xff]
        %v593 = vld [vmem:[%s187 + $0xb08] sm:$0xff]
        %v594 = vld [vmem:[%s187 + $0xb10] sm:$0xff]
        %v595 = vld [vmem:[%s187 + $0xb18] sm:$0xff]
        %v596 = vld [vmem:[%s187 + $0xb20] sm:$0xff]
        %v597 = vld [vmem:[%s187 + $0xb28] sm:$0xff]
        %v598 = vld [vmem:[%s187 + $0xb30] sm:$0xff]
        %v599 = vld [vmem:[%s187 + $0xb38] sm:$0xff]
        %v600 = vld [vmem:[%s187 + $0xb40] sm:$0xff]
        %v601 = vld [vmem:[%s187 + $0xb48] sm:$0xff]
        %v602 = vld [vmem:[%s187 + $0xb50] sm:$0xff]
        %v603 = vld [vmem:[%s187 + $0xb58] sm:$0xff]
        %v604 = vld [vmem:[%s187 + $0xb60] sm:$0xff]
        %v605 = vld [vmem:[%s187 + $0xb68] sm:$0xff]
        %v606 = vld [vmem:[%s187 + $0xb70] sm:$0xff]
        %v607 = vld [vmem:[%s187 + $0xb78] sm:$0xff]
        %v608 = vld [vmem:[%s187 + $0xb80] sm:$0xff]
        %v609 = vld [vmem:[%s187 + $0xb88] sm:$0xff]
        %v610 = vld [vmem:[%s187 + $0xb90] sm:$0xff]
        %v611 = vld [vmem:[%s187 + $0xb98] sm:$0xff]
        %v612 = vld [vmem:[%s187 + $0xba0] sm:$0xff]
        %v613 = vld [vmem:[%s187 + $0xba8] sm:$0xff]
        %v614 = vld [vmem:[%s187 + $0xbb0] sm:$0xff]
        %v615 = vld [vmem:[%s187 + $0xbb8] sm:$0xff]
        %v616 = vld [vmem:[%s187 + $0xbc0] sm:$0xff]
        %v617 = vld [vmem:[%s187 + $0xbc8] sm:$0xff]
        %v618 = vld [vmem:[%s187 + $0xbd0] sm:$0xff]
        %v619 = vld [vmem:[%s187 + $0xbd8] sm:$0xff]
        %v620 = vld [vmem:[%s187 + $0xbe0] sm:$0xff]
        %v621 = vld [vmem:[%s187 + $0xbe8] sm:$0xff]
        %v622 = vld [vmem:[%s187 + $0xbf0] sm:$0xff]
        %v623 = vld [vmem:[%s187 + $0xbf8] sm:$0xff]
        %v624 = vld [vmem:[%s187 + $0xc00] sm:$0xff]
        %v625 = vld [vmem:[%s187 + $0xc08] sm:$0xff]
        %v626 = vld [vmem:[%s187 + $0xc10] sm:$0xff]
        %v627 = vld [vmem:[%s187 + $0xc18] sm:$0xff]
        %v628 = vld [vmem:[%s187 + $0xc20] sm:$0xff]
        %v629 = vld [vmem:[%s187 + $0xc28] sm:$0xff]
        %v630 = vld [vmem:[%s187 + $0xc30] sm:$0xff]
        %v631 = vld [vmem:[%s187 + $0xc38] sm:$0xff]
        %v632 = vld [vmem:[%s187 + $0xc40] sm:$0xff]
        %v633 = vld [vmem:[%s187 + $0xc48] sm:$0xff]
        %v634 = vld [vmem:[%s187 + $0xc50] sm:$0xff]
        %v635 = vld [vmem:[%s187 + $0xc58] sm:$0xff]
        %v636 = vld [vmem:[%s187 + $0xc60] sm:$0xff]
        %v637 = vld [vmem:[%s187 + $0xc68] sm:$0xff]
        %v638 = vld [vmem:[%s187 + $0xc70] sm:$0xff]
        %v639 = vld [vmem:[%s187 + $0xc78] sm:$0xff]
        %v640 = vld [vmem:[%s187 + $0xc80] sm:$0xff]
        %v641 = vld [vmem:[%s187 + $0xc88] sm:$0xff]
        %v642 = vld [vmem:[%s187 + $0xc90] sm:$0xff]
        %v643 = vld [vmem:[%s187 + $0xc98] sm:$0xff]
        %v644 = vld [vmem:[%s187 + $0xca0] sm:$0xff]
        %v645 = vld [vmem:[%s187 + $0xca8] sm:$0xff]
        %v646 = vld [vmem:[%s187 + $0xcb0] sm:$0xff]
        %v647 = vld [vmem:[%s187 + $0xcb8] sm:$0xff]
        %v648 = vld [vmem:[%s187 + $0xcc0] sm:$0xff]
        %v649 = vld [vmem:[%s187 + $0xcc8] sm:$0xff]
        %v650 = vld [vmem:[%s187 + $0xcd0] sm:$0xff]
        %v651 = vld [vmem:[%s187 + $0xcd8] sm:$0xff]
        %v652 = vld [vmem:[%s187 + $0xce0] sm:$0xff]
        %v653 = vld [vmem:[%s187 + $0xce8] sm:$0xff]
        %v654 = vld [vmem:[%s187 + $0xcf0] sm:$0xff]
        %v655 = vld [vmem:[%s187 + $0xcf8] sm:$0xff]
        %v656 = vld [vmem:[%s187 + $0xd00] sm:$0xff]
        %v657 = vld [vmem:[%s187 + $0xd08] sm:$0xff]
        %v658 = vld [vmem:[%s187 + $0xd10] sm:$0xff]
        %v659 = vld [vmem:[%s187 + $0xd18] sm:$0xff]
        %v660 = vld [vmem:[%s187 + $0xd20] sm:$0xff]
        %v661 = vld [vmem:[%s187 + $0xd28] sm:$0xff]
        %v662 = vld [vmem:[%s187 + $0xd30] sm:$0xff]
        %v663 = vld [vmem:[%s187 + $0xd38] sm:$0xff]
        %v664 = vld [vmem:[%s187 + $0xd40] sm:$0xff]
        %v665 = vld [vmem:[%s187 + $0xd48] sm:$0xff]
        %v666 = vld [vmem:[%s187 + $0xd50] sm:$0xff]
        %v667 = vld [vmem:[%s187 + $0xd58] sm:$0xff]
        %v668 = vld [vmem:[%s187 + $0xd60] sm:$0xff]
        %v669 = vld [vmem:[%s187 + $0xd68] sm:$0xff]
        %v670 = vld [vmem:[%s187 + $0xd70] sm:$0xff]
        %v671 = vld [vmem:[%s187 + $0xd78] sm:$0xff]
        %v672 = vld [vmem:[%s187 + $0xd80] sm:$0xff]
        %v673 = vld [vmem:[%s187 + $0xd88] sm:$0xff]
        %v674 = vld [vmem:[%s187 + $0xd90] sm:$0xff]
        %v675 = vld [vmem:[%s187 + $0xd98] sm:$0xff]
        %v676 = vld [vmem:[%s187 + $0xda0] sm:$0xff]
        %v677 = vld [vmem:[%s187 + $0xda8] sm:$0xff]
        %v678 = vld [vmem:[%s187 + $0xdb0] sm:$0xff]
        %v679 = vld [vmem:[%s187 + $0xdb8] sm:$0xff]
        %v680 = vld [vmem:[%s187 + $0xdc0] sm:$0xff]
        %v681 = vld [vmem:[%s187 + $0xdc8] sm:$0xff]
        %v682 = vld [vmem:[%s187 + $0xdd0] sm:$0xff]
        %v683 = vld [vmem:[%s187 + $0xdd8] sm:$0xff]
        %v684 = vld [vmem:[%s187 + $0xde0] sm:$0xff]
        %v685 = vld [vmem:[%s187 + $0xde8] sm:$0xff]
        %v686 = vld [vmem:[%s187 + $0xdf0] sm:$0xff]
        %v687 = vld [vmem:[%s187 + $0xdf8] sm:$0xff]
        %v688 = vld [vmem:[%s187 + $0xe00] sm:$0xff]
        %v689 = vld [vmem:[%s187 + $0xe08] sm:$0xff]
        %v690 = vld [vmem:[%s187 + $0xe10] sm:$0xff]
        %v691 = vld [vmem:[%s187 + $0xe18] sm:$0xff]
        %v692 = vld [vmem:[%s187 + $0xe20] sm:$0xff]
        %v693 = vld [vmem:[%s187 + $0xe28] sm:$0xff]
        %v694 = vld [vmem:[%s187 + $0xe30] sm:$0xff]
        %v695 = vld [vmem:[%s187 + $0xe38] sm:$0xff]
        %v696 = vld [vmem:[%s187 + $0xe40] sm:$0xff]
        %v697 = vld [vmem:[%s187 + $0xe48] sm:$0xff]
        %v698 = vld [vmem:[%s187 + $0xe50] sm:$0xff]
        %v699 = vld [vmem:[%s187 + $0xe58] sm:$0xff]
        %v700 = vld [vmem:[%s187 + $0xe60] sm:$0xff]
        %v701 = vld [vmem:[%s187 + $0xe68] sm:$0xff]
        %v702 = vld [vmem:[%s187 + $0xe70] sm:$0xff]
        %v703 = vld [vmem:[%s187 + $0xe78] sm:$0xff]
        %v704 = vld [vmem:[%s187 + $0xe80] sm:$0xff]
        %v705 = vld [vmem:[%s187 + $0xe88] sm:$0xff]
        %v706 = vld [vmem:[%s187 + $0xe90] sm:$0xff]
        %v707 = vld [vmem:[%s187 + $0xe98] sm:$0xff]
        %v708 = vld [vmem:[%s187 + $0xea0] sm:$0xff]
        %v709 = vld [vmem:[%s187 + $0xea8] sm:$0xff]
        %v710 = vld [vmem:[%s187 + $0xeb0] sm:$0xff]
        %v711 = vld [vmem:[%s187 + $0xeb8] sm:$0xff]
        %v712 = vld [vmem:[%s187 + $0xec0] sm:$0xff]
        %v713 = vld [vmem:[%s187 + $0xec8] sm:$0xff]
        %v714 = vld [vmem:[%s187 + $0xed0] sm:$0xff]
        %v715 = vld [vmem:[%s187 + $0xed8] sm:$0xff]
        %v716 = vld [vmem:[%s187 + $0xee0] sm:$0xff]
        %v717 = vld [vmem:[%s187 + $0xee8] sm:$0xff]
        %v718 = vld [vmem:[%s187 + $0xef0] sm:$0xff]
        %v719 = vld [vmem:[%s187 + $0xef8] sm:$0xff]
        %v720 = vld [vmem:[%s187 + $0xf00] sm:$0xff]
        %v721 = vld [vmem:[%s187 + $0xf08] sm:$0xff]
        %v722 = vld [vmem:[%s187 + $0xf10] sm:$0xff]
        %v723 = vld [vmem:[%s187 + $0xf18] sm:$0xff]
        %v724 = vld [vmem:[%s187 + $0xf20] sm:$0xff]
        %v725 = vld [vmem:[%s187 + $0xf28] sm:$0xff]
        %v726 = vld [vmem:[%s187 + $0xf30] sm:$0xff]
        %v727 = vld [vmem:[%s187 + $0xf38] sm:$0xff]
        %v728 = vld [vmem:[%s187 + $0xf40] sm:$0xff]
        %v729 = vld [vmem:[%s187 + $0xf48] sm:$0xff]
        %v730 = vld [vmem:[%s187 + $0xf50] sm:$0xff]
        %v731 = vld [vmem:[%s187 + $0xf58] sm:$0xff]
        %v732 = vld [vmem:[%s187 + $0xf60] sm:$0xff]
        %v733 = vld [vmem:[%s187 + $0xf68] sm:$0xff]
        %v734 = vld [vmem:[%s187 + $0xf70] sm:$0xff]
        %v735 = vld [vmem:[%s187 + $0xf78] sm:$0xff]
        %v736 = vld [vmem:[%s187 + $0xf80] sm:$0xff]
        %v737 = vld [vmem:[%s187 + $0xf88] sm:$0xff]
        %v738 = vld [vmem:[%s187 + $0xf90] sm:$0xff]
        %v739 = vld [vmem:[%s187 + $0xf98] sm:$0xff]
        %v740 = vld [vmem:[%s187 + $0xfa0] sm:$0xff]
        %v741 = vld [vmem:[%s187 + $0xfa8] sm:$0xff]
        %v742 = vld [vmem:[%s187 + $0xfb0] sm:$0xff]
        %v743 = vld [vmem:[%s187 + $0xfb8] sm:$0xff]
        %v744 = vld [vmem:[%s187 + $0xfc0] sm:$0xff]
        %v745 = vld [vmem:[%s187 + $0xfc8] sm:$0xff]
        %v746 = vld [vmem:[%s187 + $0xfd0] sm:$0xff]
        %v747 = vld [vmem:[%s187 + $0xfd8] sm:$0xff]
        %v748 = vld [vmem:[%s187 + $0xfe0] sm:$0xff]
        %v749 = vld [vmem:[%s187 + $0xfe8] sm:$0xff]
        %v750 = vld [vmem:[%s187 + $0xff0] sm:$0xff]
        %v751 = vld [vmem:[%s187 + $0xff8] sm:$0xff]
        %v752 = vld [vmem:[%s187 + $0x1000] sm:$0xff]
        %v753 = vld [vmem:[%s187 + $0x1008] sm:$0xff]
        %v754 = vld [vmem:[%s187 + $0x1010] sm:$0xff]
        %v755 = vld [vmem:[%s187 + $0x1018] sm:$0xff]
        %v756 = vld [vmem:[%s187 + $0x1020] sm:$0xff]
        %v757 = vld [vmem:[%s187 + $0x1028] sm:$0xff]
        %v758 = vld [vmem:[%s187 + $0x1030] sm:$0xff]
        %v759 = vld [vmem:[%s187 + $0x1038] sm:$0xff]
        %v760 = vld [vmem:[%s187 + $0x1040] sm:$0xff]
        %v761 = vld [vmem:[%s187 + $0x1048] sm:$0xff]
        %v762 = vld [vmem:[%s187 + $0x1050] sm:$0xff]
        %v763 = vld [vmem:[%s187 + $0x1058] sm:$0xff]
        %v764 = vld [vmem:[%s187 + $0x1060] sm:$0xff]
        %v765 = vld [vmem:[%s187 + $0x1068] sm:$0xff]
        %v766 = vld [vmem:[%s187 + $0x1070] sm:$0xff]
        %v767 = vld [vmem:[%s187 + $0x1078] sm:$0xff]
        %v768 = vld [vmem:[%s187 + $0x1080] sm:$0xff]
        %v769 = vld [vmem:[%s187 + $0x1088] sm:$0xff]
        %v770 = vld [vmem:[%s187 + $0x1090] sm:$0xff]
        %v771 = vld [vmem:[%s187 + $0x1098] sm:$0xff]
        %v772 = vld [vmem:[%s187 + $0x10a0] sm:$0xff]
        %v773 = vld [vmem:[%s187 + $0x10a8] sm:$0xff]
        %v774 = vld [vmem:[%s187 + $0x10b0] sm:$0xff]
        %v775 = vld [vmem:[%s187 + $0x10b8] sm:$0xff]
        %v776 = vld [vmem:[%s187 + $0x10c0] sm:$0xff]
        %v777 = vld [vmem:[%s187 + $0x10c8] sm:$0xff]
        %v778 = vld [vmem:[%s187 + $0x10d0] sm:$0xff]
        %v779 = vld [vmem:[%s187 + $0x10d8] sm:$0xff]
        %v780 = vld [vmem:[%s187 + $0x10e0] sm:$0xff]
        %v781 = vld [vmem:[%s187 + $0x10e8] sm:$0xff]
        %v782 = vld [vmem:[%s187 + $0x10f0] sm:$0xff]
        %v783 = vld [vmem:[%s187 + $0x10f8] sm:$0xff]
        %v784 = vld [vmem:[%s187 + $0x1100] sm:$0xff]
        %v785 = vld [vmem:[%s187 + $0x1108] sm:$0xff]
        %v786 = vld [vmem:[%s187 + $0x1110] sm:$0xff]
        %v787 = vld [vmem:[%s187 + $0x1118] sm:$0xff]
        %v788 = vld [vmem:[%s187 + $0x1120] sm:$0xff]
        %v789 = vld [vmem:[%s187 + $0x1128] sm:$0xff]
        %v790 = vld [vmem:[%s187 + $0x1130] sm:$0xff]
        %v791 = vld [vmem:[%s187 + $0x1138] sm:$0xff]
        %v792 = vld [vmem:[%s187 + $0x1140] sm:$0xff]
        %v793 = vld [vmem:[%s187 + $0x1148] sm:$0xff]
        %v794 = vld [vmem:[%s187 + $0x1150] sm:$0xff]
        %v795 = vld [vmem:[%s187 + $0x1158] sm:$0xff]
        %v796 = vld [vmem:[%s187 + $0x1160] sm:$0xff]
        %v797 = vld [vmem:[%s187 + $0x1168] sm:$0xff]
        %v798 = vld [vmem:[%s187 + $0x1170] sm:$0xff]
        %v799 = vld [vmem:[%s187 + $0x1178] sm:$0xff]
        %v800 = vld [vmem:[%s187 + $0x1180] sm:$0xff]
        %v801 = vld [vmem:[%s187 + $0x1188] sm:$0xff]
        %v802 = vld [vmem:[%s187 + $0x1190] sm:$0xff]
        %v803 = vld [vmem:[%s187 + $0x1198] sm:$0xff]
        %v804 = vld [vmem:[%s187 + $0x11a0] sm:$0xff]
        %v805 = vld [vmem:[%s187 + $0x11a8] sm:$0xff]
        %v806 = vld [vmem:[%s187 + $0x11b0] sm:$0xff]
        %v807 = vld [vmem:[%s187 + $0x11b8] sm:$0xff]
        %v808 = vld [vmem:[%s187 + $0x11c0] sm:$0xff]
        %v809 = vld [vmem:[%s187 + $0x11c8] sm:$0xff]
        %v810 = vld [vmem:[%s187 + $0x11d0] sm:$0xff]
        %v811 = vld [vmem:[%s187 + $0x11d8] sm:$0xff]
        %v812 = vld [vmem:[%s187 + $0x11e0] sm:$0xff]
        %v813 = vld [vmem:[%s187 + $0x11e8] sm:$0xff]
        %v814 = vld [vmem:[%s187 + $0x11f0] sm:$0xff]
        %v815 = vld [vmem:[%s187 + $0x11f8] sm:$0xff]
        %v816 = vld [vmem:[%s187 + $0x1200] sm:$0xff]
        %v817 = vld [vmem:[%s187 + $0x1208] sm:$0xff]
        %v818 = vld [vmem:[%s187 + $0x1210] sm:$0xff]
        %v819 = vld [vmem:[%s187 + $0x1218] sm:$0xff]
        %v820 = vld [vmem:[%s187 + $0x1220] sm:$0xff]
        %v821 = vld [vmem:[%s187 + $0x1228] sm:$0xff]
        %v822 = vld [vmem:[%s187 + $0x1230] sm:$0xff]
        %v823 = vld [vmem:[%s187 + $0x1238] sm:$0xff]
        %v824 = vld [vmem:[%s187 + $0x1240] sm:$0xff]
        %v825 = vld [vmem:[%s187 + $0x1248] sm:$0xff]
        %v826 = vld [vmem:[%s187 + $0x1250] sm:$0xff]
        %v827 = vld [vmem:[%s187 + $0x1258] sm:$0xff]
        %v828 = vld [vmem:[%s187 + $0x1260] sm:$0xff]
        %v829 = vld [vmem:[%s187 + $0x1268] sm:$0xff]
        %v830 = vld [vmem:[%s187 + $0x1270] sm:$0xff]
        %v831 = vld [vmem:[%s187 + $0x1278] sm:$0xff]
        %v832 = vld [vmem:[%s187 + $0x1280] sm:$0xff]
        %v833 = vld [vmem:[%s187 + $0x1288] sm:$0xff]
        %v834 = vld [vmem:[%s187 + $0x1290] sm:$0xff]
        %v835 = vld [vmem:[%s187 + $0x1298] sm:$0xff]
        %v836 = vld [vmem:[%s187 + $0x12a0] sm:$0xff]
        %v837 = vld [vmem:[%s187 + $0x12a8] sm:$0xff]
        %v838 = vld [vmem:[%s187 + $0x12b0] sm:$0xff]
        %v839 = vld [vmem:[%s187 + $0x12b8] sm:$0xff]
        %v840 = vld [vmem:[%s187 + $0x12c0] sm:$0xff]
        %v841 = vld [vmem:[%s187 + $0x12c8] sm:$0xff]
        %v842 = vld [vmem:[%s187 + $0x12d0] sm:$0xff]
        %v843 = vld [vmem:[%s187 + $0x12d8] sm:$0xff]
        %v844 = vld [vmem:[%s187 + $0x12e0] sm:$0xff]
        %v845 = vld [vmem:[%s187 + $0x12e8] sm:$0xff]
        %v846 = vld [vmem:[%s187 + $0x12f0] sm:$0xff]
        %v847 = vld [vmem:[%s187 + $0x12f8] sm:$0xff]
        %v848 = vld [vmem:[%s187 + $0x1300] sm:$0xff]
        %v849 = vld [vmem:[%s187 + $0x1308] sm:$0xff]
        %v850 = vld [vmem:[%s187 + $0x1310] sm:$0xff]
        %v851 = vld [vmem:[%s187 + $0x1318] sm:$0xff]
        %v852 = vld [vmem:[%s187 + $0x1320] sm:$0xff]
        %v853 = vld [vmem:[%s187 + $0x1328] sm:$0xff]
        %v854 = vld [vmem:[%s187 + $0x1330] sm:$0xff]
        %v855 = vld [vmem:[%s187 + $0x1338] sm:$0xff]
        %v856 = vld [vmem:[%s187 + $0x1340] sm:$0xff]
        %v857 = vld [vmem:[%s187 + $0x1348] sm:$0xff]
        %v858 = vld [vmem:[%s187 + $0x1350] sm:$0xff]
        %v859 = vld [vmem:[%s187 + $0x1358] sm:$0xff]
        %v860 = vld [vmem:[%s187 + $0x1360] sm:$0xff]
        %v861 = vld [vmem:[%s187 + $0x1368] sm:$0xff]
        %v862 = vld [vmem:[%s187 + $0x1370] sm:$0xff]
        %v863 = vld [vmem:[%s187 + $0x1378] sm:$0xff]
        %v864 = vld [vmem:[%s187 + $0x1380] sm:$0xff]
        %v865 = vld [vmem:[%s187 + $0x1388] sm:$0xff]
        %v866 = vld [vmem:[%s187 + $0x1390] sm:$0xff]
        %v867 = vld [vmem:[%s187 + $0x1398] sm:$0xff]
        %v868 = vld [vmem:[%s187 + $0x13a0] sm:$0xff]
        %v869 = vld [vmem:[%s187 + $0x13a8] sm:$0xff]
        %v870 = vld [vmem:[%s187 + $0x13b0] sm:$0xff]
        %v871 = vld [vmem:[%s187 + $0x13b8] sm:$0xff]
        %v872 = vld [vmem:[%s187 + $0x13c0] sm:$0xff]
        %v873 = vld [vmem:[%s187 + $0x13c8] sm:$0xff]
        %v874 = vld [vmem:[%s187 + $0x13d0] sm:$0xff]
        %v875 = vld [vmem:[%s187 + $0x13d8] sm:$0xff]
        %v876 = vld [vmem:[%s187 + $0x13e0] sm:$0xff]
        %v877 = vld [vmem:[%s187 + $0x13e8] sm:$0xff]
        %v878 = vld [vmem:[%s187 + $0x13f0] sm:$0xff]
        %v879 = vld [vmem:[%s187 + $0x13f8] sm:$0xff]
        %v880 = vld [vmem:[%s187 + $0x1400] sm:$0xff]
        %v881 = vld [vmem:[%s187 + $0x1408] sm:$0xff]
        %v882 = vld [vmem:[%s187 + $0x1410] sm:$0xff]
        %v883 = vld [vmem:[%s187 + $0x1418] sm:$0xff]
        %v884 = vld [vmem:[%s187 + $0x1420] sm:$0xff]
        %v885 = vld [vmem:[%s187 + $0x1428] sm:$0xff]
        %v886 = vld [vmem:[%s187 + $0x1430] sm:$0xff]
        %v887 = vld [vmem:[%s187 + $0x1438] sm:$0xff]
        %v888 = vld [vmem:[%s187 + $0x1440] sm:$0xff]
        %v889 = vld [vmem:[%s187 + $0x1448] sm:$0xff]
        %v890 = vld [vmem:[%s187 + $0x1450] sm:$0xff]
        %v891 = vld [vmem:[%s187 + $0x1458] sm:$0xff]
        %v892 = vld [vmem:[%s187 + $0x1460] sm:$0xff]
        %v893 = vld [vmem:[%s187 + $0x1468] sm:$0xff]
        %v894 = vld [vmem:[%s187 + $0x1470] sm:$0xff]
        %v895 = vld [vmem:[%s187 + $0x1478] sm:$0xff]
        %v896 = vld [vmem:[%s187 + $0x1480] sm:$0xff]
        %v897 = vld [vmem:[%s187 + $0x1488] sm:$0xff]
        %v898 = vld [vmem:[%s187 + $0x1490] sm:$0xff]
        %v899 = vld [vmem:[%s187 + $0x1498] sm:$0xff]
        %v900 = vld [vmem:[%s187 + $0x14a0] sm:$0xff]
        %v901 = vld [vmem:[%s187 + $0x14a8] sm:$0xff]
        %v902 = vld [vmem:[%s187 + $0x14b0] sm:$0xff]
        %v903 = vld [vmem:[%s187 + $0x14b8] sm:$0xff]
        %v904 = vld [vmem:[%s187 + $0x14c0] sm:$0xff]
        %v905 = vld [vmem:[%s187 + $0x14c8] sm:$0xff]
        %v906 = vld [vmem:[%s187 + $0x14d0] sm:$0xff]
        %v907 = vld [vmem:[%s187 + $0x14d8] sm:$0xff]
        %v908 = vld [vmem:[%s187 + $0x14e0] sm:$0xff]
        %v909 = vld [vmem:[%s187 + $0x14e8] sm:$0xff]
        %v910 = vld [vmem:[%s187 + $0x14f0] sm:$0xff]
        %v911 = vld [vmem:[%s187 + $0x14f8] sm:$0xff]
        %v912 = vld [vmem:[%s187 + $0x1500] sm:$0xff]
        %v913 = vld [vmem:[%s187 + $0x1508] sm:$0xff]
        %v914 = vld [vmem:[%s187 + $0x1510] sm:$0xff]
        %v915 = vld [vmem:[%s187 + $0x1518] sm:$0xff]
        %v916 = vld [vmem:[%s187 + $0x1520] sm:$0xff]
        %v917 = vld [vmem:[%s187 + $0x1528] sm:$0xff]
        %v918 = vld [vmem:[%s187 + $0x1530] sm:$0xff]
        %v919 = vld [vmem:[%s187 + $0x1538] sm:$0xff]
        %v920 = vld [vmem:[%s187 + $0x1540] sm:$0xff]
        %v921 = vld [vmem:[%s187 + $0x1548] sm:$0xff]
        %v922 = vld [vmem:[%s187 + $0x1550] sm:$0xff]
        %v923 = vld [vmem:[%s187 + $0x1558] sm:$0xff]
        %v924 = vld [vmem:[%s187 + $0x1560] sm:$0xff]
        %v925 = vld [vmem:[%s187 + $0x1568] sm:$0xff]
        %v926 = vld [vmem:[%s187 + $0x1570] sm:$0xff]
        %v927 = vld [vmem:[%s187 + $0x1578] sm:$0xff]
        %v928 = vld [vmem:[%s187 + $0x1580] sm:$0xff]
        %v929 = vld [vmem:[%s187 + $0x1588] sm:$0xff]
        %v930 = vld [vmem:[%s187 + $0x1590] sm:$0xff]
        %v931 = vld [vmem:[%s187 + $0x1598] sm:$0xff]
        %v932 = vld [vmem:[%s187 + $0x15a0] sm:$0xff]
        %v933 = vld [vmem:[%s187 + $0x15a8] sm:$0xff]
        %v934 = vld [vmem:[%s187 + $0x15b0] sm:$0xff]
        %v935 = vld [vmem:[%s187 + $0x15b8] sm:$0xff]
        %v936 = vld [vmem:[%s187 + $0x15c0] sm:$0xff]
        %v937 = vld [vmem:[%s187 + $0x15c8] sm:$0xff]
        %v938 = vld [vmem:[%s187 + $0x15d0] sm:$0xff]
        %v939 = vld [vmem:[%s187 + $0x15d8] sm:$0xff]
        %v940 = vld [vmem:[%s187 + $0x15e0] sm:$0xff]
        %v941 = vld [vmem:[%s187 + $0x15e8] sm:$0xff]
        %v942 = vld [vmem:[%s187 + $0x15f0] sm:$0xff]
        %v943 = vld [vmem:[%s187 + $0x15f8] sm:$0xff]
        %v944 = vld [vmem:[%s187 + $0x1600] sm:$0xff]
        %v945 = vld [vmem:[%s187 + $0x1608] sm:$0xff]
        %v946 = vld [vmem:[%s187 + $0x1610] sm:$0xff]
        %v947 = vld [vmem:[%s187 + $0x1618] sm:$0xff]
        %v948 = vld [vmem:[%s187 + $0x1620] sm:$0xff]
        %v949 = vld [vmem:[%s187 + $0x1628] sm:$0xff]
        %v950 = vld [vmem:[%s187 + $0x1630] sm:$0xff]
        %v951 = vld [vmem:[%s187 + $0x1638] sm:$0xff]
        %v952 = vld [vmem:[%s187 + $0x1640] sm:$0xff]
        %v953 = vld [vmem:[%s187 + $0x1648] sm:$0xff]
        %v954 = vld [vmem:[%s187 + $0x1650] sm:$0xff]
        %v955 = vld [vmem:[%s187 + $0x1658] sm:$0xff]
        %v956 = vld [vmem:[%s187 + $0x1660] sm:$0xff]
        %v957 = vld [vmem:[%s187 + $0x1668] sm:$0xff]
        %v958 = vld [vmem:[%s187 + $0x1670] sm:$0xff]
        %v959 = vld [vmem:[%s187 + $0x1678] sm:$0xff]
        %v960 = vld [vmem:[%s187 + $0x1680] sm:$0xff]
        %v961 = vld [vmem:[%s187 + $0x1688] sm:$0xff]
        %v962 = vld [vmem:[%s187 + $0x1690] sm:$0xff]
        %v963 = vld [vmem:[%s187 + $0x1698] sm:$0xff]
        %v964 = vld [vmem:[%s187 + $0x16a0] sm:$0xff]
        %v965 = vld [vmem:[%s187 + $0x16a8] sm:$0xff]
        %v966 = vld [vmem:[%s187 + $0x16b0] sm:$0xff]
        %v967 = vld [vmem:[%s187 + $0x16b8] sm:$0xff]
        %v968 = vld [vmem:[%s187 + $0x16c0] sm:$0xff]
        %v969 = vld [vmem:[%s187 + $0x16c8] sm:$0xff]
        %v970 = vld [vmem:[%s187 + $0x16d0] sm:$0xff]
        %v971 = vld [vmem:[%s187 + $0x16d8] sm:$0xff]
        %v972 = vld [vmem:[%s187 + $0x16e0] sm:$0xff]
        %v973 = vld [vmem:[%s187 + $0x16e8] sm:$0xff]
        %v974 = vld [vmem:[%s187 + $0x16f0] sm:$0xff]
        %v975 = vld [vmem:[%s187 + $0x16f8] sm:$0xff]
        %v976 = vld [vmem:[%s187 + $0x1700] sm:$0xff]
        %v977 = vld [vmem:[%s187 + $0x1708] sm:$0xff]
        %v978 = vld [vmem:[%s187 + $0x1710] sm:$0xff]
        %v979 = vld [vmem:[%s187 + $0x1718] sm:$0xff]
        %v980 = vld [vmem:[%s187 + $0x1720] sm:$0xff]
        %v981 = vld [vmem:[%s187 + $0x1728] sm:$0xff]
        %v982 = vld [vmem:[%s187 + $0x1730] sm:$0xff]
        %v983 = vld [vmem:[%s187 + $0x1738] sm:$0xff]
        %v984 = vld [vmem:[%s187 + $0x1740] sm:$0xff]
        %v985 = vld [vmem:[%s187 + $0x1748] sm:$0xff]
        %v986 = vld [vmem:[%s187 + $0x1750] sm:$0xff]
        %v987 = vld [vmem:[%s187 + $0x1758] sm:$0xff]
        %v988 = vld [vmem:[%s187 + $0x1760] sm:$0xff]
        %v989 = vld [vmem:[%s187 + $0x1768] sm:$0xff]
        %v990 = vld [vmem:[%s187 + $0x1770] sm:$0xff]
        %v991 = vld [vmem:[%s187 + $0x1778] sm:$0xff]
        %v992 = vld [vmem:[%s187 + $0x1780] sm:$0xff]
        %v993 = vld [vmem:[%s187 + $0x1788] sm:$0xff]
        %v994 = vld [vmem:[%s187 + $0x1790] sm:$0xff]
        %v995 = vld [vmem:[%s187 + $0x1798] sm:$0xff]
        %v996 = vld [vmem:[%s187 + $0x17a0] sm:$0xff]
        %v997 = vld [vmem:[%s187 + $0x17a8] sm:$0xff]
        %v998 = vld [vmem:[%s187 + $0x17b0] sm:$0xff]
        %v999 = vld [vmem:[%s187 + $0x17b8] sm:$0xff]
        %v1000 = vld [vmem:[%s187 + $0x17c0] sm:$0xff]
        %v1001 = vld [vmem:[%s187 + $0x17c8] sm:$0xff]
        %v1002 = vld [vmem:[%s187 + $0x17d0] sm:$0xff]
        %v1003 = vld [vmem:[%s187 + $0x17d8] sm:$0xff]
        %v1004 = vld [vmem:[%s187 + $0x17e0] sm:$0xff]
        %v1005 = vld [vmem:[%s187 + $0x17e8] sm:$0xff]
        %v1006 = vld [vmem:[%s187 + $0x17f0] sm:$0xff]
        %v1007 = vld [vmem:[%s187 + $0x17f8] sm:$0xff]
        %v1008 = vld [vmem:[%s187 + $0x1800] sm:$0xff]
        %v1009 = vld [vmem:[%s187 + $0x1808] sm:$0xff]
        %v1010 = vld [vmem:[%s187 + $0x1810] sm:$0xff]
        %v1011 = vld [vmem:[%s187 + $0x1818] sm:$0xff]
        %v1012 = vld [vmem:[%s187 + $0x1820] sm:$0xff]
        %v1013 = vld [vmem:[%s187 + $0x1828] sm:$0xff]
        %v1014 = vld [vmem:[%s187 + $0x1830] sm:$0xff]
        %v1015 = vld [vmem:[%s187 + $0x1838] sm:$0xff]
        %v1016 = vld [vmem:[%s187 + $0x1840] sm:$0xff]
        %v1017 = vld [vmem:[%s187 + $0x1848] sm:$0xff]
        %v1018 = vld [vmem:[%s187 + $0x1850] sm:$0xff]
        %v1019 = vld [vmem:[%s187 + $0x1858] sm:$0xff]
        %v1020 = vld [vmem:[%s187 + $0x1860] sm:$0xff]
        %v1021 = vld [vmem:[%s187 + $0x1868] sm:$0xff]
        %v1022 = vld [vmem:[%s187 + $0x1870] sm:$0xff]
        %v1023 = vld [vmem:[%s187 + $0x1878] sm:$0xff]
        %v1024 = vld [vmem:[%s187 + $0x1880] sm:$0xff]
        %v1025 = vld [vmem:[%s187 + $0x1888] sm:$0xff]
        %v1026 = vld [vmem:[%s187 + $0x1890] sm:$0xff]
        %v1027 = vld [vmem:[%s187 + $0x1898] sm:$0xff]
        %v1028 = vld [vmem:[%s187 + $0x18a0] sm:$0xff]
        %v1029 = vld [vmem:[%s187 + $0x18a8] sm:$0xff]
        %v1030 = vld [vmem:[%s187 + $0x18b0] sm:$0xff]
        %v1031 = vld [vmem:[%s187 + $0x18b8] sm:$0xff]
        %v1032 = vld [vmem:[%s187 + $0x18c0] sm:$0xff]
        %v1033 = vld [vmem:[%s187 + $0x18c8] sm:$0xff]
        %v1034 = vld [vmem:[%s187 + $0x18d0] sm:$0xff]
        %v1035 = vld [vmem:[%s187 + $0x18d8] sm:$0xff]
        %v1036 = vld [vmem:[%s187 + $0x18e0] sm:$0xff]
        %v1037 = vld [vmem:[%s187 + $0x18e8] sm:$0xff]
        %v1038 = vld [vmem:[%s187 + $0x18f0] sm:$0xff]
        %v1039 = vld [vmem:[%s187 + $0x18f8] sm:$0xff]
        %v1040 = vld [vmem:[%s187 + $0x1900] sm:$0xff]
        %v1041 = vld [vmem:[%s187 + $0x1908] sm:$0xff]
        %v1042 = vld [vmem:[%s187 + $0x1910] sm:$0xff]
        %v1043 = vld [vmem:[%s187 + $0x1918] sm:$0xff]
        %v1044 = vld [vmem:[%s187 + $0x1920] sm:$0xff]
        %v1045 = vld [vmem:[%s187 + $0x1928] sm:$0xff]
        %v1046 = vld [vmem:[%s187 + $0x1930] sm:$0xff]
        %v1047 = vld [vmem:[%s187 + $0x1938] sm:$0xff]
        %v1048 = vld [vmem:[%s187 + $0x1940] sm:$0xff]
        %v1049 = vld [vmem:[%s187 + $0x1948] sm:$0xff]
        %v1050 = vld [vmem:[%s187 + $0x1950] sm:$0xff]
        %v1051 = vld [vmem:[%s187 + $0x1958] sm:$0xff]
        %v1052 = vld [vmem:[%s187 + $0x1960] sm:$0xff]
        %v1053 = vld [vmem:[%s187 + $0x1968] sm:$0xff]
        %v1054 = vld [vmem:[%s187 + $0x1970] sm:$0xff]
        %v1055 = vld [vmem:[%s187 + $0x1978] sm:$0xff]
        %v1056 = vld [vmem:[%s187 + $0x1980] sm:$0xff]
        %v1057 = vld [vmem:[%s187 + $0x1988] sm:$0xff]
        %v1058 = vld [vmem:[%s187 + $0x1990] sm:$0xff]
        %v1059 = vld [vmem:[%s187 + $0x1998] sm:$0xff]
        %v1060 = vld [vmem:[%s187 + $0x19a0] sm:$0xff]
        %v1061 = vld [vmem:[%s187 + $0x19a8] sm:$0xff]
        %v1062 = vld [vmem:[%s187 + $0x19b0] sm:$0xff]
        %v1063 = vld [vmem:[%s187 + $0x19b8] sm:$0xff]
        %v1064 = vld [vmem:[%s187 + $0x19c0] sm:$0xff]
        %v1065 = vld [vmem:[%s187 + $0x19c8] sm:$0xff]
        %v1066 = vld [vmem:[%s187 + $0x19d0] sm:$0xff]
        %v1067 = vld [vmem:[%s187 + $0x19d8] sm:$0xff]
        %v1068 = vld [vmem:[%s187 + $0x19e0] sm:$0xff]
        %v1069 = vld [vmem:[%s187 + $0x19e8] sm:$0xff]
        %v1070 = vld [vmem:[%s187 + $0x19f0] sm:$0xff]
        %v1071 = vld [vmem:[%s187 + $0x19f8] sm:$0xff]
        %v1072 = vld [vmem:[%s187 + $0x1a00] sm:$0xff]
        %v1073 = vld [vmem:[%s187 + $0x1a08] sm:$0xff]
        %v1074 = vld [vmem:[%s187 + $0x1a10] sm:$0xff]
        %v1075 = vld [vmem:[%s187 + $0x1a18] sm:$0xff]
        %v1076 = vld [vmem:[%s187 + $0x1a20] sm:$0xff]
        %v1077 = vld [vmem:[%s187 + $0x1a28] sm:$0xff]
        %v1078 = vld [vmem:[%s187 + $0x1a30] sm:$0xff]
        %v1079 = vld [vmem:[%s187 + $0x1a38] sm:$0xff]
        %v1080 = vld [vmem:[%s187 + $0x1a40] sm:$0xff]
        %v1081 = vld [vmem:[%s187 + $0x1a48] sm:$0xff]
        %v1082 = vld [vmem:[%s187 + $0x1a50] sm:$0xff]
        %v1083 = vld [vmem:[%s187 + $0x1a58] sm:$0xff]
        %v1084 = vld [vmem:[%s187 + $0x1a60] sm:$0xff]
        %v1085 = vld [vmem:[%s187 + $0x1a68] sm:$0xff]
        %v1086 = vld [vmem:[%s187 + $0x1a70] sm:$0xff]
        %v1087 = vld [vmem:[%s187 + $0x1a78] sm:$0xff]
        %v1088 = vld [vmem:[%s187 + $0x1a80] sm:$0xff]
        %v1089 = vld [vmem:[%s187 + $0x1a88] sm:$0xff]
        %v1090 = vld [vmem:[%s187 + $0x1a90] sm:$0xff]
        %v1091 = vld [vmem:[%s187 + $0x1a98] sm:$0xff]
        %v1092 = vld [vmem:[%s187 + $0x1aa0] sm:$0xff]
        %v1093 = vld [vmem:[%s187 + $0x1aa8] sm:$0xff]
        %v1094 = vld [vmem:[%s187 + $0x1ab0] sm:$0xff]
        %v1095 = vld [vmem:[%s187 + $0x1ab8] sm:$0xff]
        %v1096 = vld [vmem:[%s187 + $0x1ac0] sm:$0xff]
        %v1097 = vld [vmem:[%s187 + $0x1ac8] sm:$0xff]
        %v1098 = vld [vmem:[%s187 + $0x1ad0] sm:$0xff]
        %v1099 = vld [vmem:[%s187 + $0x1ad8] sm:$0xff]
        %v1100 = vld [vmem:[%s187 + $0x1ae0] sm:$0xff]
        %v1101 = vld [vmem:[%s187 + $0x1ae8] sm:$0xff]
        %v1102 = vld [vmem:[%s187 + $0x1af0] sm:$0xff]
        %v1103 = vld [vmem:[%s187 + $0x1af8] sm:$0xff]
        %v1104 = vld [vmem:[%s187 + $0x1b00] sm:$0xff]
        %v1105 = vld [vmem:[%s187 + $0x1b08] sm:$0xff]
        %v1106 = vld [vmem:[%s187 + $0x1b10] sm:$0xff]
        %v1107 = vld [vmem:[%s187 + $0x1b18] sm:$0xff]
        %v1108 = vld [vmem:[%s187 + $0x1b20] sm:$0xff]
        %v1109 = vld [vmem:[%s187 + $0x1b28] sm:$0xff]
        %v1110 = vld [vmem:[%s187 + $0x1b30] sm:$0xff]
        %v1111 = vld [vmem:[%s187 + $0x1b38] sm:$0xff]
        %v1112 = vld [vmem:[%s187 + $0x1b40] sm:$0xff]
        %v1113 = vld [vmem:[%s187 + $0x1b48] sm:$0xff]
        %v1114 = vld [vmem:[%s187 + $0x1b50] sm:$0xff]
        %v1115 = vld [vmem:[%s187 + $0x1b58] sm:$0xff]
        %v1116 = vld [vmem:[%s187 + $0x1b60] sm:$0xff]
        %v1117 = vld [vmem:[%s187 + $0x1b68] sm:$0xff]
        %v1118 = vld [vmem:[%s187 + $0x1b70] sm:$0xff]
        %v1119 = vld [vmem:[%s187 + $0x1b78] sm:$0xff]
        %v1120 = vld [vmem:[%s187 + $0x1b80] sm:$0xff]
        %v1121 = vld [vmem:[%s187 + $0x1b88] sm:$0xff]
        %v1122 = vld [vmem:[%s187 + $0x1b90] sm:$0xff]
        %v1123 = vld [vmem:[%s187 + $0x1b98] sm:$0xff]
        %v1124 = vld [vmem:[%s187 + $0x1ba0] sm:$0xff]
        %v1125 = vld [vmem:[%s187 + $0x1ba8] sm:$0xff]
        %v1126 = vld [vmem:[%s187 + $0x1bb0] sm:$0xff]
        %v1127 = vld [vmem:[%s187 + $0x1bb8] sm:$0xff]
        %v1128 = vld [vmem:[%s187 + $0x1bc0] sm:$0xff]
        %v1129 = vld [vmem:[%s187 + $0x1bc8] sm:$0xff]
        %v1130 = vld [vmem:[%s187 + $0x1bd0] sm:$0xff]
        %v1131 = vld [vmem:[%s187 + $0x1bd8] sm:$0xff]
        %v1132 = vld [vmem:[%s187 + $0x1be0] sm:$0xff]
        %v1133 = vld [vmem:[%s187 + $0x1be8] sm:$0xff]
        %v1134 = vld [vmem:[%s187 + $0x1bf0] sm:$0xff]
        %v1135 = vld [vmem:[%s187 + $0x1bf8] sm:$0xff]
        %v1136 = vld [vmem:[%s196] sm:$0xff]
        %v1138 = vlaneseq
        %v1139 = vshrl.u32 %v1138, 7
        %v1140 = vsub.s32 0, %v1139
        %v1141 = vrot.slane %v1136, %v1140
        %v1142 = vlaneseq
        %v1143 = vshrl.u32 %v1142, 7
        %v1144 = vsub.s32 1, %v1143
        %v1145 = vrot.slane %v1136, %v1144
        %v1146 = vlaneseq
        %v1147 = vshrl.u32 %v1146, 7
        %v1148 = vsub.s32 2, %v1147
        %v1149 = vrot.slane %v1136, %v1148
        %v1150 = vlaneseq
        %v1151 = vshrl.u32 %v1150, 7
        %v1152 = vsub.s32 3, %v1151
        %v1153 = vrot.slane %v1136, %v1152
        %v1154 = vlaneseq
        %v1155 = vshrl.u32 %v1154, 7
        %v1156 = vsub.s32 4, %v1155
        %v1157 = vrot.slane %v1136, %v1156
        %v1158 = vlaneseq
        %v1159 = vshrl.u32 %v1158, 7
        %v1160 = vsub.s32 5, %v1159
        %v1161 = vrot.slane %v1136, %v1160
        %v1162 = vlaneseq
        %v1163 = vshrl.u32 %v1162, 7
        %v1164 = vsub.s32 6, %v1163
        %v1165 = vrot.slane %v1136, %v1164
        %1173 = vmatprep.subr.mxu0 %v346
        %1174 = vmatpush1.msra.mxu0 %v345
        %1175 = vmatprep.subr.mxu0 %v339
        %1176 = vmatpush1.msra.mxu0 %v338
        %1177 = vmatprep.subr.mxu0 %v332
        %1178 = vmatpush1.msra.mxu0 %v331
        %1179 = vmatprep.subr.mxu0 %v325
        %1180 = vmatpush1.msra.mxu0 %v324
        %1181 = vmatprep.subr.mxu0 %v318
        %1182 = vmatpush1.msra.mxu0 %v317
        %1183 = vmatprep.subr.mxu0 %v311
        %1184 = vmatpush1.msra.mxu0 %v310
        %1185 = vmatprep.subr.mxu0 %v304
        %1186 = vmatpush1.msra.mxu0 %v303
        %1187 = vmatprep.subr.mxu0 %v297
        %1188 = vmatpush1.msra.mxu0 %v296
        %1189 = vmatprep.subr.mxu0 %v290
        %1190 = vmatpush1.msra.mxu0 %v289
        %1191 = vmatprep.subr.mxu0 %v283
        %1192 = vmatpush1.msra.mxu0 %v282
        %1193 = vmatprep.subr.mxu0 %v276
        %1194 = vmatpush1.msra.mxu0 %v275
        %1195 = vmatprep.subr.mxu0 %v269
        %1196 = vmatpush1.msra.mxu0 %v268
        %1197 = vmatprep.subr.mxu0 %v262
        %1198 = vmatpush1.msra.mxu0 %v261
        %1199 = vmatprep.subr.mxu0 %v255
        %1200 = vmatpush1.msra.mxu0 %v254
        %1201 = vmatprep.subr.mxu0 %v248
        %1202 = vmatpush1.msra.mxu0 %v247
        %1203 = vmatprep.subr.mxu0 %v241
        %1204 = vmatpush1.msra.mxu0 %v240
        %1205 = vmatprep.subr.mxu0 %v458
        %1206 = vmatpush2.msra.mxu0 %v457
        %1207 = vmatprep.subr.mxu0 %v451
        %1208 = vmatpush2.msra.mxu0 %v450
        %1209 = vmatprep.subr.mxu0 %v444
        %1210 = vmatpush2.msra.mxu0 %v443
        %1211 = vmatprep.subr.mxu0 %v437
        %1212 = vmatpush2.msra.mxu0 %v436
        %1213 = vmatprep.subr.mxu0 %v430
        %1214 = vmatpush2.msra.mxu0 %v429
        %1215 = vmatprep.subr.mxu0 %v423
        %1216 = vmatpush2.msra.mxu0 %v422
        %1217 = vmatprep.subr.mxu0 %v416
        %1218 = vmatpush2.msra.mxu0 %v415
        %1219 = vmatprep.subr.mxu0 %v409
        %1220 = vmatpush2.msra.mxu0 %v408
        %1221 = vmatprep.subr.mxu0 %v402
        %1222 = vmatpush2.msra.mxu0 %v401
        %1223 = vmatprep.subr.mxu0 %v395
        %1224 = vmatpush2.msra.mxu0 %v394
        %1225 = vmatprep.subr.mxu0 %v388
        %1226 = vmatpush2.msra.mxu0 %v387
        %1227 = vmatprep.subr.mxu0 %v381
        %1228 = vmatpush2.msra.mxu0 %v380
        %1229 = vmatprep.subr.mxu0 %v374
        %1230 = vmatpush2.msra.mxu0 %v373
        %1231 = vmatprep.subr.mxu0 %v367
        %1232 = vmatpush2.msra.mxu0 %v366
        %1233 = vmatprep.subr.mxu0 %v360
        %1234 = vmatpush2.msra.mxu0 %v359
        %1235 = vmatprep.subr.mxu0 %v353
        %1236 = vmatpush2.msra.mxu0 %v352
        %1237 = vmatprep.mubr.f32.mxu0 %v233
        %1238 = vmatmul.mubr.f32.gmra.mxu0 %v232
        %v1239 = vpop.f32.mrf.mxu0
        %v1240 = vadd.f32 %v1141, %v1239
        %v1241 = vpop.f32.mrf.mxu0
        %v1242 = vadd.f32 %v1145, %v1241
        %1243 = vdwg.mxu0
        %1244 = vmatprep.subr.mxu0 %v570
        %1245 = vmatpush1.msra.mxu0 %v569
        %1246 = vmatprep.subr.mxu0 %v563
        %1247 = vmatpush1.msra.mxu0 %v562
        %1248 = vmatprep.subr.mxu0 %v556
        %1249 = vmatpush1.msra.mxu0 %v555
        %1250 = vmatprep.subr.mxu0 %v549
        %1251 = vmatpush1.msra.mxu0 %v548
        %1252 = vmatprep.subr.mxu0 %v542
        %1253 = vmatpush1.msra.mxu0 %v541
        %1254 = vmatprep.subr.mxu0 %v535
        %1255 = vmatpush1.msra.mxu0 %v534
        %1256 = vmatprep.subr.mxu0 %v528
        %1257 = vmatpush1.msra.mxu0 %v527
        %1258 = vmatprep.subr.mxu0 %v521
        %1259 = vmatpush1.msra.mxu0 %v520
        %1260 = vmatprep.subr.mxu0 %v514
        %1261 = vmatpush1.msra.mxu0 %v513
        %1262 = vmatprep.subr.mxu0 %v507
        %1263 = vmatpush1.msra.mxu0 %v506
        %1264 = vmatprep.subr.mxu0 %v500
        %1265 = vmatpush1.msra.mxu0 %v499
        %1266 = vmatprep.subr.mxu0 %v493
        %1267 = vmatpush1.msra.mxu0 %v492
        %1268 = vmatprep.subr.mxu0 %v486
        %1269 = vmatpush1.msra.mxu0 %v485
        %1270 = vmatprep.subr.mxu0 %v479
        %1271 = vmatpush1.msra.mxu0 %v478
        %1272 = vmatprep.subr.mxu0 %v472
        %1273 = vmatpush1.msra.mxu0 %v471
        %1274 = vmatprep.subr.mxu0 %v465
        %1275 = vmatpush1.msra.mxu0 %v464
        %1276 = vmatprep.subr.mxu0 %v682
        %1277 = vmatpush2.msra.mxu0 %v681
        %1278 = vmatprep.subr.mxu0 %v675
        %1279 = vmatpush2.msra.mxu0 %v674
        %1280 = vmatprep.subr.mxu0 %v668
        %1281 = vmatpush2.msra.mxu0 %v667
        %1282 = vmatprep.subr.mxu0 %v661
        %1283 = vmatpush2.msra.mxu0 %v660
        %1284 = vmatprep.subr.mxu0 %v654
        %1285 = vmatpush2.msra.mxu0 %v653
        %1286 = vmatprep.subr.mxu0 %v647
        %1287 = vmatpush2.msra.mxu0 %v646
        %1288 = vmatprep.subr.mxu0 %v640
        %1289 = vmatpush2.msra.mxu0 %v639
        %1290 = vmatprep.subr.mxu0 %v633
        %1291 = vmatpush2.msra.mxu0 %v632
        %1292 = vmatprep.subr.mxu0 %v626
        %1293 = vmatpush2.msra.mxu0 %v625
        %1294 = vmatprep.subr.mxu0 %v619
        %1295 = vmatpush2.msra.mxu0 %v618
        %1296 = vmatprep.subr.mxu0 %v612
        %1297 = vmatpush2.msra.mxu0 %v611
        %1298 = vmatprep.subr.mxu0 %v605
        %1299 = vmatpush2.msra.mxu0 %v604
        %1300 = vmatprep.subr.mxu0 %v598
        %1301 = vmatpush2.msra.mxu0 %v597
        %1302 = vmatprep.subr.mxu0 %v591
        %1303 = vmatpush2.msra.mxu0 %v590
        %1304 = vmatprep.subr.mxu0 %v584
        %1305 = vmatpush2.msra.mxu0 %v583
        %1306 = vmatprep.subr.mxu0 %v577
        %1307 = vmatpush2.msra.mxu0 %v576
        %1308 = vmatprep.mubr.f32.mxu0 %v235
        %1309 = vmatmul.mubr.f32.gmra.mxu0 %v234
        %v1310 = vpop.f32.mrf.mxu0
        %v1311 = vadd.f32 %v1240, %v1310
        %v1312 = vpop.f32.mrf.mxu0
        %v1313 = vadd.f32 %v1242, %v1312
        %1314 = vdwg.mxu0
        %1315 = vmatprep.subr.mxu0 %v794
        %1316 = vmatpush1.msra.mxu0 %v793
        %1317 = vmatprep.subr.mxu0 %v787
        %1318 = vmatpush1.msra.mxu0 %v786
        %1319 = vmatprep.subr.mxu0 %v780
        %1320 = vmatpush1.msra.mxu0 %v779
        %1321 = vmatprep.subr.mxu0 %v773
        %1322 = vmatpush1.msra.mxu0 %v772
        %1323 = vmatprep.subr.mxu0 %v766
        %1324 = vmatpush1.msra.mxu0 %v765
        %1325 = vmatprep.subr.mxu0 %v759
        %1326 = vmatpush1.msra.mxu0 %v758
        %1327 = vmatprep.subr.mxu0 %v752
        %1328 = vmatpush1.msra.mxu0 %v751
        %1329 = vmatprep.subr.mxu0 %v745
        %1330 = vmatpush1.msra.mxu0 %v744
        %1331 = vmatprep.subr.mxu0 %v738
        %1332 = vmatpush1.msra.mxu0 %v737
        %1333 = vmatprep.subr.mxu0 %v731
        %1334 = vmatpush1.msra.mxu0 %v730
        %1335 = vmatprep.subr.mxu0 %v724
        %1336 = vmatpush1.msra.mxu0 %v723
        %1337 = vmatprep.subr.mxu0 %v717
        %1338 = vmatpush1.msra.mxu0 %v716
        %1339 = vmatprep.subr.mxu0 %v710
        %1340 = vmatpush1.msra.mxu0 %v709
        %1341 = vmatprep.subr.mxu0 %v703
        %1342 = vmatpush1.msra.mxu0 %v702
        %1343 = vmatprep.subr.mxu0 %v696
        %1344 = vmatpush1.msra.mxu0 %v695
        %1345 = vmatprep.subr.mxu0 %v689
        %1346 = vmatpush1.msra.mxu0 %v688
        %1347 = vmatprep.subr.mxu0 %v906
        %1348 = vmatpush2.msra.mxu0 %v905
        %1349 = vmatprep.subr.mxu0 %v899
        %1350 = vmatpush2.msra.mxu0 %v898
        %1351 = vmatprep.subr.mxu0 %v892
        %1352 = vmatpush2.msra.mxu0 %v891
        %1353 = vmatprep.subr.mxu0 %v885
        %1354 = vmatpush2.msra.mxu0 %v884
        %1355 = vmatprep.subr.mxu0 %v878
        %1356 = vmatpush2.msra.mxu0 %v877
        %1357 = vmatprep.subr.mxu0 %v871
        %1358 = vmatpush2.msra.mxu0 %v870
        %1359 = vmatprep.subr.mxu0 %v864
        %1360 = vmatpush2.msra.mxu0 %v863
        %1361 = vmatprep.subr.mxu0 %v857
        %1362 = vmatpush2.msra.mxu0 %v856
        %1363 = vmatprep.subr.mxu0 %v850
        %1364 = vmatpush2.msra.mxu0 %v849
        %1365 = vmatprep.subr.mxu0 %v843
        %1366 = vmatpush2.msra.mxu0 %v842
        %1367 = vmatprep.subr.mxu0 %v836
        %1368 = vmatpush2.msra.mxu0 %v835
        %1369 = vmatprep.subr.mxu0 %v829
        %1370 = vmatpush2.msra.mxu0 %v828
        %1371 = vmatprep.subr.mxu0 %v822
        %1372 = vmatpush2.msra.mxu0 %v821
        %1373 = vmatprep.subr.mxu0 %v815
        %1374 = vmatpush2.msra.mxu0 %v814
        %1375 = vmatprep.subr.mxu0 %v808
        %1376 = vmatpush2.msra.mxu0 %v807
        %1377 = vmatprep.subr.mxu0 %v801
        %1378 = vmatpush2.msra.mxu0 %v800
        %1379 = vmatprep.mubr.f32.mxu0 %v237
        %1380 = vmatmul.mubr.f32.gmra.mxu0 %v236
        %v1381 = vpop.f32.mrf.mxu0
        %v1382 = vadd.f32 %v1311, %v1381
        %v1383 = vpop.f32.mrf.mxu0
        %v1384 = vadd.f32 %v1313, %v1383
        %1385 = vdwg.mxu0
        %1386 = vmatprep.subr.mxu0 %v1018
        %1387 = vmatpush1.msra.mxu0 %v1017
        %1388 = vmatprep.subr.mxu0 %v1011
        %1389 = vmatpush1.msra.mxu0 %v1010
        %1390 = vmatprep.subr.mxu0 %v1004
        %1391 = vmatpush1.msra.mxu0 %v1003
        %1392 = vmatprep.subr.mxu0 %v997
        %1393 = vmatpush1.msra.mxu0 %v996
        %1394 = vmatprep.subr.mxu0 %v990
        %1395 = vmatpush1.msra.mxu0 %v989
        %1396 = vmatprep.subr.mxu0 %v983
        %1397 = vmatpush1.msra.mxu0 %v982
        %1398 = vmatprep.subr.mxu0 %v976
        %1399 = vmatpush1.msra.mxu0 %v975
        %1400 = vmatprep.subr.mxu0 %v969
        %1401 = vmatpush1.msra.mxu0 %v968
        %1402 = vmatprep.subr.mxu0 %v962
        %1403 = vmatpush1.msra.mxu0 %v961
        %1404 = vmatprep.subr.mxu0 %v955
        %1405 = vmatpush1.msra.mxu0 %v954
        %1406 = vmatprep.subr.mxu0 %v948
        %1407 = vmatpush1.msra.mxu0 %v947
        %1408 = vmatprep.subr.mxu0 %v941
        %1409 = vmatpush1.msra.mxu0 %v940
        %1410 = vmatprep.subr.mxu0 %v934
        %1411 = vmatpush1.msra.mxu0 %v933
        %1412 = vmatprep.subr.mxu0 %v927
        %1413 = vmatpush1.msra.mxu0 %v926
        %1414 = vmatprep.subr.mxu0 %v920
        %1415 = vmatpush1.msra.mxu0 %v919
        %1416 = vmatprep.subr.mxu0 %v913
        %1417 = vmatpush1.msra.mxu0 %v912
        %1418 = vmatprep.subr.mxu0 %v1130
        %1419 = vmatpush2.msra.mxu0 %v1129
        %1420 = vmatprep.subr.mxu0 %v1123
        %1421 = vmatpush2.msra.mxu0 %v1122
        %1422 = vmatprep.subr.mxu0 %v1116
        %1423 = vmatpush2.msra.mxu0 %v1115
        %1424 = vmatprep.subr.mxu0 %v1109
        %1425 = vmatpush2.msra.mxu0 %v1108
        %1426 = vmatprep.subr.mxu0 %v1102
        %1427 = vmatpush2.msra.mxu0 %v1101
        %1428 = vmatprep.subr.mxu0 %v1095
        %1429 = vmatpush2.msra.mxu0 %v1094
        %1430 = vmatprep.subr.mxu0 %v1088
        %1431 = vmatpush2.msra.mxu0 %v1087
        %1432 = vmatprep.subr.mxu0 %v1081
        %1433 = vmatpush2.msra.mxu0 %v1080
        %1434 = vmatprep.subr.mxu0 %v1074
        %1435 = vmatpush2.msra.mxu0 %v1073
        %1436 = vmatprep.subr.mxu0 %v1067
        %1437 = vmatpush2.msra.mxu0 %v1066
        %1438 = vmatprep.subr.mxu0 %v1060
        %1439 = vmatpush2.msra.mxu0 %v1059
        %1440 = vmatprep.subr.mxu0 %v1053
        %1441 = vmatpush2.msra.mxu0 %v1052
        %1442 = vmatprep.subr.mxu0 %v1046
        %1443 = vmatpush2.msra.mxu0 %v1045
        %1444 = vmatprep.subr.mxu0 %v1039
        %1445 = vmatpush2.msra.mxu0 %v1038
        %1446 = vmatprep.subr.mxu0 %v1032
        %1447 = vmatpush2.msra.mxu0 %v1031
        %1448 = vmatprep.subr.mxu0 %v1025
        %1449 = vmatpush2.msra.mxu0 %v1024
        %1450 = vmatprep.mubr.f32.mxu0 %v239
        %1451 = vmatmul.mubr.f32.gmra.mxu0 %v238
        %v1452 = vpop.f32.mrf.mxu0
        %v1453 = vadd.f32 %v1382, %v1452
        %v1454 = vpop.f32.mrf.mxu0
        %v1455 = vadd.f32 %v1384, %v1454
        %1456 = vdwg.mxu0
        %1457 = vmatprep.subr.mxu0 %v348
        %1458 = vmatpush1.msra.mxu0 %v347
        %1459 = vmatprep.subr.mxu0 %v341
        %1460 = vmatpush1.msra.mxu0 %v340
        %1461 = vmatprep.subr.mxu0 %v334
        %1462 = vmatpush1.msra.mxu0 %v333
        %1463 = vmatprep.subr.mxu0 %v327
        %1464 = vmatpush1.msra.mxu0 %v326
        %1465 = vmatprep.subr.mxu0 %v320
        %1466 = vmatpush1.msra.mxu0 %v319
        %1467 = vmatprep.subr.mxu0 %v313
        %1468 = vmatpush1.msra.mxu0 %v312
        %1469 = vmatprep.subr.mxu0 %v306
        %1470 = vmatpush1.msra.mxu0 %v305
        %1471 = vmatprep.subr.mxu0 %v299
        %1472 = vmatpush1.msra.mxu0 %v298
        %1473 = vmatprep.subr.mxu0 %v292
        %1474 = vmatpush1.msra.mxu0 %v291
        %1475 = vmatprep.subr.mxu0 %v285
        %1476 = vmatpush1.msra.mxu0 %v284
        %1477 = vmatprep.subr.mxu0 %v278
        %1478 = vmatpush1.msra.mxu0 %v277
        %1479 = vmatprep.subr.mxu0 %v271
        %1480 = vmatpush1.msra.mxu0 %v270
        %1481 = vmatprep.subr.mxu0 %v264
        %1482 = vmatpush1.msra.mxu0 %v263
        %1483 = vmatprep.subr.mxu0 %v257
        %1484 = vmatpush1.msra.mxu0 %v256
        %1485 = vmatprep.subr.mxu0 %v250
        %1486 = vmatpush1.msra.mxu0 %v249
        %1487 = vmatprep.subr.mxu0 %v243
        %1488 = vmatpush1.msra.mxu0 %v242
        %1489 = vmatprep.subr.mxu0 %v460
        %1490 = vmatpush2.msra.mxu0 %v459
        %1491 = vmatprep.subr.mxu0 %v453
        %1492 = vmatpush2.msra.mxu0 %v452
        %1493 = vmatprep.subr.mxu0 %v446
        %1494 = vmatpush2.msra.mxu0 %v445
        %1495 = vmatprep.subr.mxu0 %v439
        %1496 = vmatpush2.msra.mxu0 %v438
        %1497 = vmatprep.subr.mxu0 %v432
        %1498 = vmatpush2.msra.mxu0 %v431
        %1499 = vmatprep.subr.mxu0 %v425
        %1500 = vmatpush2.msra.mxu0 %v424
        %1501 = vmatprep.subr.mxu0 %v418
        %1502 = vmatpush2.msra.mxu0 %v417
        %1503 = vmatprep.subr.mxu0 %v411
        %1504 = vmatpush2.msra.mxu0 %v410
        %1505 = vmatprep.subr.mxu0 %v404
        %1506 = vmatpush2.msra.mxu0 %v403
        %1507 = vmatprep.subr.mxu0 %v397
        %1508 = vmatpush2.msra.mxu0 %v396
        %1509 = vmatprep.subr.mxu0 %v390
        %1510 = vmatpush2.msra.mxu0 %v389
        %1511 = vmatprep.subr.mxu0 %v383
        %1512 = vmatpush2.msra.mxu0 %v382
        %1513 = vmatprep.subr.mxu0 %v376
        %1514 = vmatpush2.msra.mxu0 %v375
        %1515 = vmatprep.subr.mxu0 %v369
        %1516 = vmatpush2.msra.mxu0 %v368
        %1517 = vmatprep.subr.mxu0 %v362
        %1518 = vmatpush2.msra.mxu0 %v361
        %1519 = vmatprep.subr.mxu0 %v355
        %1520 = vmatpush2.msra.mxu0 %v354
        %1521 = vmatprep.mubr.f32.mxu0 %v233
        %1522 = vmatmul.mubr.f32.gmra.mxu0 %v232
        %v1523 = vpop.f32.mrf.mxu0
        %v1524 = vadd.f32 %v1149, %v1523
        %v1525 = vpop.f32.mrf.mxu0
        %v1526 = vadd.f32 %v1153, %v1525
        %1527 = vdwg.mxu0
        %1528 = vmatprep.subr.mxu0 %v572
        %1529 = vmatpush1.msra.mxu0 %v571
        %1530 = vmatprep.subr.mxu0 %v565
        %1531 = vmatpush1.msra.mxu0 %v564
        %1532 = vmatprep.subr.mxu0 %v558
        %1533 = vmatpush1.msra.mxu0 %v557
        %1534 = vmatprep.subr.mxu0 %v551
        %1535 = vmatpush1.msra.mxu0 %v550
        %1536 = vmatprep.subr.mxu0 %v544
        %1537 = vmatpush1.msra.mxu0 %v543
        %1538 = vmatprep.subr.mxu0 %v537
        %1539 = vmatpush1.msra.mxu0 %v536
        %1540 = vmatprep.subr.mxu0 %v530
        %1541 = vmatpush1.msra.mxu0 %v529
        %1542 = vmatprep.subr.mxu0 %v523
        %1543 = vmatpush1.msra.mxu0 %v522
        %1544 = vmatprep.subr.mxu0 %v516
        %1545 = vmatpush1.msra.mxu0 %v515
        %1546 = vmatprep.subr.mxu0 %v509
        %1547 = vmatpush1.msra.mxu0 %v508
        %1548 = vmatprep.subr.mxu0 %v502
        %1549 = vmatpush1.msra.mxu0 %v501
        %1550 = vmatprep.subr.mxu0 %v495
        %1551 = vmatpush1.msra.mxu0 %v494
        %1552 = vmatprep.subr.mxu0 %v488
        %1553 = vmatpush1.msra.mxu0 %v487
        %1554 = vmatprep.subr.mxu0 %v481
        %1555 = vmatpush1.msra.mxu0 %v480
        %1556 = vmatprep.subr.mxu0 %v474
        %1557 = vmatpush1.msra.mxu0 %v473
        %1558 = vmatprep.subr.mxu0 %v467
        %1559 = vmatpush1.msra.mxu0 %v466
        %1560 = vmatprep.subr.mxu0 %v684
        %1561 = vmatpush2.msra.mxu0 %v683
        %1562 = vmatprep.subr.mxu0 %v677
        %1563 = vmatpush2.msra.mxu0 %v676
        %1564 = vmatprep.subr.mxu0 %v670
        %1565 = vmatpush2.msra.mxu0 %v669
        %1566 = vmatprep.subr.mxu0 %v663
        %1567 = vmatpush2.msra.mxu0 %v662
        %1568 = vmatprep.subr.mxu0 %v656
        %1569 = vmatpush2.msra.mxu0 %v655
        %1570 = vmatprep.subr.mxu0 %v649
        %1571 = vmatpush2.msra.mxu0 %v648
        %1572 = vmatprep.subr.mxu0 %v642
        %1573 = vmatpush2.msra.mxu0 %v641
        %1574 = vmatprep.subr.mxu0 %v635
        %1575 = vmatpush2.msra.mxu0 %v634
        %1576 = vmatprep.subr.mxu0 %v628
        %1577 = vmatpush2.msra.mxu0 %v627
        %1578 = vmatprep.subr.mxu0 %v621
        %1579 = vmatpush2.msra.mxu0 %v620
        %1580 = vmatprep.subr.mxu0 %v614
        %1581 = vmatpush2.msra.mxu0 %v613
        %1582 = vmatprep.subr.mxu0 %v607
        %1583 = vmatpush2.msra.mxu0 %v606
        %1584 = vmatprep.subr.mxu0 %v600
        %1585 = vmatpush2.msra.mxu0 %v599
        %1586 = vmatprep.subr.mxu0 %v593
        %1587 = vmatpush2.msra.mxu0 %v592
        %1588 = vmatprep.subr.mxu0 %v586
        %1589 = vmatpush2.msra.mxu0 %v585
        %1590 = vmatprep.subr.mxu0 %v579
        %1591 = vmatpush2.msra.mxu0 %v578
        %1592 = vmatprep.mubr.f32.mxu0 %v235
        %1593 = vmatmul.mubr.f32.gmra.mxu0 %v234
        %v1594 = vpop.f32.mrf.mxu0
        %v1595 = vadd.f32 %v1524, %v1594
        %v1596 = vpop.f32.mrf.mxu0
        %v1597 = vadd.f32 %v1526, %v1596
        %1598 = vdwg.mxu0
        %1599 = vmatprep.subr.mxu0 %v796
        %1600 = vmatpush1.msra.mxu0 %v795
        %1601 = vmatprep.subr.mxu0 %v789
        %1602 = vmatpush1.msra.mxu0 %v788
        %1603 = vmatprep.subr.mxu0 %v782
        %1604 = vmatpush1.msra.mxu0 %v781
        %1605 = vmatprep.subr.mxu0 %v775
        %1606 = vmatpush1.msra.mxu0 %v774
        %1607 = vmatprep.subr.mxu0 %v768
        %1608 = vmatpush1.msra.mxu0 %v767
        %1609 = vmatprep.subr.mxu0 %v761
        %1610 = vmatpush1.msra.mxu0 %v760
        %1611 = vmatprep.subr.mxu0 %v754
        %1612 = vmatpush1.msra.mxu0 %v753
        %1613 = vmatprep.subr.mxu0 %v747
        %1614 = vmatpush1.msra.mxu0 %v746
        %1615 = vmatprep.subr.mxu0 %v740
        %1616 = vmatpush1.msra.mxu0 %v739
        %1617 = vmatprep.subr.mxu0 %v733
        %1618 = vmatpush1.msra.mxu0 %v732
        %1619 = vmatprep.subr.mxu0 %v726
        %1620 = vmatpush1.msra.mxu0 %v725
        %1621 = vmatprep.subr.mxu0 %v719
        %1622 = vmatpush1.msra.mxu0 %v718
        %1623 = vmatprep.subr.mxu0 %v712
        %1624 = vmatpush1.msra.mxu0 %v711
        %1625 = vmatprep.subr.mxu0 %v705
        %1626 = vmatpush1.msra.mxu0 %v704
        %1627 = vmatprep.subr.mxu0 %v698
        %1628 = vmatpush1.msra.mxu0 %v697
        %1629 = vmatprep.subr.mxu0 %v691
        %1630 = vmatpush1.msra.mxu0 %v690
        %1631 = vmatprep.subr.mxu0 %v908
        %1632 = vmatpush2.msra.mxu0 %v907
        %1633 = vmatprep.subr.mxu0 %v901
        %1634 = vmatpush2.msra.mxu0 %v900
        %1635 = vmatprep.subr.mxu0 %v894
        %1636 = vmatpush2.msra.mxu0 %v893
        %1637 = vmatprep.subr.mxu0 %v887
        %1638 = vmatpush2.msra.mxu0 %v886
        %1639 = vmatprep.subr.mxu0 %v880
        %1640 = vmatpush2.msra.mxu0 %v879
        %1641 = vmatprep.subr.mxu0 %v873
        %1642 = vmatpush2.msra.mxu0 %v872
        %1643 = vmatprep.subr.mxu0 %v866
        %1644 = vmatpush2.msra.mxu0 %v865
        %1645 = vmatprep.subr.mxu0 %v859
        %1646 = vmatpush2.msra.mxu0 %v858
        %1647 = vmatprep.subr.mxu0 %v852
        %1648 = vmatpush2.msra.mxu0 %v851
        %1649 = vmatprep.subr.mxu0 %v845
        %1650 = vmatpush2.msra.mxu0 %v844
        %1651 = vmatprep.subr.mxu0 %v838
        %1652 = vmatpush2.msra.mxu0 %v837
        %1653 = vmatprep.subr.mxu0 %v831
        %1654 = vmatpush2.msra.mxu0 %v830
        %1655 = vmatprep.subr.mxu0 %v824
        %1656 = vmatpush2.msra.mxu0 %v823
        %1657 = vmatprep.subr.mxu0 %v817
        %1658 = vmatpush2.msra.mxu0 %v816
        %1659 = vmatprep.subr.mxu0 %v810
        %1660 = vmatpush2.msra.mxu0 %v809
        %1661 = vmatprep.subr.mxu0 %v803
        %1662 = vmatpush2.msra.mxu0 %v802
        %1663 = vmatprep.mubr.f32.mxu0 %v237
        %1664 = vmatmul.mubr.f32.gmra.mxu0 %v236
        %v1665 = vpop.f32.mrf.mxu0
        %v1666 = vadd.f32 %v1595, %v1665
        %v1667 = vpop.f32.mrf.mxu0
        %v1668 = vadd.f32 %v1597, %v1667
        %1669 = vdwg.mxu0
        %1670 = vmatprep.subr.mxu0 %v1020
        %1671 = vmatpush1.msra.mxu0 %v1019
        %1672 = vmatprep.subr.mxu0 %v1013
        %1673 = vmatpush1.msra.mxu0 %v1012
        %1674 = vmatprep.subr.mxu0 %v1006
        %1675 = vmatpush1.msra.mxu0 %v1005
        %1676 = vmatprep.subr.mxu0 %v999
        %1677 = vmatpush1.msra.mxu0 %v998
        %1678 = vmatprep.subr.mxu0 %v992
        %1679 = vmatpush1.msra.mxu0 %v991
        %1680 = vmatprep.subr.mxu0 %v985
        %1681 = vmatpush1.msra.mxu0 %v984
        %1682 = vmatprep.subr.mxu0 %v978
        %1683 = vmatpush1.msra.mxu0 %v977
        %1684 = vmatprep.subr.mxu0 %v971
        %1685 = vmatpush1.msra.mxu0 %v970
        %1686 = vmatprep.subr.mxu0 %v964
        %1687 = vmatpush1.msra.mxu0 %v963
        %1688 = vmatprep.subr.mxu0 %v957
        %1689 = vmatpush1.msra.mxu0 %v956
        %1690 = vmatprep.subr.mxu0 %v950
        %1691 = vmatpush1.msra.mxu0 %v949
        %1692 = vmatprep.subr.mxu0 %v943
        %1693 = vmatpush1.msra.mxu0 %v942
        %1694 = vmatprep.subr.mxu0 %v936
        %1695 = vmatpush1.msra.mxu0 %v935
        %1696 = vmatprep.subr.mxu0 %v929
        %1697 = vmatpush1.msra.mxu0 %v928
        %1698 = vmatprep.subr.mxu0 %v922
        %1699 = vmatpush1.msra.mxu0 %v921
        %1700 = vmatprep.subr.mxu0 %v915
        %1701 = vmatpush1.msra.mxu0 %v914
        %1702 = vmatprep.subr.mxu0 %v1132
        %1703 = vmatpush2.msra.mxu0 %v1131
        %1704 = vmatprep.subr.mxu0 %v1125
        %1705 = vmatpush2.msra.mxu0 %v1124
        %1706 = vmatprep.subr.mxu0 %v1118
        %1707 = vmatpush2.msra.mxu0 %v1117
        %1708 = vmatprep.subr.mxu0 %v1111
        %1709 = vmatpush2.msra.mxu0 %v1110
        %1710 = vmatprep.subr.mxu0 %v1104
        %1711 = vmatpush2.msra.mxu0 %v1103
        %1712 = vmatprep.subr.mxu0 %v1097
        %1713 = vmatpush2.msra.mxu0 %v1096
        %1714 = vmatprep.subr.mxu0 %v1090
        %1715 = vmatpush2.msra.mxu0 %v1089
        %1716 = vmatprep.subr.mxu0 %v1083
        %1717 = vmatpush2.msra.mxu0 %v1082
        %1718 = vmatprep.subr.mxu0 %v1076
        %1719 = vmatpush2.msra.mxu0 %v1075
        %1720 = vmatprep.subr.mxu0 %v1069
        %1721 = vmatpush2.msra.mxu0 %v1068
        %1722 = vmatprep.subr.mxu0 %v1062
        %1723 = vmatpush2.msra.mxu0 %v1061
        %1724 = vmatprep.subr.mxu0 %v1055
        %1725 = vmatpush2.msra.mxu0 %v1054
        %1726 = vmatprep.subr.mxu0 %v1048
        %1727 = vmatpush2.msra.mxu0 %v1047
        %1728 = vmatprep.subr.mxu0 %v1041
        %1729 = vmatpush2.msra.mxu0 %v1040
        %1730 = vmatprep.subr.mxu0 %v1034
        %1731 = vmatpush2.msra.mxu0 %v1033
        %1732 = vmatprep.subr.mxu0 %v1027
        %1733 = vmatpush2.msra.mxu0 %v1026
        %1734 = vmatprep.mubr.f32.mxu0 %v239
        %1735 = vmatmul.mubr.f32.gmra.mxu0 %v238
        %v1736 = vpop.f32.mrf.mxu0
        %v1737 = vadd.f32 %v1666, %v1736
        %v1738 = vpop.f32.mrf.mxu0
        %v1739 = vadd.f32 %v1668, %v1738
        %1740 = vdwg.mxu0
        %1741 = vmatprep.subr.mxu0 %v350
        %1742 = vmatpush1.msra.mxu0 %v349
        %1743 = vmatprep.subr.mxu0 %v343
        %1744 = vmatpush1.msra.mxu0 %v342
        %1745 = vmatprep.subr.mxu0 %v336
        %1746 = vmatpush1.msra.mxu0 %v335
        %1747 = vmatprep.subr.mxu0 %v329
        %1748 = vmatpush1.msra.mxu0 %v328
        %1749 = vmatprep.subr.mxu0 %v322
        %1750 = vmatpush1.msra.mxu0 %v321
        %1751 = vmatprep.subr.mxu0 %v315
        %1752 = vmatpush1.msra.mxu0 %v314
        %1753 = vmatprep.subr.mxu0 %v308
        %1754 = vmatpush1.msra.mxu0 %v307
        %1755 = vmatprep.subr.mxu0 %v301
        %1756 = vmatpush1.msra.mxu0 %v300
        %1757 = vmatprep.subr.mxu0 %v294
        %1758 = vmatpush1.msra.mxu0 %v293
        %1759 = vmatprep.subr.mxu0 %v287
        %1760 = vmatpush1.msra.mxu0 %v286
        %1761 = vmatprep.subr.mxu0 %v280
        %1762 = vmatpush1.msra.mxu0 %v279
        %1763 = vmatprep.subr.mxu0 %v273
        %1764 = vmatpush1.msra.mxu0 %v272
        %1765 = vmatprep.subr.mxu0 %v266
        %1766 = vmatpush1.msra.mxu0 %v265
        %1767 = vmatprep.subr.mxu0 %v259
        %1768 = vmatpush1.msra.mxu0 %v258
        %1769 = vmatprep.subr.mxu0 %v252
        %1770 = vmatpush1.msra.mxu0 %v251
        %1771 = vmatprep.subr.mxu0 %v245
        %1772 = vmatpush1.msra.mxu0 %v244
        %1773 = vmatprep.subr.mxu0 %v462
        %1774 = vmatpush2.msra.mxu0 %v461
        %1775 = vmatprep.subr.mxu0 %v455
        %1776 = vmatpush2.msra.mxu0 %v454
        %1777 = vmatprep.subr.mxu0 %v448
        %1778 = vmatpush2.msra.mxu0 %v447
        %1779 = vmatprep.subr.mxu0 %v441
        %1780 = vmatpush2.msra.mxu0 %v440
        %1781 = vmatprep.subr.mxu0 %v434
        %1782 = vmatpush2.msra.mxu0 %v433
        %1783 = vmatprep.subr.mxu0 %v427
        %1784 = vmatpush2.msra.mxu0 %v426
        %1785 = vmatprep.subr.mxu0 %v420
        %1786 = vmatpush2.msra.mxu0 %v419
        %1787 = vmatprep.subr.mxu0 %v413
        %1788 = vmatpush2.msra.mxu0 %v412
        %1789 = vmatprep.subr.mxu0 %v406
        %1790 = vmatpush2.msra.mxu0 %v405
        %1791 = vmatprep.subr.mxu0 %v399
        %1792 = vmatpush2.msra.mxu0 %v398
        %1793 = vmatprep.subr.mxu0 %v392
        %1794 = vmatpush2.msra.mxu0 %v391
        %1795 = vmatprep.subr.mxu0 %v385
        %1796 = vmatpush2.msra.mxu0 %v384
        %1797 = vmatprep.subr.mxu0 %v378
        %1798 = vmatpush2.msra.mxu0 %v377
        %1799 = vmatprep.subr.mxu0 %v371
        %1800 = vmatpush2.msra.mxu0 %v370
        %1801 = vmatprep.subr.mxu0 %v364
        %1802 = vmatpush2.msra.mxu0 %v363
        %1803 = vmatprep.subr.mxu0 %v357
        %1804 = vmatpush2.msra.mxu0 %v356
        %1805 = vmatprep.mubr.f32.mxu0 %v233
        %1806 = vmatmul.mubr.f32.gmra.mxu0 %v232
        %v1807 = vpop.f32.mrf.mxu0
        %v1808 = vadd.f32 %v1157, %v1807
        %v1809 = vpop.f32.mrf.mxu0
        %v1810 = vadd.f32 %v1161, %v1809
        %1811 = vdwg.mxu0
        %1812 = vmatprep.subr.mxu0 %v574
        %1813 = vmatpush1.msra.mxu0 %v573
        %1814 = vmatprep.subr.mxu0 %v567
        %1815 = vmatpush1.msra.mxu0 %v566
        %1816 = vmatprep.subr.mxu0 %v560
        %1817 = vmatpush1.msra.mxu0 %v559
        %1818 = vmatprep.subr.mxu0 %v553
        %1819 = vmatpush1.msra.mxu0 %v552
        %1820 = vmatprep.subr.mxu0 %v546
        %1821 = vmatpush1.msra.mxu0 %v545
        %1822 = vmatprep.subr.mxu0 %v539
        %1823 = vmatpush1.msra.mxu0 %v538
        %1824 = vmatprep.subr.mxu0 %v532
        %1825 = vmatpush1.msra.mxu0 %v531
        %1826 = vmatprep.subr.mxu0 %v525
        %1827 = vmatpush1.msra.mxu0 %v524
        %1828 = vmatprep.subr.mxu0 %v518
        %1829 = vmatpush1.msra.mxu0 %v517
        %1830 = vmatprep.subr.mxu0 %v511
        %1831 = vmatpush1.msra.mxu0 %v510
        %1832 = vmatprep.subr.mxu0 %v504
        %1833 = vmatpush1.msra.mxu0 %v503
        %1834 = vmatprep.subr.mxu0 %v497
        %1835 = vmatpush1.msra.mxu0 %v496
        %1836 = vmatprep.subr.mxu0 %v490
        %1837 = vmatpush1.msra.mxu0 %v489
        %1838 = vmatprep.subr.mxu0 %v483
        %1839 = vmatpush1.msra.mxu0 %v482
        %1840 = vmatprep.subr.mxu0 %v476
        %1841 = vmatpush1.msra.mxu0 %v475
        %1842 = vmatprep.subr.mxu0 %v469
        %1843 = vmatpush1.msra.mxu0 %v468
        %1844 = vmatprep.subr.mxu0 %v686
        %1845 = vmatpush2.msra.mxu0 %v685
        %1846 = vmatprep.subr.mxu0 %v679
        %1847 = vmatpush2.msra.mxu0 %v678
        %1848 = vmatprep.subr.mxu0 %v672
        %1849 = vmatpush2.msra.mxu0 %v671
        %1850 = vmatprep.subr.mxu0 %v665
        %1851 = vmatpush2.msra.mxu0 %v664
        %1852 = vmatprep.subr.mxu0 %v658
        %1853 = vmatpush2.msra.mxu0 %v657
        %1854 = vmatprep.subr.mxu0 %v651
        %1855 = vmatpush2.msra.mxu0 %v650
        %1856 = vmatprep.subr.mxu0 %v644
        %1857 = vmatpush2.msra.mxu0 %v643
        %1858 = vmatprep.subr.mxu0 %v637
        %1859 = vmatpush2.msra.mxu0 %v636
        %1860 = vmatprep.subr.mxu0 %v630
        %1861 = vmatpush2.msra.mxu0 %v629
        %1862 = vmatprep.subr.mxu0 %v623
        %1863 = vmatpush2.msra.mxu0 %v622
        %1864 = vmatprep.subr.mxu0 %v616
        %1865 = vmatpush2.msra.mxu0 %v615
        %1866 = vmatprep.subr.mxu0 %v609
        %1867 = vmatpush2.msra.mxu0 %v608
        %1868 = vmatprep.subr.mxu0 %v602
        %1869 = vmatpush2.msra.mxu0 %v601
        %1870 = vmatprep.subr.mxu0 %v595
        %1871 = vmatpush2.msra.mxu0 %v594
        %1872 = vmatprep.subr.mxu0 %v588
        %1873 = vmatpush2.msra.mxu0 %v587
        %1874 = vmatprep.subr.mxu0 %v581
        %1875 = vmatpush2.msra.mxu0 %v580
        %1876 = vmatprep.mubr.f32.mxu0 %v235
        %1877 = vmatmul.mubr.f32.gmra.mxu0 %v234
        %v1878 = vpop.f32.mrf.mxu0
        %v1879 = vadd.f32 %v1808, %v1878
        %v1880 = vpop.f32.mrf.mxu0
        %v1881 = vadd.f32 %v1810, %v1880
        %1882 = vdwg.mxu0
        %1883 = vmatprep.subr.mxu0 %v798
        %1884 = vmatpush1.msra.mxu0 %v797
        %1885 = vmatprep.subr.mxu0 %v791
        %1886 = vmatpush1.msra.mxu0 %v790
        %1887 = vmatprep.subr.mxu0 %v784
        %1888 = vmatpush1.msra.mxu0 %v783
        %1889 = vmatprep.subr.mxu0 %v777
        %1890 = vmatpush1.msra.mxu0 %v776
        %1891 = vmatprep.subr.mxu0 %v770
        %1892 = vmatpush1.msra.mxu0 %v769
        %1893 = vmatprep.subr.mxu0 %v763
        %1894 = vmatpush1.msra.mxu0 %v762
        %1895 = vmatprep.subr.mxu0 %v756
        %1896 = vmatpush1.msra.mxu0 %v755
        %1897 = vmatprep.subr.mxu0 %v749
        %1898 = vmatpush1.msra.mxu0 %v748
        %1899 = vmatprep.subr.mxu0 %v742
        %1900 = vmatpush1.msra.mxu0 %v741
        %1901 = vmatprep.subr.mxu0 %v735
        %1902 = vmatpush1.msra.mxu0 %v734
        %1903 = vmatprep.subr.mxu0 %v728
        %1904 = vmatpush1.msra.mxu0 %v727
        %1905 = vmatprep.subr.mxu0 %v721
        %1906 = vmatpush1.msra.mxu0 %v720
        %1907 = vmatprep.subr.mxu0 %v714
        %1908 = vmatpush1.msra.mxu0 %v713
        %1909 = vmatprep.subr.mxu0 %v707
        %1910 = vmatpush1.msra.mxu0 %v706
        %1911 = vmatprep.subr.mxu0 %v700
        %1912 = vmatpush1.msra.mxu0 %v699
        %1913 = vmatprep.subr.mxu0 %v693
        %1914 = vmatpush1.msra.mxu0 %v692
        %1915 = vmatprep.subr.mxu0 %v910
        %1916 = vmatpush2.msra.mxu0 %v909
        %1917 = vmatprep.subr.mxu0 %v903
        %1918 = vmatpush2.msra.mxu0 %v902
        %1919 = vmatprep.subr.mxu0 %v896
        %1920 = vmatpush2.msra.mxu0 %v895
        %1921 = vmatprep.subr.mxu0 %v889
        %1922 = vmatpush2.msra.mxu0 %v888
        %1923 = vmatprep.subr.mxu0 %v882
        %1924 = vmatpush2.msra.mxu0 %v881
        %1925 = vmatprep.subr.mxu0 %v875
        %1926 = vmatpush2.msra.mxu0 %v874
        %1927 = vmatprep.subr.mxu0 %v868
        %1928 = vmatpush2.msra.mxu0 %v867
        %1929 = vmatprep.subr.mxu0 %v861
        %1930 = vmatpush2.msra.mxu0 %v860
        %1931 = vmatprep.subr.mxu0 %v854
        %1932 = vmatpush2.msra.mxu0 %v853
        %1933 = vmatprep.subr.mxu0 %v847
        %1934 = vmatpush2.msra.mxu0 %v846
        %1935 = vmatprep.subr.mxu0 %v840
        %1936 = vmatpush2.msra.mxu0 %v839
        %1937 = vmatprep.subr.mxu0 %v833
        %1938 = vmatpush2.msra.mxu0 %v832
        %1939 = vmatprep.subr.mxu0 %v826
        %1940 = vmatpush2.msra.mxu0 %v825
        %1941 = vmatprep.subr.mxu0 %v819
        %1942 = vmatpush2.msra.mxu0 %v818
        %1943 = vmatprep.subr.mxu0 %v812
        %1944 = vmatpush2.msra.mxu0 %v811
        %1945 = vmatprep.subr.mxu0 %v805
        %1946 = vmatpush2.msra.mxu0 %v804
        %1947 = vmatprep.mubr.f32.mxu0 %v237
        %1948 = vmatmul.mubr.f32.gmra.mxu0 %v236
        %v1949 = vpop.f32.mrf.mxu0
        %v1950 = vadd.f32 %v1879, %v1949
        %v1951 = vpop.f32.mrf.mxu0
        %v1952 = vadd.f32 %v1881, %v1951
        %1953 = vdwg.mxu0
        %1954 = vmatprep.subr.mxu0 %v1022
        %1955 = vmatpush1.msra.mxu0 %v1021
        %1956 = vmatprep.subr.mxu0 %v1015
        %1957 = vmatpush1.msra.mxu0 %v1014
        %1958 = vmatprep.subr.mxu0 %v1008
        %1959 = vmatpush1.msra.mxu0 %v1007
        %1960 = vmatprep.subr.mxu0 %v1001
        %1961 = vmatpush1.msra.mxu0 %v1000
        %1962 = vmatprep.subr.mxu0 %v994
        %1963 = vmatpush1.msra.mxu0 %v993
        %1964 = vmatprep.subr.mxu0 %v987
        %1965 = vmatpush1.msra.mxu0 %v986
        %1966 = vmatprep.subr.mxu0 %v980
        %1967 = vmatpush1.msra.mxu0 %v979
        %1968 = vmatprep.subr.mxu0 %v973
        %1969 = vmatpush1.msra.mxu0 %v972
        %1970 = vmatprep.subr.mxu0 %v966
        %1971 = vmatpush1.msra.mxu0 %v965
        %1972 = vmatprep.subr.mxu0 %v959
        %1973 = vmatpush1.msra.mxu0 %v958
        %1974 = vmatprep.subr.mxu0 %v952
        %1975 = vmatpush1.msra.mxu0 %v951
        %1976 = vmatprep.subr.mxu0 %v945
        %1977 = vmatpush1.msra.mxu0 %v944
        %1978 = vmatprep.subr.mxu0 %v938
        %1979 = vmatpush1.msra.mxu0 %v937
        %1980 = vmatprep.subr.mxu0 %v931
        %1981 = vmatpush1.msra.mxu0 %v930
        %1982 = vmatprep.subr.mxu0 %v924
        %1983 = vmatpush1.msra.mxu0 %v923
        %1984 = vmatprep.subr.mxu0 %v917
        %1985 = vmatpush1.msra.mxu0 %v916
        %1986 = vmatprep.subr.mxu0 %v1134
        %1987 = vmatpush2.msra.mxu0 %v1133
        %1988 = vmatprep.subr.mxu0 %v1127
        %1989 = vmatpush2.msra.mxu0 %v1126
        %1990 = vmatprep.subr.mxu0 %v1120
        %1991 = vmatpush2.msra.mxu0 %v1119
        %1992 = vmatprep.subr.mxu0 %v1113
        %1993 = vmatpush2.msra.mxu0 %v1112
        %1994 = vmatprep.subr.mxu0 %v1106
        %1995 = vmatpush2.msra.mxu0 %v1105
        %1996 = vmatprep.subr.mxu0 %v1099
        %1997 = vmatpush2.msra.mxu0 %v1098
        %1998 = vmatprep.subr.mxu0 %v1092
        %1999 = vmatpush2.msra.mxu0 %v1091
        %2000 = vmatprep.subr.mxu0 %v1085
        %2001 = vmatpush2.msra.mxu0 %v1084
        %2002 = vmatprep.subr.mxu0 %v1078
        %2003 = vmatpush2.msra.mxu0 %v1077
        %2004 = vmatprep.subr.mxu0 %v1071
        %2005 = vmatpush2.msra.mxu0 %v1070
        %2006 = vmatprep.subr.mxu0 %v1064
        %2007 = vmatpush2.msra.mxu0 %v1063
        %2008 = vmatprep.subr.mxu0 %v1057
        %2009 = vmatpush2.msra.mxu0 %v1056
        %2010 = vmatprep.subr.mxu0 %v1050
        %2011 = vmatpush2.msra.mxu0 %v1049
        %2012 = vmatprep.subr.mxu0 %v1043
        %2013 = vmatpush2.msra.mxu0 %v1042
        %2014 = vmatprep.subr.mxu0 %v1036
        %2015 = vmatpush2.msra.mxu0 %v1035
        %2016 = vmatprep.subr.mxu0 %v1029
        %2017 = vmatpush2.msra.mxu0 %v1028
        %2018 = vmatprep.mubr.f32.mxu0 %v239
        %2019 = vmatmul.mubr.f32.gmra.mxu0 %v238
        %v2020 = vpop.f32.mrf.mxu0
        %v2021 = vadd.f32 %v1950, %v2020
        %v2022 = vpop.f32.mrf.mxu0
        %v2023 = vadd.f32 %v1952, %v2022
        %2024 = vdwg.mxu0
        %2025 = vmatprep.subr.mxu0 0.0
        %2026 = vmatpush1.msra.mxu0 %v351
        %2027 = vmatprep.subr.mxu0 0.0
        %2028 = vmatpush1.msra.mxu0 %v344
        %2029 = vmatprep.subr.mxu0 0.0
        %2030 = vmatpush1.msra.mxu0 %v337
        %2031 = vmatprep.subr.mxu0 0.0
        %2032 = vmatpush1.msra.mxu0 %v330
        %2033 = vmatprep.subr.mxu0 0.0
        %2034 = vmatpush1.msra.mxu0 %v323
        %2035 = vmatprep.subr.mxu0 0.0
        %2036 = vmatpush1.msra.mxu0 %v316
        %2037 = vmatprep.subr.mxu0 0.0
        %2038 = vmatpush1.msra.mxu0 %v309
        %2039 = vmatprep.subr.mxu0 0.0
        %2040 = vmatpush1.msra.mxu0 %v302
        %2041 = vmatprep.subr.mxu0 0.0
        %2042 = vmatpush1.msra.mxu0 %v295
        %2043 = vmatprep.subr.mxu0 0.0
        %2044 = vmatpush1.msra.mxu0 %v288
        %2045 = vmatprep.subr.mxu0 0.0
        %2046 = vmatpush1.msra.mxu0 %v281
        %2047 = vmatprep.subr.mxu0 0.0
        %2048 = vmatpush1.msra.mxu0 %v274
        %2049 = vmatprep.subr.mxu0 0.0
        %2050 = vmatpush1.msra.mxu0 %v267
        %2051 = vmatprep.subr.mxu0 0.0
        %2052 = vmatpush1.msra.mxu0 %v260
        %2053 = vmatprep.subr.mxu0 0.0
        %2054 = vmatpush1.msra.mxu0 %v253
        %2055 = vmatprep.subr.mxu0 0.0
        %2056 = vmatpush1.msra.mxu0 %v246
        %2057 = vmatprep.subr.mxu0 0.0
        %2058 = vmatpush2.msra.mxu0 %v463
        %2059 = vmatprep.subr.mxu0 0.0
        %2060 = vmatpush2.msra.mxu0 %v456
        %2061 = vmatprep.subr.mxu0 0.0
        %2062 = vmatpush2.msra.mxu0 %v449
        %2063 = vmatprep.subr.mxu0 0.0
        %2064 = vmatpush2.msra.mxu0 %v442
        %2065 = vmatprep.subr.mxu0 0.0
        %2066 = vmatpush2.msra.mxu0 %v435
        %2067 = vmatprep.subr.mxu0 0.0
        %2068 = vmatpush2.msra.mxu0 %v428
        %2069 = vmatprep.subr.mxu0 0.0
        %2070 = vmatpush2.msra.mxu0 %v421
        %2071 = vmatprep.subr.mxu0 0.0
        %2072 = vmatpush2.msra.mxu0 %v414
        %2073 = vmatprep.subr.mxu0 0.0
        %2074 = vmatpush2.msra.mxu0 %v407
        %2075 = vmatprep.subr.mxu0 0.0
        %2076 = vmatpush2.msra.mxu0 %v400
        %2077 = vmatprep.subr.mxu0 0.0
        %2078 = vmatpush2.msra.mxu0 %v393
        %2079 = vmatprep.subr.mxu0 0.0
        %2080 = vmatpush2.msra.mxu0 %v386
        %2081 = vmatprep.subr.mxu0 0.0
        %2082 = vmatpush2.msra.mxu0 %v379
        %2083 = vmatprep.subr.mxu0 0.0
        %2084 = vmatpush2.msra.mxu0 %v372
        %2085 = vmatprep.subr.mxu0 0.0
        %2086 = vmatpush2.msra.mxu0 %v365
        %2087 = vmatprep.subr.mxu0 0.0
        %2088 = vmatpush2.msra.mxu0 %v358
        %2089 = vmatprep.mubr.f32.mxu0 %v233
        %2090 = vmatmul.mubr.f32.gmra.mxu0 %v232
        %v2091 = vpop.f32.mrf.mxu0
        %v2092 = vadd.f32 %v1165, %v2091
        %v2093 = vpop.f32.mrf.mxu0
        %2094 = vdwg.mxu0
        %2095 = vmatprep.subr.mxu0 0.0
        %2096 = vmatpush1.msra.mxu0 %v575
        %2097 = vmatprep.subr.mxu0 0.0
        %2098 = vmatpush1.msra.mxu0 %v568
        %2099 = vmatprep.subr.mxu0 0.0
        %2100 = vmatpush1.msra.mxu0 %v561
        %2101 = vmatprep.subr.mxu0 0.0
        %2102 = vmatpush1.msra.mxu0 %v554
        %2103 = vmatprep.subr.mxu0 0.0
        %2104 = vmatpush1.msra.mxu0 %v547
        %2105 = vmatprep.subr.mxu0 0.0
        %2106 = vmatpush1.msra.mxu0 %v540
        %2107 = vmatprep.subr.mxu0 0.0
        %2108 = vmatpush1.msra.mxu0 %v533
        %2109 = vmatprep.subr.mxu0 0.0
        %2110 = vmatpush1.msra.mxu0 %v526
        %2111 = vmatprep.subr.mxu0 0.0
        %2112 = vmatpush1.msra.mxu0 %v519
        %2113 = vmatprep.subr.mxu0 0.0
        %2114 = vmatpush1.msra.mxu0 %v512
        %2115 = vmatprep.subr.mxu0 0.0
        %2116 = vmatpush1.msra.mxu0 %v505
        %2117 = vmatprep.subr.mxu0 0.0
        %2118 = vmatpush1.msra.mxu0 %v498
        %2119 = vmatprep.subr.mxu0 0.0
        %2120 = vmatpush1.msra.mxu0 %v491
        %2121 = vmatprep.subr.mxu0 0.0
        %2122 = vmatpush1.msra.mxu0 %v484
        %2123 = vmatprep.subr.mxu0 0.0
        %2124 = vmatpush1.msra.mxu0 %v477
        %2125 = vmatprep.subr.mxu0 0.0
        %2126 = vmatpush1.msra.mxu0 %v470
        %2127 = vmatprep.subr.mxu0 0.0
        %2128 = vmatpush2.msra.mxu0 %v687
        %2129 = vmatprep.subr.mxu0 0.0
        %2130 = vmatpush2.msra.mxu0 %v680
        %2131 = vmatprep.subr.mxu0 0.0
        %2132 = vmatpush2.msra.mxu0 %v673
        %2133 = vmatprep.subr.mxu0 0.0
        %2134 = vmatpush2.msra.mxu0 %v666
        %2135 = vmatprep.subr.mxu0 0.0
        %2136 = vmatpush2.msra.mxu0 %v659
        %2137 = vmatprep.subr.mxu0 0.0
        %2138 = vmatpush2.msra.mxu0 %v652
        %2139 = vmatprep.subr.mxu0 0.0
        %2140 = vmatpush2.msra.mxu0 %v645
        %2141 = vmatprep.subr.mxu0 0.0
        %2142 = vmatpush2.msra.mxu0 %v638
        %2143 = vmatprep.subr.mxu0 0.0
        %2144 = vmatpush2.msra.mxu0 %v631
        %2145 = vmatprep.subr.mxu0 0.0
        %2146 = vmatpush2.msra.mxu0 %v624
        %2147 = vmatprep.subr.mxu0 0.0
        %2148 = vmatpush2.msra.mxu0 %v617
        %2149 = vmatprep.subr.mxu0 0.0
        %2150 = vmatpush2.msra.mxu0 %v610
        %2151 = vmatprep.subr.mxu0 0.0
        %2152 = vmatpush2.msra.mxu0 %v603
        %2153 = vmatprep.subr.mxu0 0.0
        %2154 = vmatpush2.msra.mxu0 %v596
        %2155 = vmatprep.subr.mxu0 0.0
        %2156 = vmatpush2.msra.mxu0 %v589
        %2157 = vmatprep.subr.mxu0 0.0
        %2158 = vmatpush2.msra.mxu0 %v582
        %2159 = vmatprep.mubr.f32.mxu0 %v235
        %2160 = vmatmul.mubr.f32.gmra.mxu0 %v234
        %v2161 = vpop.f32.mrf.mxu0
        %v2162 = vadd.f32 %v2092, %v2161
        %v2163 = vpop.f32.mrf.mxu0
        %2164 = vdwg.mxu0
        %2165 = vmatprep.subr.mxu0 0.0
        %2166 = vmatpush1.msra.mxu0 %v799
        %2167 = vmatprep.subr.mxu0 0.0
        %2168 = vmatpush1.msra.mxu0 %v792
        %2169 = vmatprep.subr.mxu0 0.0
        %2170 = vmatpush1.msra.mxu0 %v785
        %2171 = vmatprep.subr.mxu0 0.0
        %2172 = vmatpush1.msra.mxu0 %v778
        %2173 = vmatprep.subr.mxu0 0.0
        %2174 = vmatpush1.msra.mxu0 %v771
        %2175 = vmatprep.subr.mxu0 0.0
        %2176 = vmatpush1.msra.mxu0 %v764
        %2177 = vmatprep.subr.mxu0 0.0
        %2178 = vmatpush1.msra.mxu0 %v757
        %2179 = vmatprep.subr.mxu0 0.0
        %2180 = vmatpush1.msra.mxu0 %v750
        %2181 = vmatprep.subr.mxu0 0.0
        %2182 = vmatpush1.msra.mxu0 %v743
        %2183 = vmatprep.subr.mxu0 0.0
        %2184 = vmatpush1.msra.mxu0 %v736
        %2185 = vmatprep.subr.mxu0 0.0
        %2186 = vmatpush1.msra.mxu0 %v729
        %2187 = vmatprep.subr.mxu0 0.0
        %2188 = vmatpush1.msra.mxu0 %v722
        %2189 = vmatprep.subr.mxu0 0.0
        %2190 = vmatpush1.msra.mxu0 %v715
        %2191 = vmatprep.subr.mxu0 0.0
        %2192 = vmatpush1.msra.mxu0 %v708
        %2193 = vmatprep.subr.mxu0 0.0
        %2194 = vmatpush1.msra.mxu0 %v701
        %2195 = vmatprep.subr.mxu0 0.0
        %2196 = vmatpush1.msra.mxu0 %v694
        %2197 = vmatprep.subr.mxu0 0.0
        %2198 = vmatpush2.msra.mxu0 %v911
        %2199 = vmatprep.subr.mxu0 0.0
        %2200 = vmatpush2.msra.mxu0 %v904
        %2201 = vmatprep.subr.mxu0 0.0
        %2202 = vmatpush2.msra.mxu0 %v897
        %2203 = vmatprep.subr.mxu0 0.0
        %2204 = vmatpush2.msra.mxu0 %v890
        %2205 = vmatprep.subr.mxu0 0.0
        %2206 = vmatpush2.msra.mxu0 %v883
        %2207 = vmatprep.subr.mxu0 0.0
        %2208 = vmatpush2.msra.mxu0 %v876
        %2209 = vmatprep.subr.mxu0 0.0
        %2210 = vmatpush2.msra.mxu0 %v869
        %2211 = vmatprep.subr.mxu0 0.0
        %2212 = vmatpush2.msra.mxu0 %v862
        %2213 = vmatprep.subr.mxu0 0.0
        %2214 = vmatpush2.msra.mxu0 %v855
        %2215 = vmatprep.subr.mxu0 0.0
        %2216 = vmatpush2.msra.mxu0 %v848
        %2217 = vmatprep.subr.mxu0 0.0
        %2218 = vmatpush2.msra.mxu0 %v841
        %2219 = vmatprep.subr.mxu0 0.0
        %2220 = vmatpush2.msra.mxu0 %v834
        %2221 = vmatprep.subr.mxu0 0.0
        %2222 = vmatpush2.msra.mxu0 %v827
        %2223 = vmatprep.subr.mxu0 0.0
        %2224 = vmatpush2.msra.mxu0 %v820
        %2225 = vmatprep.subr.mxu0 0.0
        %2226 = vmatpush2.msra.mxu0 %v813
        %2227 = vmatprep.subr.mxu0 0.0
        %2228 = vmatpush2.msra.mxu0 %v806
        %2229 = vmatprep.mubr.f32.mxu0 %v237
        %2230 = vmatmul.mubr.f32.gmra.mxu0 %v236
        %v2231 = vpop.f32.mrf.mxu0
        %v2232 = vadd.f32 %v2162, %v2231
        %v2233 = vpop.f32.mrf.mxu0
        %2234 = vdwg.mxu0
        %2235 = vmatprep.subr.mxu0 0.0
        %2236 = vmatpush1.msra.mxu0 %v1023
        %2237 = vmatprep.subr.mxu0 0.0
        %2238 = vmatpush1.msra.mxu0 %v1016
        %2239 = vmatprep.subr.mxu0 0.0
        %2240 = vmatpush1.msra.mxu0 %v1009
        %2241 = vmatprep.subr.mxu0 0.0
        %2242 = vmatpush1.msra.mxu0 %v1002
        %2243 = vmatprep.subr.mxu0 0.0
        %2244 = vmatpush1.msra.mxu0 %v995
        %2245 = vmatprep.subr.mxu0 0.0
        %2246 = vmatpush1.msra.mxu0 %v988
        %2247 = vmatprep.subr.mxu0 0.0
        %2248 = vmatpush1.msra.mxu0 %v981
        %2249 = vmatprep.subr.mxu0 0.0
        %2250 = vmatpush1.msra.mxu0 %v974
        %2251 = vmatprep.subr.mxu0 0.0
        %2252 = vmatpush1.msra.mxu0 %v967
        %2253 = vmatprep.subr.mxu0 0.0
        %2254 = vmatpush1.msra.mxu0 %v960
        %2255 = vmatprep.subr.mxu0 0.0
        %2256 = vmatpush1.msra.mxu0 %v953
        %2257 = vmatprep.subr.mxu0 0.0
        %2258 = vmatpush1.msra.mxu0 %v946
        %2259 = vmatprep.subr.mxu0 0.0
        %2260 = vmatpush1.msra.mxu0 %v939
        %2261 = vmatprep.subr.mxu0 0.0
        %2262 = vmatpush1.msra.mxu0 %v932
        %2263 = vmatprep.subr.mxu0 0.0
        %2264 = vmatpush1.msra.mxu0 %v925
        %2265 = vmatprep.subr.mxu0 0.0
        %2266 = vmatpush1.msra.mxu0 %v918
        %2267 = vmatprep.subr.mxu0 0.0
        %2268 = vmatpush2.msra.mxu0 %v1135
        %2269 = vmatprep.subr.mxu0 0.0
        %2270 = vmatpush2.msra.mxu0 %v1128
        %2271 = vmatprep.subr.mxu0 0.0
        %2272 = vmatpush2.msra.mxu0 %v1121
        %2273 = vmatprep.subr.mxu0 0.0
        %2274 = vmatpush2.msra.mxu0 %v1114
        %2275 = vmatprep.subr.mxu0 0.0
        %2276 = vmatpush2.msra.mxu0 %v1107
        %2277 = vmatprep.subr.mxu0 0.0
        %2278 = vmatpush2.msra.mxu0 %v1100
        %2279 = vmatprep.subr.mxu0 0.0
        %2280 = vmatpush2.msra.mxu0 %v1093
        %2281 = vmatprep.subr.mxu0 0.0
        %2282 = vmatpush2.msra.mxu0 %v1086
        %2283 = vmatprep.subr.mxu0 0.0
        %2284 = vmatpush2.msra.mxu0 %v1079
        %2285 = vmatprep.subr.mxu0 0.0
        %2286 = vmatpush2.msra.mxu0 %v1072
        %2287 = vmatprep.subr.mxu0 0.0
        %2288 = vmatpush2.msra.mxu0 %v1065
        %2289 = vmatprep.subr.mxu0 0.0
        %2290 = vmatpush2.msra.mxu0 %v1058
        %2291 = vmatprep.subr.mxu0 0.0
        %2292 = vmatpush2.msra.mxu0 %v1051
        %2293 = vmatprep.subr.mxu0 0.0
        %2294 = vmatpush2.msra.mxu0 %v1044
        %2295 = vmatprep.subr.mxu0 0.0
        %2296 = vmatpush2.msra.mxu0 %v1037
        %2297 = vmatprep.subr.mxu0 0.0
        %2298 = vmatpush2.msra.mxu0 %v1030
        %2299 = vmatprep.mubr.f32.mxu0 %v239
        %2300 = vmatmul.mubr.f32.gmra.mxu0 %v238
        %v2301 = vpop.f32.mrf.mxu0
        %v2302 = vadd.f32 %v2232, %v2301
        %v2303 = vpop.f32.mrf.mxu0
        %2304 = vdwg.mxu0
        %v2305 = vtanh.pop %v1453
        %v2306 = vtanh.pop %v1455
        %v2307 = vtanh.pop %v1737
        %v2308 = vtanh.pop %v1739
        %v2309 = vtanh.pop %v2021
        %v2310 = vtanh.pop %v2023
        %v2311 = vtanh.pop %v2302
        %2312 = vst [vmem:[%s230] sm:$0xff] %v2305
        %2313 = vst [vmem:[%s230 + $0x8] sm:$0xff] %v2306
        %2314 = vst [vmem:[%s230 + $0x10] sm:$0xff] %v2307
        %2315 = vst [vmem:[%s230 + $0x18] sm:$0xff] %v2308
        %2316 = vst [vmem:[%s230 + $0x20] sm:$0xff] %v2309
        %2317 = vst [vmem:[%s230 + $0x28] sm:$0xff] %v2310
        %2318 = vst [vmem:[%s230 + $0x30] sm:$0xff] %v2311
        %s2319 = smul.u32 7, %s20
        %p2320 = scmp.lt.s32.totalorder %s2319, 69
        %s2321 = scalar_select %p2320, %s2319, 69
        %s2322 = smul.addr %s2321, 8
        %s2323 = scalar_lea.vmem %s3, %s2322
        // Predicated region
        $region41: #{generator_forward.3} parent=31 // pred_check
          %p2324 = pneg %p111
        $region42: #{generator_forward.3} parent=31 // pred_check_branch
          %2326 = sbr.rel (%p2324) target = $region44
        $region43: #{generator_forward.3} parent=31 // pred_region
          %s2327 = smul.u32 7, %s20
        $region44: #{generator_forward.3} parent=31 // pred_fallthru
          _
      $region32: #{generator_forward.3} parent=5 // pred_fallthru
        _
      %p2328 = scmp.le.s32.totalorder 2, %s15
      // Predicated region
      $region45: #{generator_forward.3} parent=5 // pred_check
        %p2329 = pneg %p2328
      $region46: #{generator_forward.3} parent=5 // pred_check_branch
        %2331 = sbr.rel (%p2329) target = $region48
      $region47: #{generator_forward.3} parent=5 // pred_region
        %s2332 = ssub.s32 %s15, 2
        // Predicated region
        $region49: #{generator_forward.3} parent=47 // pred_check
          %p2333 = pneg %p117
        $region50: #{generator_forward.3} parent=47 // pred_check_branch
          %2335 = sbr.rel (%p2333) target = $region52
        $region51: #{generator_forward.3} parent=47 // pred_region
          %s2336 = smul.u32 7, %s21
          %p2337 = scmp.lt.s32.totalorder %s2336, 69
          %s2338 = scalar_select %p2337, %s2336, 69
          %s2339 = smul.addr %s2338, 8
          %s2340 = scalar_lea.vmem %s3, %s2339
        $region52: #{generator_forward.3} parent=47 // pred_fallthru
          _
      $region48: #{generator_forward.3} parent=5 // pred_fallthru
        _
    $region6: #{generator_forward.3} parent=1 // loop_footer
      %s19 = sadd.s32 1, %s15
    $region7: #{generator_forward.3} parent=1 // loop_footer_branch
      %14 = sbr.rel target = $region3
    $region8: #{generator_forward.3} parent=1 // loop_exit
      _
    %2341 = vsyncpa [#allocation3], 1
    %s2342 = scalar_lea.sflag [#allocation3], 1
    %2343 = vsyncpa %s2342, 1
    %2344 = vsyncpa [#allocation5], 1
    %s2345 = scalar_lea.sflag [#allocation5], 1
    %2346 = vsyncpa %s2345, 1

</llo_original>
